<compile_context>
chip_gen: v6e
topology: v6e:2x2x1
jax: 0.10.0
libtpu: 0.0.40
codegen_flags: <defaults>
</compile_context>

<pallas_src>
import math
import jax
import jax.numpy as jnp
from jax.experimental import pallas as pl
from jax.experimental.pallas import tpu as pltpu

# --- small synthetic config (stands in for `args`) ------------------------------
VOCAB = 64            # args.data_size
EMBED_DIM = 32        # args.decoder_embed_dim
NUM_HEADS = 2         # args.decoder_attention_heads
HEAD_DIM = EMBED_DIM // NUM_HEADS
FFN_DIM = 64          # args.decoder_ffn_embed_dim
NUM_LAYERS = 2        # args.decoder_layers
PADDING_IDX = 0       # args.padding_idx
MAX_POS = 64
EMBED_SCALE = math.sqrt(EMBED_DIM)
NEG_INF = -1e30
QKV_DIM = 3 * NUM_HEADS * HEAD_DIM                 # 96 fused-projection columns
VOCAB_PAD = ((VOCAB + 127) // 128) * 128           # lane-dense logits store (64 -> 128)
APPROX_RECIPROCAL = True                           # set False for exact-division softmax

# packed per-layer small-vector slab: one (8, 128) tile instead of ten tiny inputs
VEC_ROWS = 8
(ROW_B_QKV, ROW_B_O, ROW_LN1_G, ROW_LN1_B,
 ROW_B_FC1, ROW_B_FC2, ROW_LN2_G, ROW_LN2_B) = range(VEC_ROWS)
assert QKV_DIM <= 128 and FFN_DIM <= 128 and EMBED_DIM <= 128


# --- in-kernel helpers -----------------------------------------------------------
def _layer_norm(x, gamma, beta, eps=1e-5):
    mean = jnp.mean(x, axis=-1, keepdims=True)
    var = jnp.mean((x - mean) ** 2, axis=-1, keepdims=True)
    return (x - mean) * jax.lax.rsqrt(var + eps) * gamma + beta


def _softmax_lastdim(s):
    s = s - jnp.max(s, axis=-1, keepdims=True)
    e = jnp.exp(s)
    denom = jnp.sum(e, axis=-1, keepdims=True)
    if APPROX_RECIPROCAL:
        return e * pl.reciprocal(denom, approx=True)
    return e / denom


# --- Pallas kernel: whole decoder stack + aux LM head, one batch slab per program -
def fused_decoder_kernel(seq_ref,                     # scalar-prefetch (SMEM): (B,) int32
                         x_ref, pos_ref, wqkv_ref, wo_ref, w1_ref, w2_ref,
                         vecs_ref, wout_ref,
                         feats_ref, lm_ref):
    p_idx = pl.program_id(0)
    Bp, T, C = x_ref.shape
    M = Bp * T
    H, D = NUM_HEADS, HEAD_DIM
    scale = 1.0 / math.sqrt(D)

    # embedding (sqrt(C) pre-folded into the table) + positional add, then flatten
    # the per-program batch into M = Bp*T matmul rows.
    x = x_ref[...].astype(jnp.float32) + pos_ref[...][None, :, :]      # (Bp, T, C)
    x2 = x.reshape(M, C)                                               # (M, C)

    # causal mask: computed ONCE, reused by every layer
    row = jax.lax.broadcasted_iota(jnp.int32, (T, T), 0)
    col = jax.lax.broadcasted_iota(jnp.int32, (T, T), 1)
    causal = (row >= col)[None]                                        # (1, T, T)
    # TODO(synk): key-padding attention mask omitted (example inputs contain no pads).

    def split_heads(z):
        # (M, H*D) lane-grouped per head -> head-major (H*Bp, T, D) batch for the
        # per-example / per-head score & context einsums.
        parts = [z[:, h * D:(h + 1) * D].reshape(Bp, T, D) for h in range(H)]
        return jnp.concatenate(parts, axis=0)

    for l in range(NUM_LAYERS):                # static unroll; whole stack stays in VMEM
        vec = vecs_ref[l]                      # (8, 128) packed biases / LN params
        b_qkv = vec[ROW_B_QKV:ROW_B_QKV + 1, :QKV_DIM]
        b_o   = vec[ROW_B_O:ROW_B_O + 1, :C]
        ln1_g = vec[ROW_LN1_G:ROW_LN1_G + 1, :C]
        ln1_b = vec[ROW_LN1_B:ROW_LN1_B + 1, :C]
        b_fc1 = vec[ROW_B_FC1:ROW_B_FC1 + 1, :FFN_DIM]
        b_fc2 = vec[ROW_B_FC2:ROW_B_FC2 + 1, :C]
        ln2_g = vec[ROW_LN2_G:ROW_LN2_G + 1, :C]
        ln2_b = vec[ROW_LN2_B:ROW_LN2_B + 1, :C]

        # ---- fused QKV projection: ONE matmul (M, C) @ (C, 3*H*D) ----
        qkv = jnp.dot(x2, wqkv_ref[l], preferred_element_type=jnp.float32) + b_qkv
        q = split_heads(qkv[:, 0:H * D])
        k = split_heads(qkv[:, H * D:2 * H * D])
        v = split_heads(qkv[:, 2 * H * D:3 * H * D])

        # ---- scores / softmax / context, batched over (head, example) ----
        s = jnp.einsum('gqd,gkd->gqk', q * scale, k,
                       preferred_element_type=jnp.float32)             # (H*Bp, T, T)
        s = jnp.where(causal, s, NEG_INF)
        p = _softmax_lastdim(s)
        ctx = jnp.einsum('gqk,gkd->gqd', p, v,
                         preferred_element_type=jnp.float32)           # (H*Bp, T, D)

        # ---- merge heads back to (M, H*D) lanes, ONE out-projection over (h, d) ----
        ctx2 = jnp.concatenate(
            [ctx[h * Bp:(h + 1) * Bp].reshape(M, D) for h in range(H)], axis=-1)
        attn = jnp.dot(ctx2, wo_ref[l], preferred_element_type=jnp.float32) + b_o
        # dropout layers are identity in eval/featurization mode, so omitted
        x2 = _layer_norm(x2 + attn, ln1_g, ln1_b)

        # ---- feed-forward ----
        h1 = jnp.maximum(
            jnp.dot(x2, w1_ref[l], preferred_element_type=jnp.float32) + b_fc1, 0.0)
        h2 = jnp.dot(h1, w2_ref[l], preferred_element_type=jnp.float32) + b_fc2
        x2 = _layer_norm(x2 + h2, ln2_g, ln2_b)

    # ---- feats: write ONLY the seq_len-selected row per example (no (B,T,C) slab) ----
    t_iota = jax.lax.broadcasted_iota(jnp.int32, (T, 1), 0)
    rows = []
    for b in range(Bp):
        sel = (t_iota == seq_ref[p_idx * Bp + b]).astype(jnp.float32)  # (T, 1) one-hot
        rows.append(jnp.sum(x2[b * T:(b + 1) * T, :] * sel, axis=0, keepdims=True))
    feats_ref[0] = jnp.concatenate(rows, axis=0).astype(feats_ref.dtype)   # (Bp, C)

    # ---- aux LM head: F.linear(x, embed_out) == x @ embed_out.T (vocab padded to 128) --
    lm = jax.lax.dot_general(x2, wout_ref[...],
                             dimension_numbers=(((1,), (1,)), ((), ())),
                             preferred_element_type=jnp.float32)       # (M, VOCAB_PAD)
    # logits emitted already in (T, B*VOCAB_PAD) layout: lane-dense 128-aligned stores,
    # the wrapper reshape to (T, B, VOCAB_PAD) is a free row-major view (no HBM transpose).
    for b in range(Bp):
        lm_ref[:, b * VOCAB_PAD:(b + 1) * VOCAB_PAD] = (
            lm[b * T:(b + 1) * T, :].astype(lm_ref.dtype))


def _replicated_spec(shape):
    nd = len(shape)
    return pl.BlockSpec(shape, lambda p, seq, _nd=nd: (0,) * _nd)


def fused_forward(x_tok, seq_len, pos, layers, w_out_pad, *, num_programs=1):
    """num_programs=1: whole batch in one block (single-TC v5e/v6e);
    num_programs=2: one half-batch per TensorCore on v7x."""
    B, T, C = x_tok.shape
    assert B % num_programs == 0
    Bp = B // num_programs

    weights = (pos, layers['w_qkv'], layers['w_o'], layers['w_fc1'],
               layers['w_fc2'], layers['vec'], w_out_pad)
    w_specs = [_replicated_spec(w.shape) for w in weights]

    grid_spec = pltpu.PrefetchScalarGridSpec(
        num_scalar_prefetch=1,                       # seq_len -> SMEM, read in-kernel
        grid=(num_programs,),
        in_specs=[pl.BlockSpec((Bp, T, C), lambda p, seq: (p, 0, 0))] + w_specs,
        out_specs=(pl.BlockSpec((1, Bp, C), lambda p, seq: (p, 0, 0)),
                   pl.BlockSpec((T, Bp * VOCAB_PAD), lambda p, seq: (0, p))),
    )
    return pl.pallas_call(
        fused_decoder_kernel,
        out_shape=(jax.ShapeDtypeStruct((num_programs, Bp, C), jnp.float32),
                   jax.ShapeDtypeStruct((T, B * VOCAB_PAD), jnp.float32)),
        grid_spec=grid_spec,
        compiler_params=pltpu.CompilerParams(dimension_semantics=("parallel",)),
    )(seq_len, x_tok, *weights)


# --- glue: embeddings, positions, parameter init ---------------------------------
def sinusoidal_pos_emb(num_pos, dim, padding_idx):
    # fairseq SinusoidalPositionalEmbedding (positions offset by padding_idx + 1)
    half = dim // 2
    freqs = jnp.exp(jnp.arange(half, dtype=jnp.float32) * -(math.log(10000.0) / (half - 1)))
    pos = jnp.arange(padding_idx + 1, padding_idx + 1 + num_pos, dtype=jnp.float32)
    ang = pos[:, None] * freqs[None, :]
    return jnp.concatenate([jnp.sin(ang), jnp.cos(ang)], axis=1)       # (num_pos, dim)


def init_params(key):
    keys = jax.random.split(key, 2 + NUM_LAYERS)
    embed = 0.02 * jax.random.normal(keys[0], (VOCAB, EMBED_DIM), jnp.float32)
    embed = embed.at[PADDING_IDX].set(0.0)                             # padding_idx row zero
    embed = embed * EMBED_SCALE                                        # fold sqrt(C) scale (host, once)
    embed_out = 0.02 * jax.random.normal(keys[1], (VOCAB, EMBED_DIM), jnp.float32)

    def one_layer(k):
        lk = jax.random.split(k, 4)
        # fused QKV weight, columns ordered [q_h0..q_hH | k_h0.. | v_h0..], each head D wide
        w_qkv = 0.02 * jax.random.normal(lk[0], (EMBED_DIM, QKV_DIM), jnp.float32)
        # out-projection rows ordered [h0 d0..dD-1 | h1 d0..dD-1 | ...]
        w_o = 0.02 * jax.random.normal(lk[1], (NUM_HEADS * HEAD_DIM, EMBED_DIM), jnp.float32)
        w_fc1 = 0.02 * jax.random.normal(lk[2], (EMBED_DIM, FFN_DIM), jnp.float32)
        w_fc2 = 0.02 * jax.random.normal(lk[3], (FFN_DIM, EMBED_DIM), jnp.float32)
        # packed (8,128) slab: biases init 0, LayerNorm gammas init 1, betas 0
        vec = jnp.zeros((VEC_ROWS, 128), jnp.float32)
        vec = vec.at[ROW_LN1_G, :EMBED_DIM].set(1.0)
        vec = vec.at[ROW_LN2_G, :EMBED_DIM].set(1.0)
        return dict(w_qkv=w_qkv, w_o=w_o, w_fc1=w_fc1, w_fc2=w_fc2, vec=vec)

    layers = [one_layer(keys[2 + i]) for i in range(NUM_LAYERS)]
    stacked = {name: jnp.stack([lp[name] for lp in layers]) for name in layers[0]}

    pos = sinusoidal_pos_emb(MAX_POS, EMBED_DIM, PADDING_IDX)          # hoisted out of forward
    # pad output-embedding vocab dim to 128 lanes (padded rows are zero, sliced off later)
    w_out_pad = jnp.pad(embed_out, ((0, VOCAB_PAD - VOCAB), (0, 0)))
    return dict(embed=embed, pos=pos, w_out_pad=w_out_pad, layers=stacked)


def transformer_featurizer(tokens, seq_len, params, aux_lm_loss=True, num_programs=1):
    """Forward: returns (feats, lm_out).

    tokens : (B, T) int32 token ids
    seq_len: (B,)   int32 per-example position index (seq_len.squeeze() in torch)
    """
    B, T = tokens.shape
    x_tok = params['embed'][tokens]                                    # (B, T, C) gather
    pos = params['pos'][:T]                                            # (T, C)

    feats3, lm_flat = fused_forward(x_tok, seq_len.astype(jnp.int32), pos,
                                    params['layers'], params['w_out_pad'],
                                    num_programs=num_programs)

    feats = feats3.reshape(B, EMBED_DIM)                               # (B, C)
    lm_out = None
    if aux_lm_loss:
        lm_out = lm_flat.reshape(T, B, VOCAB_PAD)[:, :, :VOCAB]        # free view + slice
    return feats, lm_out


if __name__ == "__main__":
    key = jax.random.PRNGKey(0)
    pkey, tkey = jax.random.split(key)
    params = init_params(pkey)

    B, T = 2, 16
    tokens = jax.random.randint(tkey, (B, T), 1, VOCAB, dtype=jnp.int32)  # avoid padding_idx
    seq_len = jnp.array([5, 11], dtype=jnp.int32)

    # num_programs=1 (default): whole batch in one block -- best for single-TC v5e/v6e.
    # On v7x call with num_programs=2 to shard the batch across both TensorCores.
    fwd = jax.jit(lambda t, s: transformer_featurizer(t, s, params, aux_lm_loss=True))
    feats, lm_out = fwd(tokens, seq_len)
    jax.block_until_ready((feats, lm_out))

    assert feats.shape == (B, EMBED_DIM)
    assert lm_out.shape == (T, B, VOCAB)
    print("KERNEL_OK")
</pallas_src>

<mosaic_0001>
module attributes {stable_mosaic.version = 11 : i64} {
  func.func @fused_decoder_kernel(%arg0: i32, %arg1: memref<2xi32, #tpu.memory_space<smem>>, %arg2: memref<2x16x32xf32, #tpu.memory_space<vmem>>, %arg3: memref<16x32xf32, #tpu.memory_space<vmem>>, %arg4: memref<2x32x96xf32, #tpu.memory_space<vmem>>, %arg5: memref<2x32x32xf32, #tpu.memory_space<vmem>>, %arg6: memref<2x32x64xf32, #tpu.memory_space<vmem>>, %arg7: memref<2x64x32xf32, #tpu.memory_space<vmem>>, %arg8: memref<2x8x128xf32, #tpu.memory_space<vmem>>, %arg9: memref<128x32xf32, #tpu.memory_space<vmem>>, %arg10: memref<1x2x32xf32, #tpu.memory_space<vmem>>, %arg11: memref<16x256xf32, #tpu.memory_space<vmem>>) attributes {dimension_semantics = [#tpu.dimension_semantics<parallel>], iteration_bounds = array<i64: 1>, scalar_prefetch = 1 : i64, scratch_operands = 0 : i64, tpu.core_type = #tpu.core_type<tc>, window_params = [{transform_indices = @transform_0, window_bounds = array<i64: 2, 16, 32>}, {pipeline_mode = #tpu.pipeline_mode<synchronous>, transform_indices = @transform_1, window_bounds = array<i64: 16, 32>}, {pipeline_mode = #tpu.pipeline_mode<synchronous>, transform_indices = @transform_2, window_bounds = array<i64: 2, 32, 96>}, {pipeline_mode = #tpu.pipeline_mode<synchronous>, transform_indices = @transform_3, window_bounds = array<i64: 2, 32, 32>}, {pipeline_mode = #tpu.pipeline_mode<synchronous>, transform_indices = @transform_4, window_bounds = array<i64: 2, 32, 64>}, {pipeline_mode = #tpu.pipeline_mode<synchronous>, transform_indices = @transform_5, window_bounds = array<i64: 2, 64, 32>}, {pipeline_mode = #tpu.pipeline_mode<synchronous>, transform_indices = @transform_6, window_bounds = array<i64: 2, 8, 128>}, {pipeline_mode = #tpu.pipeline_mode<synchronous>, transform_indices = @transform_7, window_bounds = array<i64: 128, 32>}, {transform_indices = @transform_8, window_bounds = array<i64: 1, 2, 32>}, {transform_indices = @transform_9, window_bounds = array<i64: 16, 256>}]} {
    %c0 = arith.constant 0 : index
    %c0_0 = arith.constant 0 : index
    %c0_1 = arith.constant 0 : index
    %0 = vector.load %arg2[%c0, %c0_0, %c0_1] : memref<2x16x32xf32, #tpu.memory_space<vmem>>, vector<2x16x32xf32>
    %c0_2 = arith.constant 0 : index
    %c0_3 = arith.constant 0 : index
    %1 = vector.load %arg3[%c0_2, %c0_3] : memref<16x32xf32, #tpu.memory_space<vmem>>, vector<16x32xf32>
    %2 = vector.shape_cast %1 : vector<16x32xf32> to vector<1x16x32xf32>
    %3 = vector.broadcast %2 : vector<1x16x32xf32> to vector<2x16x32xf32>
    %4 = arith.addf %0, %3 : vector<2x16x32xf32>
    %5 = vector.shape_cast %4 : vector<2x16x32xf32> to vector<32x32xf32>
    %6 = tpu.iota {dimensions = array<i32: 0>} : vector<16x16xi32>
    %7 = tpu.iota {dimensions = array<i32: 1>} : vector<16x16xi32>
    %8 = arith.cmpi sge, %6, %7 : vector<16x16xi32>
    %9 = vector.shape_cast %8 : vector<16x16xi1> to vector<1x16x16xi1>
    %c0_4 = arith.constant 0 : index
    %c0_5 = arith.constant 0 : index
    %c0_6 = arith.constant 0 : index
    %10 = vector.load %arg8[%c0_4, %c0_5, %c0_6] : memref<2x8x128xf32, #tpu.memory_space<vmem>>, vector<1x8x128xf32>
    %11 = vector.shape_cast %10 : vector<1x8x128xf32> to vector<8x128xf32>
    %12 = vector.extract_strided_slice %11 {offsets = [0, 0], sizes = [1, 96], strides = [1, 1]} : vector<8x128xf32> to vector<1x96xf32>
    %13 = vector.extract_strided_slice %11 {offsets = [1, 0], sizes = [1, 32], strides = [1, 1]} : vector<8x128xf32> to vector<1x32xf32>
    %14 = vector.extract_strided_slice %11 {offsets = [2, 0], sizes = [1, 32], strides = [1, 1]} : vector<8x128xf32> to vector<1x32xf32>
    %15 = vector.extract_strided_slice %11 {offsets = [3, 0], sizes = [1, 32], strides = [1, 1]} : vector<8x128xf32> to vector<1x32xf32>
    %16 = vector.extract_strided_slice %11 {offsets = [4, 0], sizes = [1, 64], strides = [1, 1]} : vector<8x128xf32> to vector<1x64xf32>
    %17 = vector.extract_strided_slice %11 {offsets = [5, 0], sizes = [1, 32], strides = [1, 1]} : vector<8x128xf32> to vector<1x32xf32>
    %18 = vector.extract_strided_slice %11 {offsets = [6, 0], sizes = [1, 32], strides = [1, 1]} : vector<8x128xf32> to vector<1x32xf32>
    %19 = vector.extract_strided_slice %11 {offsets = [7, 0], sizes = [1, 32], strides = [1, 1]} : vector<8x128xf32> to vector<1x32xf32>
    %c0_7 = arith.constant 0 : index
    %c0_8 = arith.constant 0 : index
    %c0_9 = arith.constant 0 : index
    %20 = vector.load %arg4[%c0_7, %c0_8, %c0_9] : memref<2x32x96xf32, #tpu.memory_space<vmem>>, vector<1x32x96xf32>
    %21 = vector.shape_cast %20 : vector<1x32x96xf32> to vector<32x96xf32>
    %cst = arith.constant dense<0.000000e+00> : vector<32x96xf32>
    %22 = tpu.matmul %5, %21, %cst {dimension_numbers = #tpu.dot_dimension_numbers<[1], [0], [0], [1], [0, 0, 1, 1], [], []>} : vector<32x32xf32>, vector<32x96xf32>, vector<32x96xf32> -> vector<32x96xf32>
    %23 = vector.broadcast %12 : vector<1x96xf32> to vector<32x96xf32>
    %24 = arith.addf %22, %23 : vector<32x96xf32>
    %25 = vector.extract_strided_slice %24 {offsets = [0, 0], sizes = [32, 32], strides = [1, 1]} : vector<32x96xf32> to vector<32x32xf32>
    %26 = vector.extract_strided_slice %25 {offsets = [0, 0], sizes = [32, 16], strides = [1, 1]} : vector<32x32xf32> to vector<32x16xf32>
    %27 = vector.shape_cast %26 : vector<32x16xf32> to vector<2x16x16xf32>
    %28 = vector.extract_strided_slice %25 {offsets = [0, 16], sizes = [32, 16], strides = [1, 1]} : vector<32x32xf32> to vector<32x16xf32>
    %29 = vector.shape_cast %28 : vector<32x16xf32> to vector<2x16x16xf32>
    %30 = tpu.concatenate %27, %29 in 0 : vector<2x16x16xf32>, vector<2x16x16xf32> -> vector<4x16x16xf32>
    %31 = vector.extract_strided_slice %24 {offsets = [0, 32], sizes = [32, 32], strides = [1, 1]} : vector<32x96xf32> to vector<32x32xf32>
    %32 = vector.extract_strided_slice %31 {offsets = [0, 0], sizes = [32, 16], strides = [1, 1]} : vector<32x32xf32> to vector<32x16xf32>
    %33 = vector.shape_cast %32 : vector<32x16xf32> to vector<2x16x16xf32>
    %34 = vector.extract_strided_slice %31 {offsets = [0, 16], sizes = [32, 16], strides = [1, 1]} : vector<32x32xf32> to vector<32x16xf32>
    %35 = vector.shape_cast %34 : vector<32x16xf32> to vector<2x16x16xf32>
    %36 = tpu.concatenate %33, %35 in 0 : vector<2x16x16xf32>, vector<2x16x16xf32> -> vector<4x16x16xf32>
    %37 = vector.extract_strided_slice %24 {offsets = [0, 64], sizes = [32, 32], strides = [1, 1]} : vector<32x96xf32> to vector<32x32xf32>
    %38 = vector.extract_strided_slice %37 {offsets = [0, 0], sizes = [32, 16], strides = [1, 1]} : vector<32x32xf32> to vector<32x16xf32>
    %39 = vector.shape_cast %38 : vector<32x16xf32> to vector<2x16x16xf32>
    %40 = vector.extract_strided_slice %37 {offsets = [0, 16], sizes = [32, 16], strides = [1, 1]} : vector<32x32xf32> to vector<32x16xf32>
    %41 = vector.shape_cast %40 : vector<32x16xf32> to vector<2x16x16xf32>
    %42 = tpu.concatenate %39, %41 in 0 : vector<2x16x16xf32>, vector<2x16x16xf32> -> vector<4x16x16xf32>
    %cst_10 = arith.constant 2.500000e-01 : f32
    %43 = vector.broadcast %cst_10 : f32 to vector<4x16x16xf32>
    %44 = arith.mulf %30, %43 : vector<4x16x16xf32>
    "tpu.trace_start"() <{level = 10 : i32, message = "gqd,gkd->gqk"}> : () -> ()
    %cst_11 = arith.constant dense<0.000000e+00> : vector<4x16x16xf32>
    %45 = tpu.matmul %44, %36, %cst_11 {dimension_numbers = #tpu.dot_dimension_numbers<[2], [2], [1], [1], [0, 0, 0, 1, 1, 1], [0], [0]>} : vector<4x16x16xf32>, vector<4x16x16xf32>, vector<4x16x16xf32> -> vector<4x16x16xf32>
    %cst_12 = arith.constant -1.000000e+30 : f32
    "tpu.trace_stop"() : () -> ()
    %46 = vector.shape_cast %9 : vector<1x16x16xi1> to vector<1x16x16xi1>
    %47 = vector.broadcast %46 : vector<1x16x16xi1> to vector<4x16x16xi1>
    %48 = vector.broadcast %cst_12 : f32 to vector<4x16x16xf32>
    %49 = arith.select %47, %45, %48 : vector<4x16x16xi1>, vector<4x16x16xf32>
    %cst_13 = arith.constant dense<0xFF800000> : vector<4x16xf32>
    %50 = vector.multi_reduction <maximumf>, %49, %cst_13 [2] : vector<4x16x16xf32> to vector<4x16xf32>
    %51 = vector.shape_cast %50 : vector<4x16xf32> to vector<4x16x1xf32>
    %52 = vector.broadcast %51 : vector<4x16x1xf32> to vector<4x16x16xf32>
    %53 = arith.subf %49, %52 : vector<4x16x16xf32>
    %54 = math.exp %53 : vector<4x16x16xf32>
    %cst_14 = arith.constant dense<0.000000e+00> : vector<4x16xf32>
    %55 = vector.multi_reduction <add>, %54, %cst_14 [2] : vector<4x16x16xf32> to vector<4x16xf32>
    %56 = vector.shape_cast %55 : vector<4x16xf32> to vector<4x16x1xf32>
    %57 = tpu.reciprocal %56 {approx = true} : vector<4x16x1xf32> -> vector<4x16x1xf32>
    %58 = vector.broadcast %57 : vector<4x16x1xf32> to vector<4x16x16xf32>
    %59 = arith.mulf %54, %58 : vector<4x16x16xf32>
    "tpu.trace_start"() <{level = 10 : i32, message = "gqk,gkd->gqd"}> : () -> ()
    %cst_15 = arith.constant dense<0.000000e+00> : vector<4x16x16xf32>
    %60 = tpu.matmul %59, %42, %cst_15 {dimension_numbers = #tpu.dot_dimension_numbers<[2], [1], [1], [2], [0, 0, 0, 1, 1, 2], [0], [0]>} : vector<4x16x16xf32>, vector<4x16x16xf32>, vector<4x16x16xf32> -> vector<4x16x16xf32>
    "tpu.trace_stop"() : () -> ()
    %61 = vector.extract_strided_slice %60 {offsets = [0, 0, 0], sizes = [2, 16, 16], strides = [1, 1, 1]} : vector<4x16x16xf32> to vector<2x16x16xf32>
    %62 = vector.shape_cast %61 : vector<2x16x16xf32> to vector<32x16xf32>
    %63 = vector.extract_strided_slice %60 {offsets = [2, 0, 0], sizes = [2, 16, 16], strides = [1, 1, 1]} : vector<4x16x16xf32> to vector<2x16x16xf32>
    %64 = vector.shape_cast %63 : vector<2x16x16xf32> to vector<32x16xf32>
    %65 = tpu.concatenate %62, %64 in 1 : vector<32x16xf32>, vector<32x16xf32> -> vector<32x32xf32>
    %c0_16 = arith.constant 0 : index
    %c0_17 = arith.constant 0 : index
    %c0_18 = arith.constant 0 : index
    %66 = vector.load %arg5[%c0_16, %c0_17, %c0_18] : memref<2x32x32xf32, #tpu.memory_space<vmem>>, vector<1x32x32xf32>
    %67 = vector.shape_cast %66 : vector<1x32x32xf32> to vector<32x32xf32>
    %cst_19 = arith.constant dense<0.000000e+00> : vector<32x32xf32>
    %68 = tpu.matmul %65, %67, %cst_19 {dimension_numbers = #tpu.dot_dimension_numbers<[1], [0], [0], [1], [0, 0, 1, 1], [], []>} : vector<32x32xf32>, vector<32x32xf32>, vector<32x32xf32> -> vector<32x32xf32>
    %69 = vector.broadcast %13 : vector<1x32xf32> to vector<32x32xf32>
    %70 = arith.addf %68, %69 : vector<32x32xf32>
    %71 = arith.addf %5, %70 : vector<32x32xf32>
    %cst_20 = arith.constant dense<0.000000e+00> : vector<32xf32>
    %72 = vector.multi_reduction <add>, %71, %cst_20 [1] : vector<32x32xf32> to vector<32xf32>
    %73 = vector.shape_cast %72 : vector<32xf32> to vector<32x1xf32>
    %cst_21 = arith.constant 3.200000e+01 : f32
    %74 = vector.broadcast %cst_21 : f32 to vector<32x1xf32>
    %75 = arith.divf %73, %74 : vector<32x1xf32>
    %76 = vector.broadcast %75 : vector<32x1xf32> to vector<32x32xf32>
    %77 = arith.subf %71, %76 : vector<32x32xf32>
    %78 = arith.mulf %77, %77 : vector<32x32xf32>
    %cst_22 = arith.constant dense<0.000000e+00> : vector<32xf32>
    %79 = vector.multi_reduction <add>, %78, %cst_22 [1] : vector<32x32xf32> to vector<32xf32>
    %80 = vector.shape_cast %79 : vector<32xf32> to vector<32x1xf32>
    %cst_23 = arith.constant 3.200000e+01 : f32
    %81 = vector.broadcast %cst_23 : f32 to vector<32x1xf32>
    %82 = arith.divf %80, %81 : vector<32x1xf32>
    %83 = vector.broadcast %75 : vector<32x1xf32> to vector<32x32xf32>
    %84 = arith.subf %71, %83 : vector<32x32xf32>
    %cst_24 = arith.constant 9.99999974E-6 : f32
    %85 = vector.broadcast %cst_24 : f32 to vector<32x1xf32>
    %86 = arith.addf %82, %85 : vector<32x1xf32>
    %87 = math.rsqrt %86 : vector<32x1xf32>
    %88 = vector.broadcast %87 : vector<32x1xf32> to vector<32x32xf32>
    %89 = arith.mulf %84, %88 : vector<32x32xf32>
    %90 = vector.broadcast %14 : vector<1x32xf32> to vector<32x32xf32>
    %91 = arith.mulf %89, %90 : vector<32x32xf32>
    %92 = vector.broadcast %15 : vector<1x32xf32> to vector<32x32xf32>
    %93 = arith.addf %91, %92 : vector<32x32xf32>
    %c0_25 = arith.constant 0 : index
    %c0_26 = arith.constant 0 : index
    %c0_27 = arith.constant 0 : index
    %94 = vector.load %arg6[%c0_25, %c0_26, %c0_27] : memref<2x32x64xf32, #tpu.memory_space<vmem>>, vector<1x32x64xf32>
    %95 = vector.shape_cast %94 : vector<1x32x64xf32> to vector<32x64xf32>
    %cst_28 = arith.constant dense<0.000000e+00> : vector<32x64xf32>
    %96 = tpu.matmul %93, %95, %cst_28 {dimension_numbers = #tpu.dot_dimension_numbers<[1], [0], [0], [1], [0, 0, 1, 1], [], []>} : vector<32x32xf32>, vector<32x64xf32>, vector<32x64xf32> -> vector<32x64xf32>
    %97 = vector.broadcast %16 : vector<1x64xf32> to vector<32x64xf32>
    %98 = arith.addf %96, %97 : vector<32x64xf32>
    %cst_29 = arith.constant 0.000000e+00 : f32
    %99 = vector.broadcast %cst_29 : f32 to vector<32x64xf32>
    %100 = arith.maximumf %98, %99 : vector<32x64xf32>
    %c0_30 = arith.constant 0 : index
    %c0_31 = arith.constant 0 : index
    %c0_32 = arith.constant 0 : index
    %101 = vector.load %arg7[%c0_30, %c0_31, %c0_32] : memref<2x64x32xf32, #tpu.memory_space<vmem>>, vector<1x64x32xf32>
    %102 = vector.shape_cast %101 : vector<1x64x32xf32> to vector<64x32xf32>
    %cst_33 = arith.constant dense<0.000000e+00> : vector<32x32xf32>
    %103 = tpu.matmul %100, %102, %cst_33 {dimension_numbers = #tpu.dot_dimension_numbers<[1], [0], [0], [1], [0, 0, 1, 1], [], []>} : vector<32x64xf32>, vector<64x32xf32>, vector<32x32xf32> -> vector<32x32xf32>
    %104 = vector.broadcast %17 : vector<1x32xf32> to vector<32x32xf32>
    %105 = arith.addf %103, %104 : vector<32x32xf32>
    %106 = arith.addf %93, %105 : vector<32x32xf32>
    %cst_34 = arith.constant dense<0.000000e+00> : vector<32xf32>
    %107 = vector.multi_reduction <add>, %106, %cst_34 [1] : vector<32x32xf32> to vector<32xf32>
    %108 = vector.shape_cast %107 : vector<32xf32> to vector<32x1xf32>
    %cst_35 = arith.constant 3.200000e+01 : f32
    %109 = vector.broadcast %cst_35 : f32 to vector<32x1xf32>
    %110 = arith.divf %108, %109 : vector<32x1xf32>
    %111 = vector.broadcast %110 : vector<32x1xf32> to vector<32x32xf32>
    %112 = arith.subf %106, %111 : vector<32x32xf32>
    %113 = arith.mulf %112, %112 : vector<32x32xf32>
    %cst_36 = arith.constant dense<0.000000e+00> : vector<32xf32>
    %114 = vector.multi_reduction <add>, %113, %cst_36 [1] : vector<32x32xf32> to vector<32xf32>
    %115 = vector.shape_cast %114 : vector<32xf32> to vector<32x1xf32>
    %cst_37 = arith.constant 3.200000e+01 : f32
    %116 = vector.broadcast %cst_37 : f32 to vector<32x1xf32>
    %117 = arith.divf %115, %116 : vector<32x1xf32>
    %118 = vector.broadcast %110 : vector<32x1xf32> to vector<32x32xf32>
    %119 = arith.subf %106, %118 : vector<32x32xf32>
    %cst_38 = arith.constant 9.99999974E-6 : f32
    %120 = vector.broadcast %cst_38 : f32 to vector<32x1xf32>
    %121 = arith.addf %117, %120 : vector<32x1xf32>
    %122 = math.rsqrt %121 : vector<32x1xf32>
    %123 = vector.broadcast %122 : vector<32x1xf32> to vector<32x32xf32>
    %124 = arith.mulf %119, %123 : vector<32x32xf32>
    %125 = vector.broadcast %18 : vector<1x32xf32> to vector<32x32xf32>
    %126 = arith.mulf %124, %125 : vector<32x32xf32>
    %127 = vector.broadcast %19 : vector<1x32xf32> to vector<32x32xf32>
    %128 = arith.addf %126, %127 : vector<32x32xf32>
    %c1 = arith.constant 1 : index
    %c0_39 = arith.constant 0 : index
    %c0_40 = arith.constant 0 : index
    %129 = vector.load %arg8[%c1, %c0_39, %c0_40] : memref<2x8x128xf32, #tpu.memory_space<vmem>>, vector<1x8x128xf32>
    %130 = vector.shape_cast %129 : vector<1x8x128xf32> to vector<8x128xf32>
    %131 = vector.extract_strided_slice %130 {offsets = [0, 0], sizes = [1, 96], strides = [1, 1]} : vector<8x128xf32> to vector<1x96xf32>
    %132 = vector.extract_strided_slice %130 {offsets = [1, 0], sizes = [1, 32], strides = [1, 1]} : vector<8x128xf32> to vector<1x32xf32>
    %133 = vector.extract_strided_slice %130 {offsets = [2, 0], sizes = [1, 32], strides = [1, 1]} : vector<8x128xf32> to vector<1x32xf32>
    %134 = vector.extract_strided_slice %130 {offsets = [3, 0], sizes = [1, 32], strides = [1, 1]} : vector<8x128xf32> to vector<1x32xf32>
    %135 = vector.extract_strided_slice %130 {offsets = [4, 0], sizes = [1, 64], strides = [1, 1]} : vector<8x128xf32> to vector<1x64xf32>
    %136 = vector.extract_strided_slice %130 {offsets = [5, 0], sizes = [1, 32], strides = [1, 1]} : vector<8x128xf32> to vector<1x32xf32>
    %137 = vector.extract_strided_slice %130 {offsets = [6, 0], sizes = [1, 32], strides = [1, 1]} : vector<8x128xf32> to vector<1x32xf32>
    %138 = vector.extract_strided_slice %130 {offsets = [7, 0], sizes = [1, 32], strides = [1, 1]} : vector<8x128xf32> to vector<1x32xf32>
    %c1_41 = arith.constant 1 : index
    %c0_42 = arith.constant 0 : index
    %c0_43 = arith.constant 0 : index
    %139 = vector.load %arg4[%c1_41, %c0_42, %c0_43] : memref<2x32x96xf32, #tpu.memory_space<vmem>>, vector<1x32x96xf32>
    %140 = vector.shape_cast %139 : vector<1x32x96xf32> to vector<32x96xf32>
    %cst_44 = arith.constant dense<0.000000e+00> : vector<32x96xf32>
    %141 = tpu.matmul %128, %140, %cst_44 {dimension_numbers = #tpu.dot_dimension_numbers<[1], [0], [0], [1], [0, 0, 1, 1], [], []>} : vector<32x32xf32>, vector<32x96xf32>, vector<32x96xf32> -> vector<32x96xf32>
    %142 = vector.broadcast %131 : vector<1x96xf32> to vector<32x96xf32>
    %143 = arith.addf %141, %142 : vector<32x96xf32>
    %144 = vector.extract_strided_slice %143 {offsets = [0, 0], sizes = [32, 32], strides = [1, 1]} : vector<32x96xf32> to vector<32x32xf32>
    %145 = vector.extract_strided_slice %144 {offsets = [0, 0], sizes = [32, 16], strides = [1, 1]} : vector<32x32xf32> to vector<32x16xf32>
    %146 = vector.shape_cast %145 : vector<32x16xf32> to vector<2x16x16xf32>
    %147 = vector.extract_strided_slice %144 {offsets = [0, 16], sizes = [32, 16], strides = [1, 1]} : vector<32x32xf32> to vector<32x16xf32>
    %148 = vector.shape_cast %147 : vector<32x16xf32> to vector<2x16x16xf32>
    %149 = tpu.concatenate %146, %148 in 0 : vector<2x16x16xf32>, vector<2x16x16xf32> -> vector<4x16x16xf32>
    %150 = vector.extract_strided_slice %143 {offsets = [0, 32], sizes = [32, 32], strides = [1, 1]} : vector<32x96xf32> to vector<32x32xf32>
    %151 = vector.extract_strided_slice %150 {offsets = [0, 0], sizes = [32, 16], strides = [1, 1]} : vector<32x32xf32> to vector<32x16xf32>
    %152 = vector.shape_cast %151 : vector<32x16xf32> to vector<2x16x16xf32>
    %153 = vector.extract_strided_slice %150 {offsets = [0, 16], sizes = [32, 16], strides = [1, 1]} : vector<32x32xf32> to vector<32x16xf32>
    %154 = vector.shape_cast %153 : vector<32x16xf32> to vector<2x16x16xf32>
    %155 = tpu.concatenate %152, %154 in 0 : vector<2x16x16xf32>, vector<2x16x16xf32> -> vector<4x16x16xf32>
    %156 = vector.extract_strided_slice %143 {offsets = [0, 64], sizes = [32, 32], strides = [1, 1]} : vector<32x96xf32> to vector<32x32xf32>
    %157 = vector.extract_strided_slice %156 {offsets = [0, 0], sizes = [32, 16], strides = [1, 1]} : vector<32x32xf32> to vector<32x16xf32>
    %158 = vector.shape_cast %157 : vector<32x16xf32> to vector<2x16x16xf32>
    %159 = vector.extract_strided_slice %156 {offsets = [0, 16], sizes = [32, 16], strides = [1, 1]} : vector<32x32xf32> to vector<32x16xf32>
    %160 = vector.shape_cast %159 : vector<32x16xf32> to vector<2x16x16xf32>
    %161 = tpu.concatenate %158, %160 in 0 : vector<2x16x16xf32>, vector<2x16x16xf32> -> vector<4x16x16xf32>
    %cst_45 = arith.constant 2.500000e-01 : f32
    %162 = vector.broadcast %cst_45 : f32 to vector<4x16x16xf32>
    %163 = arith.mulf %149, %162 : vector<4x16x16xf32>
    "tpu.trace_start"() <{level = 10 : i32, message = "gqd,gkd->gqk"}> : () -> ()
    %cst_46 = arith.constant dense<0.000000e+00> : vector<4x16x16xf32>
    %164 = tpu.matmul %163, %155, %cst_46 {dimension_numbers = #tpu.dot_dimension_numbers<[2], [2], [1], [1], [0, 0, 0, 1, 1, 1], [0], [0]>} : vector<4x16x16xf32>, vector<4x16x16xf32>, vector<4x16x16xf32> -> vector<4x16x16xf32>
    %cst_47 = arith.constant -1.000000e+30 : f32
    "tpu.trace_stop"() : () -> ()
    %165 = vector.shape_cast %9 : vector<1x16x16xi1> to vector<1x16x16xi1>
    %166 = vector.broadcast %165 : vector<1x16x16xi1> to vector<4x16x16xi1>
    %167 = vector.broadcast %cst_47 : f32 to vector<4x16x16xf32>
    %168 = arith.select %166, %164, %167 : vector<4x16x16xi1>, vector<4x16x16xf32>
    %cst_48 = arith.constant dense<0xFF800000> : vector<4x16xf32>
    %169 = vector.multi_reduction <maximumf>, %168, %cst_48 [2] : vector<4x16x16xf32> to vector<4x16xf32>
    %170 = vector.shape_cast %169 : vector<4x16xf32> to vector<4x16x1xf32>
    %171 = vector.broadcast %170 : vector<4x16x1xf32> to vector<4x16x16xf32>
    %172 = arith.subf %168, %171 : vector<4x16x16xf32>
    %173 = math.exp %172 : vector<4x16x16xf32>
    %cst_49 = arith.constant dense<0.000000e+00> : vector<4x16xf32>
    %174 = vector.multi_reduction <add>, %173, %cst_49 [2] : vector<4x16x16xf32> to vector<4x16xf32>
    %175 = vector.shape_cast %174 : vector<4x16xf32> to vector<4x16x1xf32>
    %176 = tpu.reciprocal %175 {approx = true} : vector<4x16x1xf32> -> vector<4x16x1xf32>
    %177 = vector.broadcast %176 : vector<4x16x1xf32> to vector<4x16x16xf32>
    %178 = arith.mulf %173, %177 : vector<4x16x16xf32>
    "tpu.trace_start"() <{level = 10 : i32, message = "gqk,gkd->gqd"}> : () -> ()
    %cst_50 = arith.constant dense<0.000000e+00> : vector<4x16x16xf32>
    %179 = tpu.matmul %178, %161, %cst_50 {dimension_numbers = #tpu.dot_dimension_numbers<[2], [1], [1], [2], [0, 0, 0, 1, 1, 2], [0], [0]>} : vector<4x16x16xf32>, vector<4x16x16xf32>, vector<4x16x16xf32> -> vector<4x16x16xf32>
    "tpu.trace_stop"() : () -> ()
    %180 = vector.extract_strided_slice %179 {offsets = [0, 0, 0], sizes = [2, 16, 16], strides = [1, 1, 1]} : vector<4x16x16xf32> to vector<2x16x16xf32>
    %181 = vector.shape_cast %180 : vector<2x16x16xf32> to vector<32x16xf32>
    %182 = vector.extract_strided_slice %179 {offsets = [2, 0, 0], sizes = [2, 16, 16], strides = [1, 1, 1]} : vector<4x16x16xf32> to vector<2x16x16xf32>
    %183 = vector.shape_cast %182 : vector<2x16x16xf32> to vector<32x16xf32>
    %184 = tpu.concatenate %181, %183 in 1 : vector<32x16xf32>, vector<32x16xf32> -> vector<32x32xf32>
    %c1_51 = arith.constant 1 : index
    %c0_52 = arith.constant 0 : index
    %c0_53 = arith.constant 0 : index
    %185 = vector.load %arg5[%c1_51, %c0_52, %c0_53] : memref<2x32x32xf32, #tpu.memory_space<vmem>>, vector<1x32x32xf32>
    %186 = vector.shape_cast %185 : vector<1x32x32xf32> to vector<32x32xf32>
    %cst_54 = arith.constant dense<0.000000e+00> : vector<32x32xf32>
    %187 = tpu.matmul %184, %186, %cst_54 {dimension_numbers = #tpu.dot_dimension_numbers<[1], [0], [0], [1], [0, 0, 1, 1], [], []>} : vector<32x32xf32>, vector<32x32xf32>, vector<32x32xf32> -> vector<32x32xf32>
    %188 = vector.broadcast %132 : vector<1x32xf32> to vector<32x32xf32>
    %189 = arith.addf %187, %188 : vector<32x32xf32>
    %190 = arith.addf %128, %189 : vector<32x32xf32>
    %cst_55 = arith.constant dense<0.000000e+00> : vector<32xf32>
    %191 = vector.multi_reduction <add>, %190, %cst_55 [1] : vector<32x32xf32> to vector<32xf32>
    %192 = vector.shape_cast %191 : vector<32xf32> to vector<32x1xf32>
    %cst_56 = arith.constant 3.200000e+01 : f32
    %193 = vector.broadcast %cst_56 : f32 to vector<32x1xf32>
    %194 = arith.divf %192, %193 : vector<32x1xf32>
    %195 = vector.broadcast %194 : vector<32x1xf32> to vector<32x32xf32>
    %196 = arith.subf %190, %195 : vector<32x32xf32>
    %197 = arith.mulf %196, %196 : vector<32x32xf32>
    %cst_57 = arith.constant dense<0.000000e+00> : vector<32xf32>
    %198 = vector.multi_reduction <add>, %197, %cst_57 [1] : vector<32x32xf32> to vector<32xf32>
    %199 = vector.shape_cast %198 : vector<32xf32> to vector<32x1xf32>
    %cst_58 = arith.constant 3.200000e+01 : f32
    %200 = vector.broadcast %cst_58 : f32 to vector<32x1xf32>
    %201 = arith.divf %199, %200 : vector<32x1xf32>
    %202 = vector.broadcast %194 : vector<32x1xf32> to vector<32x32xf32>
    %203 = arith.subf %190, %202 : vector<32x32xf32>
    %cst_59 = arith.constant 9.99999974E-6 : f32
    %204 = vector.broadcast %cst_59 : f32 to vector<32x1xf32>
    %205 = arith.addf %201, %204 : vector<32x1xf32>
    %206 = math.rsqrt %205 : vector<32x1xf32>
    %207 = vector.broadcast %206 : vector<32x1xf32> to vector<32x32xf32>
    %208 = arith.mulf %203, %207 : vector<32x32xf32>
    %209 = vector.broadcast %133 : vector<1x32xf32> to vector<32x32xf32>
    %210 = arith.mulf %208, %209 : vector<32x32xf32>
    %211 = vector.broadcast %134 : vector<1x32xf32> to vector<32x32xf32>
    %212 = arith.addf %210, %211 : vector<32x32xf32>
    %c1_60 = arith.constant 1 : index
    %c0_61 = arith.constant 0 : index
    %c0_62 = arith.constant 0 : index
    %213 = vector.load %arg6[%c1_60, %c0_61, %c0_62] : memref<2x32x64xf32, #tpu.memory_space<vmem>>, vector<1x32x64xf32>
    %214 = vector.shape_cast %213 : vector<1x32x64xf32> to vector<32x64xf32>
    %cst_63 = arith.constant dense<0.000000e+00> : vector<32x64xf32>
    %215 = tpu.matmul %212, %214, %cst_63 {dimension_numbers = #tpu.dot_dimension_numbers<[1], [0], [0], [1], [0, 0, 1, 1], [], []>} : vector<32x32xf32>, vector<32x64xf32>, vector<32x64xf32> -> vector<32x64xf32>
    %216 = vector.broadcast %135 : vector<1x64xf32> to vector<32x64xf32>
    %217 = arith.addf %215, %216 : vector<32x64xf32>
    %cst_64 = arith.constant 0.000000e+00 : f32
    %218 = vector.broadcast %cst_64 : f32 to vector<32x64xf32>
    %219 = arith.maximumf %217, %218 : vector<32x64xf32>
    %c1_65 = arith.constant 1 : index
    %c0_66 = arith.constant 0 : index
    %c0_67 = arith.constant 0 : index
    %220 = vector.load %arg7[%c1_65, %c0_66, %c0_67] : memref<2x64x32xf32, #tpu.memory_space<vmem>>, vector<1x64x32xf32>
    %221 = vector.shape_cast %220 : vector<1x64x32xf32> to vector<64x32xf32>
    %cst_68 = arith.constant dense<0.000000e+00> : vector<32x32xf32>
    %222 = tpu.matmul %219, %221, %cst_68 {dimension_numbers = #tpu.dot_dimension_numbers<[1], [0], [0], [1], [0, 0, 1, 1], [], []>} : vector<32x64xf32>, vector<64x32xf32>, vector<32x32xf32> -> vector<32x32xf32>
    %223 = vector.broadcast %136 : vector<1x32xf32> to vector<32x32xf32>
    %224 = arith.addf %222, %223 : vector<32x32xf32>
    %225 = arith.addf %212, %224 : vector<32x32xf32>
    %cst_69 = arith.constant dense<0.000000e+00> : vector<32xf32>
    %226 = vector.multi_reduction <add>, %225, %cst_69 [1] : vector<32x32xf32> to vector<32xf32>
    %227 = vector.shape_cast %226 : vector<32xf32> to vector<32x1xf32>
    %cst_70 = arith.constant 3.200000e+01 : f32
    %228 = vector.broadcast %cst_70 : f32 to vector<32x1xf32>
    %229 = arith.divf %227, %228 : vector<32x1xf32>
    %230 = vector.broadcast %229 : vector<32x1xf32> to vector<32x32xf32>
    %231 = arith.subf %225, %230 : vector<32x32xf32>
    %232 = arith.mulf %231, %231 : vector<32x32xf32>
    %cst_71 = arith.constant dense<0.000000e+00> : vector<32xf32>
    %233 = vector.multi_reduction <add>, %232, %cst_71 [1] : vector<32x32xf32> to vector<32xf32>
    %234 = vector.shape_cast %233 : vector<32xf32> to vector<32x1xf32>
    %cst_72 = arith.constant 3.200000e+01 : f32
    %235 = vector.broadcast %cst_72 : f32 to vector<32x1xf32>
    %236 = arith.divf %234, %235 : vector<32x1xf32>
    %237 = vector.broadcast %229 : vector<32x1xf32> to vector<32x32xf32>
    %238 = arith.subf %225, %237 : vector<32x32xf32>
    %cst_73 = arith.constant 9.99999974E-6 : f32
    %239 = vector.broadcast %cst_73 : f32 to vector<32x1xf32>
    %240 = arith.addf %236, %239 : vector<32x1xf32>
    %241 = math.rsqrt %240 : vector<32x1xf32>
    %242 = vector.broadcast %241 : vector<32x1xf32> to vector<32x32xf32>
    %243 = arith.mulf %238, %242 : vector<32x32xf32>
    %244 = vector.broadcast %137 : vector<1x32xf32> to vector<32x32xf32>
    %245 = arith.mulf %243, %244 : vector<32x32xf32>
    %246 = vector.broadcast %138 : vector<1x32xf32> to vector<32x32xf32>
    %247 = arith.addf %245, %246 : vector<32x32xf32>
    %248 = tpu.iota {dimensions = array<i32: 0>} : vector<16x1xi32>
    %c2_i32 = arith.constant 2 : i32
    %249 = arith.muli %arg0, %c2_i32 : i32
    %c0_i32 = arith.constant 0 : i32
    %250 = arith.addi %249, %c0_i32 : i32
    %251 = arith.index_cast %250 : i32 to index
    %252 = memref.load %arg1[%251] : memref<2xi32, #tpu.memory_space<smem>>
    %253 = vector.broadcast %252 : i32 to vector<16x1xi32>
    %254 = arith.cmpi eq, %248, %253 : vector<16x1xi32>
    %255 = arith.extui %254 : vector<16x1xi1> to vector<16x1xi32>
    %256 = arith.sitofp %255 : vector<16x1xi32> to vector<16x1xf32>
    %257 = vector.extract_strided_slice %247 {offsets = [0, 0], sizes = [16, 32], strides = [1, 1]} : vector<32x32xf32> to vector<16x32xf32>
    %258 = vector.broadcast %256 : vector<16x1xf32> to vector<16x32xf32>
    %259 = arith.mulf %257, %258 : vector<16x32xf32>
    %cst_74 = arith.constant dense<0.000000e+00> : vector<32xf32>
    %260 = vector.multi_reduction <add>, %259, %cst_74 [0] : vector<16x32xf32> to vector<32xf32>
    %261 = vector.shape_cast %260 : vector<32xf32> to vector<1x32xf32>
    %c2_i32_75 = arith.constant 2 : i32
    %262 = arith.muli %arg0, %c2_i32_75 : i32
    %c1_i32 = arith.constant 1 : i32
    %263 = arith.addi %262, %c1_i32 : i32
    %264 = arith.index_cast %263 : i32 to index
    %265 = memref.load %arg1[%264] : memref<2xi32, #tpu.memory_space<smem>>
    %266 = vector.broadcast %265 : i32 to vector<16x1xi32>
    %267 = arith.cmpi eq, %248, %266 : vector<16x1xi32>
    %268 = arith.extui %267 : vector<16x1xi1> to vector<16x1xi32>
    %269 = arith.sitofp %268 : vector<16x1xi32> to vector<16x1xf32>
    %270 = vector.extract_strided_slice %247 {offsets = [16, 0], sizes = [16, 32], strides = [1, 1]} : vector<32x32xf32> to vector<16x32xf32>
    %271 = vector.broadcast %269 : vector<16x1xf32> to vector<16x32xf32>
    %272 = arith.mulf %270, %271 : vector<16x32xf32>
    %cst_76 = arith.constant dense<0.000000e+00> : vector<32xf32>
    %273 = vector.multi_reduction <add>, %272, %cst_76 [0] : vector<16x32xf32> to vector<32xf32>
    %274 = vector.shape_cast %273 : vector<32xf32> to vector<1x32xf32>
    %275 = tpu.concatenate %261, %274 in 0 : vector<1x32xf32>, vector<1x32xf32> -> vector<2x32xf32>
    %c0_77 = arith.constant 0 : index
    %c0_78 = arith.constant 0 : index
    %c0_79 = arith.constant 0 : index
    %276 = vector.load %arg10[%c0_77, %c0_78, %c0_79] : memref<1x2x32xf32, #tpu.memory_space<vmem>>, vector<1x2x32xf32>
    %277 = vector.shape_cast %276 : vector<1x2x32xf32> to vector<2x32xf32>
    %278 = vector.shape_cast %275 : vector<2x32xf32> to vector<1x2x32xf32>
    tpu.vector_store %arg10[%c0_77, %c0_78, %c0_79], %278 {strides = array<i32>} : memref<1x2x32xf32, #tpu.memory_space<vmem>>, vector<1x2x32xf32>,
    %c0_80 = arith.constant 0 : index
    %c0_81 = arith.constant 0 : index
    %279 = vector.load %arg9[%c0_80, %c0_81] : memref<128x32xf32, #tpu.memory_space<vmem>>, vector<128x32xf32>
    %cst_82 = arith.constant dense<0.000000e+00> : vector<32x128xf32>
    %280 = tpu.matmul %247, %279, %cst_82 {dimension_numbers = #tpu.dot_dimension_numbers<[1], [1], [0], [0], [0, 0, 1, 0], [], []>} : vector<32x32xf32>, vector<128x32xf32>, vector<32x128xf32> -> vector<32x128xf32>
    %281 = vector.extract_strided_slice %280 {offsets = [0, 0], sizes = [16, 128], strides = [1, 1]} : vector<32x128xf32> to vector<16x128xf32>
    %c0_83 = arith.constant 0 : index
    %c0_84 = arith.constant 0 : index
    %282 = vector.load %arg11[%c0_83, %c0_84] : memref<16x256xf32, #tpu.memory_space<vmem>>, vector<16x128xf32>
    tpu.vector_store %arg11[%c0_83, %c0_84], %281 {strides = array<i32>} : memref<16x256xf32, #tpu.memory_space<vmem>>, vector<16x128xf32>,
    %283 = vector.extract_strided_slice %280 {offsets = [16, 0], sizes = [16, 128], strides = [1, 1]} : vector<32x128xf32> to vector<16x128xf32>
    %c0_85 = arith.constant 0 : index
    %c128 = arith.constant 128 : index
    %284 = vector.load %arg11[%c0_85, %c128] : memref<16x256xf32, #tpu.memory_space<vmem>>, vector<16x128xf32>
    tpu.vector_store %arg11[%c0_85, %c128], %283 {strides = array<i32>} : memref<16x256xf32, #tpu.memory_space<vmem>>, vector<16x128xf32>,
    return
  }
  func.func @transform_0(%arg0: i32, %arg1: memref<2xi32, #tpu.memory_space<smem>>) -> (i32, i32, i32) {
    %c0_i32 = arith.constant 0 : i32
    %c0_i32_0 = arith.constant 0 : i32
    %c0_i32_1 = arith.constant 0 : i32
    return %arg0, %c0_i32, %c0_i32_0 : i32, i32, i32
  }
  func.func @transform_1(%arg0: i32, %arg1: memref<2xi32, #tpu.memory_space<smem>>) -> (i32, i32) {
    %c0_i32 = arith.constant 0 : i32
    %c0_i32_0 = arith.constant 0 : i32
    %c0_i32_1 = arith.constant 0 : i32
    return %c0_i32, %c0_i32_0 : i32, i32
  }
  func.func @transform_2(%arg0: i32, %arg1: memref<2xi32, #tpu.memory_space<smem>>) -> (i32, i32, i32) {
    %c0_i32 = arith.constant 0 : i32
    %c0_i32_0 = arith.constant 0 : i32
    %c0_i32_1 = arith.constant 0 : i32
    %c0_i32_2 = arith.constant 0 : i32
    return %c0_i32, %c0_i32_0, %c0_i32_1 : i32, i32, i32
  }
  func.func @transform_3(%arg0: i32, %arg1: memref<2xi32, #tpu.memory_space<smem>>) -> (i32, i32, i32) {
    %c0_i32 = arith.constant 0 : i32
    %c0_i32_0 = arith.constant 0 : i32
    %c0_i32_1 = arith.constant 0 : i32
    %c0_i32_2 = arith.constant 0 : i32
    return %c0_i32, %c0_i32_0, %c0_i32_1 : i32, i32, i32
  }
  func.func @transform_4(%arg0: i32, %arg1: memref<2xi32, #tpu.memory_space<smem>>) -> (i32, i32, i32) {
    %c0_i32 = arith.constant 0 : i32
    %c0_i32_0 = arith.constant 0 : i32
    %c0_i32_1 = arith.constant 0 : i32
    %c0_i32_2 = arith.constant 0 : i32
    return %c0_i32, %c0_i32_0, %c0_i32_1 : i32, i32, i32
  }
  func.func @transform_5(%arg0: i32, %arg1: memref<2xi32, #tpu.memory_space<smem>>) -> (i32, i32, i32) {
    %c0_i32 = arith.constant 0 : i32
    %c0_i32_0 = arith.constant 0 : i32
    %c0_i32_1 = arith.constant 0 : i32
    %c0_i32_2 = arith.constant 0 : i32
    return %c0_i32, %c0_i32_0, %c0_i32_1 : i32, i32, i32
  }
  func.func @transform_6(%arg0: i32, %arg1: memref<2xi32, #tpu.memory_space<smem>>) -> (i32, i32, i32) {
    %c0_i32 = arith.constant 0 : i32
    %c0_i32_0 = arith.constant 0 : i32
    %c0_i32_1 = arith.constant 0 : i32
    %c0_i32_2 = arith.constant 0 : i32
    return %c0_i32, %c0_i32_0, %c0_i32_1 : i32, i32, i32
  }
  func.func @transform_7(%arg0: i32, %arg1: memref<2xi32, #tpu.memory_space<smem>>) -> (i32, i32) {
    %c0_i32 = arith.constant 0 : i32
    %c0_i32_0 = arith.constant 0 : i32
    %c0_i32_1 = arith.constant 0 : i32
    return %c0_i32, %c0_i32_0 : i32, i32
  }
  func.func @transform_8(%arg0: i32, %arg1: memref<2xi32, #tpu.memory_space<smem>>) -> (i32, i32, i32) {
    %c0_i32 = arith.constant 0 : i32
    %c0_i32_0 = arith.constant 0 : i32
    %c0_i32_1 = arith.constant 0 : i32
    return %arg0, %c0_i32, %c0_i32_0 : i32, i32, i32
  }
  func.func @transform_9(%arg0: i32, %arg1: memref<2xi32, #tpu.memory_space<smem>>) -> (i32, i32) {
    %c0_i32 = arith.constant 0 : i32
    %c0_i32_0 = arith.constant 0 : i32
    return %c0_i32, %arg0 : i32, i32
  }
}

</mosaic_0001>

<llo_original>
// kernel: _lambda_.1
$region0: #{_lambda_.1}
  #allocation0 [shape = 'u32[]', space=smem, size = 0x4, offset = 0x4, fixed_abs, tag = 'smem constant byte address 0x4 - core index']
  #allocation1 [shape = 'u32[144,128]{1,0:T(1,128)}', space=vmem, size = 0x12000, scoped, tag = 'internal scratch']
  #allocation2 [shape = 's32[1]{0}', space=sflag, size = 0x4, scoped, tag = 'scoped memory for _lambda_.1']
  #allocation3 [shape = 'u8[512]{0}', space=smem, size = 0x200, scoped, tag = 'prefetched SMEM operand 0']
  %s0 = inlined_call_operand.vmem [shape: s32[2], index: 0, kind: input, shape index: {}]
  %s1 = inlined_call_operand.vmem [shape: f32[2,16,32], index: 1, kind: input, shape index: {}]
  %s2 = inlined_call_operand.vmem [shape: f32[16,32], index: 2, kind: input, shape index: {}]
  %s3 = inlined_call_operand.hbm [shape: f32[2,32,96], index: 3, kind: input, shape index: {}]
  %s4 = inlined_call_operand.hbm [shape: f32[2,32,32], index: 4, kind: input, shape index: {}]
  %s5 = inlined_call_operand.hbm [shape: f32[2,32,64], index: 5, kind: input, shape index: {}]
  %s6 = inlined_call_operand.vmem [shape: f32[2,64,32], index: 6, kind: input, shape index: {}]
  %s7 = inlined_call_operand.vmem [shape: f32[2,8,128], index: 7, kind: input, shape index: {}]
  %s8 = inlined_call_operand.vmem [shape: f32[128,32], index: 8, kind: input, shape index: {}]
  %s9 = inlined_call_operand.hbm [shape: f32[1,2,32], index: 9, kind: output, shape index: {0}]
  %s10 = inlined_call_operand.vmem [shape: f32[16,256], index: 10, kind: output, shape index: {1}]
  %11 = xla_tuple %s9, %s10
  %s12 = sld [smem:[#allocation0]]
  $region62: #{_lambda_.1} parent=0
    _
  %s14 = ssub.s32 1, %s12
  %s15 = scalar_select 0, %s14, %s12
  %s16 = sshll.u32 %s0, 4
  %s17 = int_to_ptr.vmem [resolvable:$true] %s16
  %19 = dma.vmem_to_smem %s17, 16, [#allocation3], [#allocation2]
  %20 = dma.done [#allocation2], 16
  %21 = sfence
  $region1: #{_lambda_.1} parent=0
    #allocation4 [shape = 'u8[32768]{0}', space=vmem, size = 0x8000, scoped, tag = 'input window, operand 3, single buffered']
    #allocation5 [shape = 's32[1]{0}', space=sflag, size = 0x4, scoped, tag = 'scoped memory for _lambda_.1']
    #allocation6 [shape = 's32[1]{0}', space=sflag, size = 0x4, scoped, tag = 'scoped memory for _lambda_.1']
    #allocation7 [shape = 'u8[32768]{0}', space=vmem, size = 0x8000, scoped, tag = 'input window, operand 4, single buffered']
    #allocation8 [shape = 's32[1]{0}', space=sflag, size = 0x4, scoped, tag = 'scoped memory for _lambda_.1']
    #allocation9 [shape = 'u8[32768]{0}', space=vmem, size = 0x8000, scoped, tag = 'input window, operand 5, single buffered']
    #allocation10 [shape = 'u8[1024]{0}', space=vmem, size = 0x400, scoped, tag = 'output window, operand 0, single buffered']
    %22 = vsyncpa [#allocation5], 0
    %23 = vsyncpa [#allocation8], 0
    %24 = vsyncpa [#allocation6], 0
    // Predicated region
    $region2: #{_lambda_.1} parent=1 // pred_check
      _
    $region3: #{_lambda_.1} parent=1 // pred_check_branch
      %26 = sbr.rel (0) target = $region5
    $region4: #{_lambda_.1} parent=1 // pred_region
      _
    $region5: #{_lambda_.1} parent=1 // pred_fallthru
      _
    // Predicated region
    $region6: #{_lambda_.1} parent=1 // pred_check
      _
    $region7: #{_lambda_.1} parent=1 // pred_check_branch
      %28 = sbr.rel (0) target = $region9
    $region8: #{_lambda_.1} parent=1 // pred_region
      _
    $region9: #{_lambda_.1} parent=1 // pred_fallthru
      _
    // Predicated region
    $region10: #{_lambda_.1} parent=1 // pred_check
      _
    $region11: #{_lambda_.1} parent=1 // pred_check_branch
      %30 = sbr.rel (0) target = $region13
    $region12: #{_lambda_.1} parent=1 // pred_region
      %s32 = ssub.s32 1024, 1024
      %33 = vsyncadd [#allocation5], %s32
      %s34 = sshll.u32 [#allocation4], 4
      %s35 = int_to_ptr.vmem [resolvable:$true] %s34
      %40 = dma.hbm_to_vmem [thread:$0]  %s3, 1024, %s35, [#allocation5], 128, 128, 8
    $region13: #{_lambda_.1} parent=1 // pred_fallthru
      _
    // Predicated region
    $region14: #{_lambda_.1} parent=1 // pred_check
      _
    $region15: #{_lambda_.1} parent=1 // pred_check_branch
      %42 = sbr.rel (0) target = $region17
    $region16: #{_lambda_.1} parent=1 // pred_region
      %s44 = ssub.s32 1024, 1024
      %45 = vsyncadd [#allocation8], %s44
      %s46 = sshll.u32 [#allocation7], 4
      %s47 = int_to_ptr.vmem [resolvable:$true] %s46
      %52 = dma.hbm_to_vmem [thread:$0]  %s4, 1024, %s47, [#allocation8], 128, 128, 8
    $region17: #{_lambda_.1} parent=1 // pred_fallthru
      _
    // Predicated region
    $region18: #{_lambda_.1} parent=1 // pred_check
      _
    $region19: #{_lambda_.1} parent=1 // pred_check_branch
      %54 = sbr.rel (0) target = $region21
    $region20: #{_lambda_.1} parent=1 // pred_region
      %s56 = ssub.s32 1024, 1024
      %57 = vsyncadd [#allocation8], %s56
      %s58 = sshll.u32 [#allocation9], 4
      %s59 = int_to_ptr.vmem [resolvable:$true] %s58
      %64 = dma.hbm_to_vmem [thread:$0]  %s5, 1024, %s59, [#allocation8], 128, 128, 8
    $region21: #{_lambda_.1} parent=1 // pred_fallthru
      _
    // Predicated region
    $region22: #{_lambda_.1} parent=1 // pred_check
      _
    $region23: #{_lambda_.1} parent=1 // pred_check_branch
      %66 = sbr.rel (0) target = $region25
    $region24: #{_lambda_.1} parent=1 // pred_region
      _
    $region25: #{_lambda_.1} parent=1 // pred_fallthru
      _
    // Predicated region
    $region26: #{_lambda_.1} parent=1 // pred_check
      _
    $region27: #{_lambda_.1} parent=1 // pred_check_branch
      %68 = sbr.rel (0) target = $region29
    $region28: #{_lambda_.1} parent=1 // pred_region
      _
    $region29: #{_lambda_.1} parent=1 // pred_fallthru
      _
    // Predicated region
    $region30: #{_lambda_.1} parent=1 // pred_check
      _
    $region31: #{_lambda_.1} parent=1 // pred_check_branch
      %70 = sbr.rel (0) target = $region33
    $region32: #{_lambda_.1} parent=1 // pred_region
      _
    $region33: #{_lambda_.1} parent=1 // pred_fallthru
      _
    // Predicated region
    $region34: #{_lambda_.1} parent=1 // pred_check
      _
    $region35: #{_lambda_.1} parent=1 // pred_check_branch
      %72 = sbr.rel (0) target = $region37
    $region36: #{_lambda_.1} parent=1 // pred_region
      %73 = dma.done [#allocation5], 1024
    $region37: #{_lambda_.1} parent=1 // pred_fallthru
      _
    // Predicated region
    $region38: #{_lambda_.1} parent=1 // pred_check
      _
    $region39: #{_lambda_.1} parent=1 // pred_check_branch
      %75 = sbr.rel (0) target = $region41
    $region40: #{_lambda_.1} parent=1 // pred_region
      %76 = dma.done [#allocation8], 1024
    $region41: #{_lambda_.1} parent=1 // pred_fallthru
      _
    // Predicated region
    $region42: #{_lambda_.1} parent=1 // pred_check
      _
    $region43: #{_lambda_.1} parent=1 // pred_check_branch
      %78 = sbr.rel (0) target = $region45
    $region44: #{_lambda_.1} parent=1 // pred_region
      %79 = dma.done [#allocation8], 1024
    $region45: #{_lambda_.1} parent=1 // pred_fallthru
      _
    %v80 = vld [vmem:[%s1] sm:$0xff]
    %v81 = vld [vmem:[%s1 + $0x8] sm:$0xff]
    %v82 = vld [vmem:[%s1 + $0x10] sm:$0xff]
    %v83 = vld [vmem:[%s1 + $0x18] sm:$0xff]
    %v84 = vld [vmem:[%s2] sm:$0xff]
    %v85 = vld [vmem:[%s2 + $0x8] sm:$0xff]
    %v86 = vadd.f32 %v80, %v84
    %v87 = vadd.f32 %v81, %v85
    %v88 = vadd.f32 %v82, %v84
    %v89 = vadd.f32 %v83, %v85
    %v90 = vlaneseq
    %v91 = vshrl.u32 %v90, 7
    %v92 = vadd.s32 %v91, 8
    %v93 = vlaneseq
    %v94 = vand.u32 %v93, 127
    %vm95 = vcmp.ge.s32.totalorder %v91, %v94
    %vm96 = vcmp.ge.s32.totalorder %v92, %v94
    %v97 = vld [vmem:[%s7] sm:$0xff]
    %v98 = vld [vmem:[#allocation4] sm:$0xff]
    %v99 = vld [vmem:[#allocation4 + $0x8] sm:$0xff]
    %v100 = vld [vmem:[#allocation4 + $0x10] sm:$0xff]
    %v101 = vld [vmem:[#allocation4 + $0x18] sm:$0xff]
    %v102 = vlaneseq
    %v103 = vshrl.u32 %v102, 7
    %v104 = vsub.s32 0, %v103
    %v105 = vrot.slane %v97, %v104
    %vm106 = vcmask 261120
    %v108 = vsel %vm106, %v86, 0
    %v111 = vsel %vm106, %v87, 0
    %v114 = vsel %vm106, %v88, 0
    %v117 = vsel %vm106, %v89, 0
    %119 = vmatprep.subr.mxu0 0.0
    %120 = vmatpush1.msra.mxu0 0.0
    %121 = vmatprep.subr.mxu0 0.0
    %122 = vmatpush1.msra.mxu0 0.0
    %123 = vmatprep.subr.mxu0 0.0
    %124 = vmatpush1.msra.mxu0 0.0
    %125 = vmatprep.subr.mxu0 0.0
    %126 = vmatpush1.msra.mxu0 0.0
    %127 = vmatprep.subr.mxu0 0.0
    %128 = vmatpush1.msra.mxu0 0.0
    %129 = vmatprep.subr.mxu0 0.0
    %130 = vmatpush1.msra.mxu0 0.0
    %131 = vmatprep.subr.mxu0 0.0
    %132 = vmatpush1.msra.mxu0 0.0
    %133 = vmatprep.subr.mxu0 0.0
    %134 = vmatpush1.msra.mxu0 0.0
    %135 = vmatprep.subr.mxu0 0.0
    %136 = vmatpush1.msra.mxu0 0.0
    %137 = vmatprep.subr.mxu0 0.0
    %138 = vmatpush1.msra.mxu0 0.0
    %139 = vmatprep.subr.mxu0 0.0
    %140 = vmatpush1.msra.mxu0 0.0
    %141 = vmatprep.subr.mxu0 0.0
    %142 = vmatpush1.msra.mxu0 0.0
    %143 = vmatprep.subr.mxu0 0.0
    %144 = vmatpush1.msra.mxu0 %v101
    %145 = vmatprep.subr.mxu0 0.0
    %146 = vmatpush1.msra.mxu0 %v100
    %147 = vmatprep.subr.mxu0 0.0
    %148 = vmatpush1.msra.mxu0 %v99
    %149 = vmatprep.subr.mxu0 0.0
    %150 = vmatpush1.msra.mxu0 %v98
    %151 = vmatprep.subr.mxu0 0.0
    %152 = vmatpush2.msra.mxu0 0.0
    %153 = vmatprep.subr.mxu0 0.0
    %154 = vmatpush2.msra.mxu0 0.0
    %155 = vmatprep.subr.mxu0 0.0
    %156 = vmatpush2.msra.mxu0 0.0
    %157 = vmatprep.subr.mxu0 0.0
    %158 = vmatpush2.msra.mxu0 0.0
    %159 = vmatprep.subr.mxu0 0.0
    %160 = vmatpush2.msra.mxu0 0.0
    %161 = vmatprep.subr.mxu0 0.0
    %162 = vmatpush2.msra.mxu0 0.0
    %163 = vmatprep.subr.mxu0 0.0
    %164 = vmatpush2.msra.mxu0 0.0
    %165 = vmatprep.subr.mxu0 0.0
    %166 = vmatpush2.msra.mxu0 0.0
    %167 = vmatprep.subr.mxu0 0.0
    %168 = vmatpush2.msra.mxu0 0.0
    %169 = vmatprep.subr.mxu0 0.0
    %170 = vmatpush2.msra.mxu0 0.0
    %171 = vmatprep.subr.mxu0 0.0
    %172 = vmatpush2.msra.mxu0 0.0
    %173 = vmatprep.subr.mxu0 0.0
    %174 = vmatpush2.msra.mxu0 0.0
    %175 = vmatprep.subr.mxu0 0.0
    %176 = vmatpush2.msra.mxu0 0.0
    %177 = vmatprep.subr.mxu0 0.0
    %178 = vmatpush2.msra.mxu0 0.0
    %179 = vmatprep.subr.mxu0 0.0
    %180 = vmatpush2.msra.mxu0 0.0
    %181 = vmatprep.subr.mxu0 0.0
    %182 = vmatpush2.msra.mxu0 0.0
    %183 = vmatprep.mubr.f32.mxu0 0.0
    %184 = vmatmul.mubr.f32.gmra.mxu0 %v108
    %v185 = vpop.f32.mrf.mxu0
    %v186 = vadd.f32 %v105, %v185
    %v187 = vpop.f32.mrf.mxu0
    %188 = vmatprep.mubr.f32.mxu0 0.0
    %189 = vmatmul.mubr.f32.gmra.mxu0 %v111
    %v190 = vpop.f32.mrf.mxu0
    %v191 = vadd.f32 %v105, %v190
    %v192 = vpop.f32.mrf.mxu0
    %193 = vmatprep.mubr.f32.mxu0 0.0
    %194 = vmatmul.mubr.f32.gmra.mxu0 %v114
    %v195 = vpop.f32.mrf.mxu0
    %v196 = vadd.f32 %v105, %v195
    %v197 = vpop.f32.mrf.mxu0
    %198 = vmatprep.mubr.f32.mxu0 0.0
    %199 = vmatmul.mubr.f32.gmra.mxu0 %v117
    %v200 = vpop.f32.mrf.mxu0
    %v201 = vadd.f32 %v105, %v200
    %v202 = vpop.f32.mrf.mxu0
    %203 = vdwg.mxu0
    %208 = vrot.lane.b32.xlu0 %v186, 112
    %v209 = vpop.permute.xlu0 %208
    %210 = vrot.lane.b32.xlu0 %v191, 112
    %v211 = vpop.permute.xlu0 %210
    %212 = vrot.lane.b32.xlu0 %v196, 112
    %v213 = vpop.permute.xlu0 %212
    %214 = vrot.lane.b32.xlu0 %v201, 112
    %v215 = vpop.permute.xlu0 %214
    %v220 = vmul.f32 %v186, 0.25
    %v221 = vmul.f32 %v191, 0.25
    %v222 = vmul.f32 %v196, 0.25
    %v223 = vmul.f32 %v201, 0.25
    %v224 = vmul.f32 %v209, 0.25
    %v225 = vmul.f32 %v211, 0.25
    %v226 = vmul.f32 %v213, 0.25
    %v227 = vmul.f32 %v215, 0.25
    %228 = vrot.lane.b32.xlu0 %v186, 96
    %v229 = vpop.permute.xlu0 %228
    %230 = vrot.lane.b32.xlu0 %v191, 96
    %v231 = vpop.permute.xlu0 %230
    %vm232 = vcmask 130048
    %v234 = vsel %vm232, %v220, 0
    %v237 = vsel %vm232, %v221, 0
    %v239 = vsel %vm232, %v229, 0
    %v241 = vsel %vm232, %v231, 0
    %243 = vmatprep.subr.mxu0 0.0
    %244 = vmatpush1.xpose.msra.mxu0 0.0
    %245 = vmatprep.subr.mxu0 0.0
    %246 = vmatpush1.xpose.msra.mxu0 0.0
    %247 = vmatprep.subr.mxu0 0.0
    %248 = vmatpush1.xpose.msra.mxu0 0.0
    %249 = vmatprep.subr.mxu0 0.0
    %250 = vmatpush1.xpose.msra.mxu0 0.0
    %251 = vmatprep.subr.mxu0 0.0
    %252 = vmatpush1.xpose.msra.mxu0 0.0
    %253 = vmatprep.subr.mxu0 0.0
    %254 = vmatpush1.xpose.msra.mxu0 0.0
    %255 = vmatprep.subr.mxu0 0.0
    %256 = vmatpush1.xpose.msra.mxu0 0.0
    %257 = vmatprep.subr.mxu0 0.0
    %258 = vmatpush1.xpose.msra.mxu0 0.0
    %259 = vmatprep.subr.mxu0 0.0
    %260 = vmatpush1.xpose.msra.mxu0 0.0
    %261 = vmatprep.subr.mxu0 0.0
    %262 = vmatpush1.xpose.msra.mxu0 0.0
    %263 = vmatprep.subr.mxu0 0.0
    %264 = vmatpush1.xpose.msra.mxu0 0.0
    %265 = vmatprep.subr.mxu0 0.0
    %266 = vmatpush1.xpose.msra.mxu0 0.0
    %267 = vmatprep.subr.mxu0 0.0
    %268 = vmatpush1.xpose.msra.mxu0 0.0
    %269 = vmatprep.subr.mxu0 0.0
    %270 = vmatpush1.xpose.msra.mxu0 0.0
    %271 = vmatprep.subr.mxu0 0.0
    %272 = vmatpush1.xpose.msra.mxu0 %v241
    %273 = vmatprep.subr.mxu0 0.0
    %274 = vmatpush1.xpose.msra.mxu0 %v239
    %275 = vmatprep.subr.mxu0 0.0
    %276 = vmatpush2.xpose.msra.mxu0 0.0
    %277 = vmatprep.subr.mxu0 0.0
    %278 = vmatpush2.xpose.msra.mxu0 0.0
    %279 = vmatprep.subr.mxu0 0.0
    %280 = vmatpush2.xpose.msra.mxu0 0.0
    %281 = vmatprep.subr.mxu0 0.0
    %282 = vmatpush2.xpose.msra.mxu0 0.0
    %283 = vmatprep.subr.mxu0 0.0
    %284 = vmatpush2.xpose.msra.mxu0 0.0
    %285 = vmatprep.subr.mxu0 0.0
    %286 = vmatpush2.xpose.msra.mxu0 0.0
    %287 = vmatprep.subr.mxu0 0.0
    %288 = vmatpush2.xpose.msra.mxu0 0.0
    %289 = vmatprep.subr.mxu0 0.0
    %290 = vmatpush2.xpose.msra.mxu0 0.0
    %291 = vmatprep.subr.mxu0 0.0
    %292 = vmatpush2.xpose.msra.mxu0 0.0
    %293 = vmatprep.subr.mxu0 0.0
    %294 = vmatpush2.xpose.msra.mxu0 0.0
    %295 = vmatprep.subr.mxu0 0.0
    %296 = vmatpush2.xpose.msra.mxu0 0.0
    %297 = vmatprep.subr.mxu0 0.0
    %298 = vmatpush2.xpose.msra.mxu0 0.0
    %299 = vmatprep.subr.mxu0 0.0
    %300 = vmatpush2.xpose.msra.mxu0 0.0
    %301 = vmatprep.subr.mxu0 0.0
    %302 = vmatpush2.xpose.msra.mxu0 0.0
    %303 = vmatprep.subr.mxu0 0.0
    %304 = vmatpush2.xpose.msra.mxu0 0.0
    %305 = vmatprep.subr.mxu0 0.0
    %306 = vmatpush2.xpose.msra.mxu0 0.0
    %307 = vmatprep.mubr.f32.mxu0 0.0
    %308 = vmatmul.mubr.f32.gmra.mxu0 %v234
    %v309 = vpop.f32.mrf.mxu0
    %v310 = vadd.f32 0.0, %v309
    %v311 = vpop.f32.mrf.mxu0
    %312 = vmatprep.mubr.f32.mxu0 0.0
    %313 = vmatmul.mubr.f32.gmra.mxu0 %v237
    %v314 = vpop.f32.mrf.mxu0
    %v315 = vadd.f32 0.0, %v314
    %v316 = vpop.f32.mrf.mxu0
    %317 = vdwg.mxu0
    %318 = vrot.lane.b32.xlu0 %v196, 96
    %v319 = vpop.permute.xlu0 %318
    %320 = vrot.lane.b32.xlu0 %v201, 96
    %v321 = vpop.permute.xlu0 %320
    %v323 = vsel %vm232, %v222, 0
    %v326 = vsel %vm232, %v223, 0
    %v328 = vsel %vm232, %v319, 0
    %v330 = vsel %vm232, %v321, 0
    %332 = vmatprep.subr.mxu0 0.0
    %333 = vmatpush1.xpose.msra.mxu0 0.0
    %334 = vmatprep.subr.mxu0 0.0
    %335 = vmatpush1.xpose.msra.mxu0 0.0
    %336 = vmatprep.subr.mxu0 0.0
    %337 = vmatpush1.xpose.msra.mxu0 0.0
    %338 = vmatprep.subr.mxu0 0.0
    %339 = vmatpush1.xpose.msra.mxu0 0.0
    %340 = vmatprep.subr.mxu0 0.0
    %341 = vmatpush1.xpose.msra.mxu0 0.0
    %342 = vmatprep.subr.mxu0 0.0
    %343 = vmatpush1.xpose.msra.mxu0 0.0
    %344 = vmatprep.subr.mxu0 0.0
    %345 = vmatpush1.xpose.msra.mxu0 0.0
    %346 = vmatprep.subr.mxu0 0.0
    %347 = vmatpush1.xpose.msra.mxu0 0.0
    %348 = vmatprep.subr.mxu0 0.0
    %349 = vmatpush1.xpose.msra.mxu0 0.0
    %350 = vmatprep.subr.mxu0 0.0
    %351 = vmatpush1.xpose.msra.mxu0 0.0
    %352 = vmatprep.subr.mxu0 0.0
    %353 = vmatpush1.xpose.msra.mxu0 0.0
    %354 = vmatprep.subr.mxu0 0.0
    %355 = vmatpush1.xpose.msra.mxu0 0.0
    %356 = vmatprep.subr.mxu0 0.0
    %357 = vmatpush1.xpose.msra.mxu0 0.0
    %358 = vmatprep.subr.mxu0 0.0
    %359 = vmatpush1.xpose.msra.mxu0 0.0
    %360 = vmatprep.subr.mxu0 0.0
    %361 = vmatpush1.xpose.msra.mxu0 %v330
    %362 = vmatprep.subr.mxu0 0.0
    %363 = vmatpush1.xpose.msra.mxu0 %v328
    %364 = vmatprep.subr.mxu0 0.0
    %365 = vmatpush2.xpose.msra.mxu0 0.0
    %366 = vmatprep.subr.mxu0 0.0
    %367 = vmatpush2.xpose.msra.mxu0 0.0
    %368 = vmatprep.subr.mxu0 0.0
    %369 = vmatpush2.xpose.msra.mxu0 0.0
    %370 = vmatprep.subr.mxu0 0.0
    %371 = vmatpush2.xpose.msra.mxu0 0.0
    %372 = vmatprep.subr.mxu0 0.0
    %373 = vmatpush2.xpose.msra.mxu0 0.0
    %374 = vmatprep.subr.mxu0 0.0
    %375 = vmatpush2.xpose.msra.mxu0 0.0
    %376 = vmatprep.subr.mxu0 0.0
    %377 = vmatpush2.xpose.msra.mxu0 0.0
    %378 = vmatprep.subr.mxu0 0.0
    %379 = vmatpush2.xpose.msra.mxu0 0.0
    %380 = vmatprep.subr.mxu0 0.0
    %381 = vmatpush2.xpose.msra.mxu0 0.0
    %382 = vmatprep.subr.mxu0 0.0
    %383 = vmatpush2.xpose.msra.mxu0 0.0
    %384 = vmatprep.subr.mxu0 0.0
    %385 = vmatpush2.xpose.msra.mxu0 0.0
    %386 = vmatprep.subr.mxu0 0.0
    %387 = vmatpush2.xpose.msra.mxu0 0.0
    %388 = vmatprep.subr.mxu0 0.0
    %389 = vmatpush2.xpose.msra.mxu0 0.0
    %390 = vmatprep.subr.mxu0 0.0
    %391 = vmatpush2.xpose.msra.mxu0 0.0
    %392 = vmatprep.subr.mxu0 0.0
    %393 = vmatpush2.xpose.msra.mxu0 0.0
    %394 = vmatprep.subr.mxu0 0.0
    %395 = vmatpush2.xpose.msra.mxu0 0.0
    %396 = vmatprep.mubr.f32.mxu0 0.0
    %397 = vmatmul.mubr.f32.gmra.mxu0 %v323
    %v398 = vpop.f32.mrf.mxu0
    %v399 = vadd.f32 0.0, %v398
    %v400 = vpop.f32.mrf.mxu0
    %401 = vmatprep.mubr.f32.mxu0 0.0
    %402 = vmatmul.mubr.f32.gmra.mxu0 %v326
    %v403 = vpop.f32.mrf.mxu0
    %v404 = vadd.f32 0.0, %v403
    %v405 = vpop.f32.mrf.mxu0
    %406 = vdwg.mxu0
    %407 = vrot.lane.b32.xlu0 %v209, 96
    %v408 = vpop.permute.xlu0 %407
    %409 = vrot.lane.b32.xlu0 %v211, 96
    %v410 = vpop.permute.xlu0 %409
    %v412 = vsel %vm232, %v224, 0
    %v415 = vsel %vm232, %v225, 0
    %v417 = vsel %vm232, %v408, 0
    %v419 = vsel %vm232, %v410, 0
    %421 = vmatprep.subr.mxu0 0.0
    %422 = vmatpush1.xpose.msra.mxu0 0.0
    %423 = vmatprep.subr.mxu0 0.0
    %424 = vmatpush1.xpose.msra.mxu0 0.0
    %425 = vmatprep.subr.mxu0 0.0
    %426 = vmatpush1.xpose.msra.mxu0 0.0
    %427 = vmatprep.subr.mxu0 0.0
    %428 = vmatpush1.xpose.msra.mxu0 0.0
    %429 = vmatprep.subr.mxu0 0.0
    %430 = vmatpush1.xpose.msra.mxu0 0.0
    %431 = vmatprep.subr.mxu0 0.0
    %432 = vmatpush1.xpose.msra.mxu0 0.0
    %433 = vmatprep.subr.mxu0 0.0
    %434 = vmatpush1.xpose.msra.mxu0 0.0
    %435 = vmatprep.subr.mxu0 0.0
    %436 = vmatpush1.xpose.msra.mxu0 0.0
    %437 = vmatprep.subr.mxu0 0.0
    %438 = vmatpush1.xpose.msra.mxu0 0.0
    %439 = vmatprep.subr.mxu0 0.0
    %440 = vmatpush1.xpose.msra.mxu0 0.0
    %441 = vmatprep.subr.mxu0 0.0
    %442 = vmatpush1.xpose.msra.mxu0 0.0
    %443 = vmatprep.subr.mxu0 0.0
    %444 = vmatpush1.xpose.msra.mxu0 0.0
    %445 = vmatprep.subr.mxu0 0.0
    %446 = vmatpush1.xpose.msra.mxu0 0.0
    %447 = vmatprep.subr.mxu0 0.0
    %448 = vmatpush1.xpose.msra.mxu0 0.0
    %449 = vmatprep.subr.mxu0 0.0
    %450 = vmatpush1.xpose.msra.mxu0 %v419
    %451 = vmatprep.subr.mxu0 0.0
    %452 = vmatpush1.xpose.msra.mxu0 %v417
    %453 = vmatprep.subr.mxu0 0.0
    %454 = vmatpush2.xpose.msra.mxu0 0.0
    %455 = vmatprep.subr.mxu0 0.0
    %456 = vmatpush2.xpose.msra.mxu0 0.0
    %457 = vmatprep.subr.mxu0 0.0
    %458 = vmatpush2.xpose.msra.mxu0 0.0
    %459 = vmatprep.subr.mxu0 0.0
    %460 = vmatpush2.xpose.msra.mxu0 0.0
    %461 = vmatprep.subr.mxu0 0.0
    %462 = vmatpush2.xpose.msra.mxu0 0.0
    %463 = vmatprep.subr.mxu0 0.0
    %464 = vmatpush2.xpose.msra.mxu0 0.0
    %465 = vmatprep.subr.mxu0 0.0
    %466 = vmatpush2.xpose.msra.mxu0 0.0
    %467 = vmatprep.subr.mxu0 0.0
    %468 = vmatpush2.xpose.msra.mxu0 0.0
    %469 = vmatprep.subr.mxu0 0.0
    %470 = vmatpush2.xpose.msra.mxu0 0.0
    %471 = vmatprep.subr.mxu0 0.0
    %472 = vmatpush2.xpose.msra.mxu0 0.0
    %473 = vmatprep.subr.mxu0 0.0
    %474 = vmatpush2.xpose.msra.mxu0 0.0
    %475 = vmatprep.subr.mxu0 0.0
    %476 = vmatpush2.xpose.msra.mxu0 0.0
    %477 = vmatprep.subr.mxu0 0.0
    %478 = vmatpush2.xpose.msra.mxu0 0.0
    %479 = vmatprep.subr.mxu0 0.0
    %480 = vmatpush2.xpose.msra.mxu0 0.0
    %481 = vmatprep.subr.mxu0 0.0
    %482 = vmatpush2.xpose.msra.mxu0 0.0
    %483 = vmatprep.subr.mxu0 0.0
    %484 = vmatpush2.xpose.msra.mxu0 0.0
    %485 = vmatprep.mubr.f32.mxu0 0.0
    %486 = vmatmul.mubr.f32.gmra.mxu0 %v412
    %v487 = vpop.f32.mrf.mxu0
    %v488 = vadd.f32 0.0, %v487
    %v489 = vpop.f32.mrf.mxu0
    %490 = vmatprep.mubr.f32.mxu0 0.0
    %491 = vmatmul.mubr.f32.gmra.mxu0 %v415
    %v492 = vpop.f32.mrf.mxu0
    %v493 = vadd.f32 0.0, %v492
    %v494 = vpop.f32.mrf.mxu0
    %495 = vdwg.mxu0
    %496 = vrot.lane.b32.xlu0 %v213, 96
    %v497 = vpop.permute.xlu0 %496
    %498 = vrot.lane.b32.xlu0 %v215, 96
    %v499 = vpop.permute.xlu0 %498
    %v501 = vsel %vm232, %v226, 0
    %v504 = vsel %vm232, %v227, 0
    %v506 = vsel %vm232, %v497, 0
    %v508 = vsel %vm232, %v499, 0
    %510 = vmatprep.subr.mxu0 0.0
    %511 = vmatpush1.xpose.msra.mxu0 0.0
    %512 = vmatprep.subr.mxu0 0.0
    %513 = vmatpush1.xpose.msra.mxu0 0.0
    %514 = vmatprep.subr.mxu0 0.0
    %515 = vmatpush1.xpose.msra.mxu0 0.0
    %516 = vmatprep.subr.mxu0 0.0
    %517 = vmatpush1.xpose.msra.mxu0 0.0
    %518 = vmatprep.subr.mxu0 0.0
    %519 = vmatpush1.xpose.msra.mxu0 0.0
    %520 = vmatprep.subr.mxu0 0.0
    %521 = vmatpush1.xpose.msra.mxu0 0.0
    %522 = vmatprep.subr.mxu0 0.0
    %523 = vmatpush1.xpose.msra.mxu0 0.0
    %524 = vmatprep.subr.mxu0 0.0
    %525 = vmatpush1.xpose.msra.mxu0 0.0
    %526 = vmatprep.subr.mxu0 0.0
    %527 = vmatpush1.xpose.msra.mxu0 0.0
    %528 = vmatprep.subr.mxu0 0.0
    %529 = vmatpush1.xpose.msra.mxu0 0.0
    %530 = vmatprep.subr.mxu0 0.0
    %531 = vmatpush1.xpose.msra.mxu0 0.0
    %532 = vmatprep.subr.mxu0 0.0
    %533 = vmatpush1.xpose.msra.mxu0 0.0
    %534 = vmatprep.subr.mxu0 0.0
    %535 = vmatpush1.xpose.msra.mxu0 0.0
    %536 = vmatprep.subr.mxu0 0.0
    %537 = vmatpush1.xpose.msra.mxu0 0.0
    %538 = vmatprep.subr.mxu0 0.0
    %539 = vmatpush1.xpose.msra.mxu0 %v508
    %540 = vmatprep.subr.mxu0 0.0
    %541 = vmatpush1.xpose.msra.mxu0 %v506
    %542 = vmatprep.subr.mxu0 0.0
    %543 = vmatpush2.xpose.msra.mxu0 0.0
    %544 = vmatprep.subr.mxu0 0.0
    %545 = vmatpush2.xpose.msra.mxu0 0.0
    %546 = vmatprep.subr.mxu0 0.0
    %547 = vmatpush2.xpose.msra.mxu0 0.0
    %548 = vmatprep.subr.mxu0 0.0
    %549 = vmatpush2.xpose.msra.mxu0 0.0
    %550 = vmatprep.subr.mxu0 0.0
    %551 = vmatpush2.xpose.msra.mxu0 0.0
    %552 = vmatprep.subr.mxu0 0.0
    %553 = vmatpush2.xpose.msra.mxu0 0.0
    %554 = vmatprep.subr.mxu0 0.0
    %555 = vmatpush2.xpose.msra.mxu0 0.0
    %556 = vmatprep.subr.mxu0 0.0
    %557 = vmatpush2.xpose.msra.mxu0 0.0
    %558 = vmatprep.subr.mxu0 0.0
    %559 = vmatpush2.xpose.msra.mxu0 0.0
    %560 = vmatprep.subr.mxu0 0.0
    %561 = vmatpush2.xpose.msra.mxu0 0.0
    %562 = vmatprep.subr.mxu0 0.0
    %563 = vmatpush2.xpose.msra.mxu0 0.0
    %564 = vmatprep.subr.mxu0 0.0
    %565 = vmatpush2.xpose.msra.mxu0 0.0
    %566 = vmatprep.subr.mxu0 0.0
    %567 = vmatpush2.xpose.msra.mxu0 0.0
    %568 = vmatprep.subr.mxu0 0.0
    %569 = vmatpush2.xpose.msra.mxu0 0.0
    %570 = vmatprep.subr.mxu0 0.0
    %571 = vmatpush2.xpose.msra.mxu0 0.0
    %572 = vmatprep.subr.mxu0 0.0
    %573 = vmatpush2.xpose.msra.mxu0 0.0
    %574 = vmatprep.mubr.f32.mxu0 0.0
    %575 = vmatmul.mubr.f32.gmra.mxu0 %v501
    %v576 = vpop.f32.mrf.mxu0
    %v577 = vadd.f32 0.0, %v576
    %v578 = vpop.f32.mrf.mxu0
    %579 = vmatprep.mubr.f32.mxu0 0.0
    %580 = vmatmul.mubr.f32.gmra.mxu0 %v504
    %v581 = vpop.f32.mrf.mxu0
    %v582 = vadd.f32 0.0, %v581
    %v583 = vpop.f32.mrf.mxu0
    %584 = vdwg.mxu0
    %v585 = vsel %vm95, 1, 0
    %v586 = vsel %vm96, 1, 0
    %vm587 = vcmp.eq.s32.totalorder %v585, 1
    %vm588 = vcmp.eq.s32.totalorder %v586, 1
    %v589 = vsel %vm587, %v310, -1e+30
    %v590 = vsel %vm588, %v315, -1e+30
    %v591 = vsel %vm587, %v399, -1e+30
    %v592 = vsel %vm588, %v404, -1e+30
    %v593 = vsel %vm587, %v488, -1e+30
    %v594 = vsel %vm588, %v493, -1e+30
    %v595 = vsel %vm587, %v577, -1e+30
    %v596 = vsel %vm588, %v582, -1e+30
    %v597 = vsel %vm232, %v589, -inf
    %598 = vmax.xlane.f32.xlu0 %v597
    %v599 = vpop.xlane.xlu0 %598
    %v600 = vsel %vm232, %v590, -inf
    %601 = vmax.xlane.f32.xlu0 %v600
    %v602 = vpop.xlane.xlu0 %601
    %v603 = vsel %vm232, %v591, -inf
    %604 = vmax.xlane.f32.xlu0 %v603
    %v605 = vpop.xlane.xlu0 %604
    %v606 = vsel %vm232, %v592, -inf
    %607 = vmax.xlane.f32.xlu0 %v606
    %v608 = vpop.xlane.xlu0 %607
    %v609 = vsel %vm232, %v593, -inf
    %610 = vmax.xlane.f32.xlu0 %v609
    %v611 = vpop.xlane.xlu0 %610
    %v612 = vsel %vm232, %v594, -inf
    %613 = vmax.xlane.f32.xlu0 %v612
    %v614 = vpop.xlane.xlu0 %613
    %v615 = vsel %vm232, %v595, -inf
    %616 = vmax.xlane.f32.xlu0 %v615
    %v617 = vpop.xlane.xlu0 %616
    %v618 = vsel %vm232, %v596, -inf
    %619 = vmax.xlane.f32.xlu0 %v618
    %v620 = vpop.xlane.xlu0 %619
    %v621 = vsub.f32 %v589, %v599
    %v622 = vsub.f32 %v590, %v602
    %v623 = vsub.f32 %v591, %v605
    %v624 = vsub.f32 %v592, %v608
    %v625 = vsub.f32 %v593, %v611
    %v626 = vsub.f32 %v594, %v614
    %v627 = vsub.f32 %v595, %v617
    %v628 = vsub.f32 %v596, %v620
    %v629 = vmul.f32 %v621, 1.442695
    %v630 = vpow.pop %v629
    %v631 = vmul.f32 %v622, 1.442695
    %v632 = vpow.pop %v631
    %v633 = vmul.f32 %v623, 1.442695
    %v634 = vpow.pop %v633
    %v635 = vmul.f32 %v624, 1.442695
    %v636 = vpow.pop %v635
    %v637 = vmul.f32 %v625, 1.442695
    %v638 = vpow.pop %v637
    %v639 = vmul.f32 %v626, 1.442695
    %v640 = vpow.pop %v639
    %v641 = vmul.f32 %v627, 1.442695
    %v642 = vpow.pop %v641
    %v643 = vmul.f32 %v628, 1.442695
    %v644 = vpow.pop %v643
    %v645 = vsel %vm232, %v630, 0.0
    %646 = vadd.xlane.f32.xlu0 %v645
    %v647 = vpop.xlane.xlu0 %646
    %v648 = vsel %vm232, %v632, 0.0
    %649 = vadd.xlane.f32.xlu0 %v648
    %v650 = vpop.xlane.xlu0 %649
    %v651 = vsel %vm232, %v634, 0.0
    %652 = vadd.xlane.f32.xlu0 %v651
    %v653 = vpop.xlane.xlu0 %652
    %v654 = vsel %vm232, %v636, 0.0
    %655 = vadd.xlane.f32.xlu0 %v654
    %v656 = vpop.xlane.xlu0 %655
    %v657 = vsel %vm232, %v638, 0.0
    %658 = vadd.xlane.f32.xlu0 %v657
    %v659 = vpop.xlane.xlu0 %658
    %v660 = vsel %vm232, %v640, 0.0
    %661 = vadd.xlane.f32.xlu0 %v660
    %v662 = vpop.xlane.xlu0 %661
    %v663 = vsel %vm232, %v642, 0.0
    %664 = vadd.xlane.f32.xlu0 %v663
    %v665 = vpop.xlane.xlu0 %664
    %v666 = vsel %vm232, %v644, 0.0
    %667 = vadd.xlane.f32.xlu0 %v666
    %v668 = vpop.xlane.xlu0 %667
    %v669 = vrcp.pop %v647
    %v670 = vrcp.pop %v650
    %v671 = vrcp.pop %v653
    %v672 = vrcp.pop %v656
    %v673 = vrcp.pop %v659
    %v674 = vrcp.pop %v662
    %v675 = vrcp.pop %v665
    %v676 = vrcp.pop %v668
    %v677 = vmul.f32 %v630, %v669
    %v678 = vmul.f32 %v632, %v670
    %v679 = vmul.f32 %v634, %v671
    %v680 = vmul.f32 %v636, %v672
    %v681 = vmul.f32 %v638, %v673
    %v682 = vmul.f32 %v640, %v674
    %v683 = vmul.f32 %v642, %v675
    %v684 = vmul.f32 %v644, %v676
    %685 = vrot.lane.b32.xlu0 %v186, 64
    %v686 = vpop.permute.xlu0 %685
    %687 = vrot.lane.b32.xlu0 %v191, 64
    %v688 = vpop.permute.xlu0 %687
    %v692 = vsel %vm232, %v677, 0
    %v695 = vsel %vm232, %v678, 0
    %697 = vmatprep.subr.mxu0 0.0
    %698 = vmatpush1.msra.mxu0 0.0
    %699 = vmatprep.subr.mxu0 0.0
    %700 = vmatpush1.msra.mxu0 0.0
    %701 = vmatprep.subr.mxu0 0.0
    %702 = vmatpush1.msra.mxu0 0.0
    %703 = vmatprep.subr.mxu0 0.0
    %704 = vmatpush1.msra.mxu0 0.0
    %705 = vmatprep.subr.mxu0 0.0
    %706 = vmatpush1.msra.mxu0 0.0
    %707 = vmatprep.subr.mxu0 0.0
    %708 = vmatpush1.msra.mxu0 0.0
    %709 = vmatprep.subr.mxu0 0.0
    %710 = vmatpush1.msra.mxu0 0.0
    %711 = vmatprep.subr.mxu0 0.0
    %712 = vmatpush1.msra.mxu0 0.0
    %713 = vmatprep.subr.mxu0 0.0
    %714 = vmatpush1.msra.mxu0 0.0
    %715 = vmatprep.subr.mxu0 0.0
    %716 = vmatpush1.msra.mxu0 0.0
    %717 = vmatprep.subr.mxu0 0.0
    %718 = vmatpush1.msra.mxu0 0.0
    %719 = vmatprep.subr.mxu0 0.0
    %720 = vmatpush1.msra.mxu0 0.0
    %721 = vmatprep.subr.mxu0 0.0
    %722 = vmatpush1.msra.mxu0 0.0
    %723 = vmatprep.subr.mxu0 0.0
    %724 = vmatpush1.msra.mxu0 0.0
    %725 = vmatprep.subr.mxu0 0.0
    %726 = vmatpush1.msra.mxu0 %v688
    %727 = vmatprep.subr.mxu0 0.0
    %728 = vmatpush1.msra.mxu0 %v686
    %729 = vmatprep.subr.mxu0 0.0
    %730 = vmatpush2.msra.mxu0 0.0
    %731 = vmatprep.subr.mxu0 0.0
    %732 = vmatpush2.msra.mxu0 0.0
    %733 = vmatprep.subr.mxu0 0.0
    %734 = vmatpush2.msra.mxu0 0.0
    %735 = vmatprep.subr.mxu0 0.0
    %736 = vmatpush2.msra.mxu0 0.0
    %737 = vmatprep.subr.mxu0 0.0
    %738 = vmatpush2.msra.mxu0 0.0
    %739 = vmatprep.subr.mxu0 0.0
    %740 = vmatpush2.msra.mxu0 0.0
    %741 = vmatprep.subr.mxu0 0.0
    %742 = vmatpush2.msra.mxu0 0.0
    %743 = vmatprep.subr.mxu0 0.0
    %744 = vmatpush2.msra.mxu0 0.0
    %745 = vmatprep.subr.mxu0 0.0
    %746 = vmatpush2.msra.mxu0 0.0
    %747 = vmatprep.subr.mxu0 0.0
    %748 = vmatpush2.msra.mxu0 0.0
    %749 = vmatprep.subr.mxu0 0.0
    %750 = vmatpush2.msra.mxu0 0.0
    %751 = vmatprep.subr.mxu0 0.0
    %752 = vmatpush2.msra.mxu0 0.0
    %753 = vmatprep.subr.mxu0 0.0
    %754 = vmatpush2.msra.mxu0 0.0
    %755 = vmatprep.subr.mxu0 0.0
    %756 = vmatpush2.msra.mxu0 0.0
    %757 = vmatprep.subr.mxu0 0.0
    %758 = vmatpush2.msra.mxu0 0.0
    %759 = vmatprep.subr.mxu0 0.0
    %760 = vmatpush2.msra.mxu0 0.0
    %761 = vmatprep.mubr.f32.mxu0 0.0
    %762 = vmatmul.mubr.f32.gmra.mxu0 %v692
    %v763 = vpop.f32.mrf.mxu0
    %v764 = vadd.f32 0.0, %v763
    %v765 = vpop.f32.mrf.mxu0
    %766 = vmatprep.mubr.f32.mxu0 0.0
    %767 = vmatmul.mubr.f32.gmra.mxu0 %v695
    %v768 = vpop.f32.mrf.mxu0
    %v769 = vadd.f32 0.0, %v768
    %v770 = vpop.f32.mrf.mxu0
    %771 = vdwg.mxu0
    %772 = vrot.lane.b32.xlu0 %v196, 64
    %v773 = vpop.permute.xlu0 %772
    %774 = vrot.lane.b32.xlu0 %v201, 64
    %v775 = vpop.permute.xlu0 %774
    %v779 = vsel %vm232, %v679, 0
    %v782 = vsel %vm232, %v680, 0
    %784 = vmatprep.subr.mxu0 0.0
    %785 = vmatpush1.msra.mxu0 0.0
    %786 = vmatprep.subr.mxu0 0.0
    %787 = vmatpush1.msra.mxu0 0.0
    %788 = vmatprep.subr.mxu0 0.0
    %789 = vmatpush1.msra.mxu0 0.0
    %790 = vmatprep.subr.mxu0 0.0
    %791 = vmatpush1.msra.mxu0 0.0
    %792 = vmatprep.subr.mxu0 0.0
    %793 = vmatpush1.msra.mxu0 0.0
    %794 = vmatprep.subr.mxu0 0.0
    %795 = vmatpush1.msra.mxu0 0.0
    %796 = vmatprep.subr.mxu0 0.0
    %797 = vmatpush1.msra.mxu0 0.0
    %798 = vmatprep.subr.mxu0 0.0
    %799 = vmatpush1.msra.mxu0 0.0
    %800 = vmatprep.subr.mxu0 0.0
    %801 = vmatpush1.msra.mxu0 0.0
    %802 = vmatprep.subr.mxu0 0.0
    %803 = vmatpush1.msra.mxu0 0.0
    %804 = vmatprep.subr.mxu0 0.0
    %805 = vmatpush1.msra.mxu0 0.0
    %806 = vmatprep.subr.mxu0 0.0
    %807 = vmatpush1.msra.mxu0 0.0
    %808 = vmatprep.subr.mxu0 0.0
    %809 = vmatpush1.msra.mxu0 0.0
    %810 = vmatprep.subr.mxu0 0.0
    %811 = vmatpush1.msra.mxu0 0.0
    %812 = vmatprep.subr.mxu0 0.0
    %813 = vmatpush1.msra.mxu0 %v775
    %814 = vmatprep.subr.mxu0 0.0
    %815 = vmatpush1.msra.mxu0 %v773
    %816 = vmatprep.subr.mxu0 0.0
    %817 = vmatpush2.msra.mxu0 0.0
    %818 = vmatprep.subr.mxu0 0.0
    %819 = vmatpush2.msra.mxu0 0.0
    %820 = vmatprep.subr.mxu0 0.0
    %821 = vmatpush2.msra.mxu0 0.0
    %822 = vmatprep.subr.mxu0 0.0
    %823 = vmatpush2.msra.mxu0 0.0
    %824 = vmatprep.subr.mxu0 0.0
    %825 = vmatpush2.msra.mxu0 0.0
    %826 = vmatprep.subr.mxu0 0.0
    %827 = vmatpush2.msra.mxu0 0.0
    %828 = vmatprep.subr.mxu0 0.0
    %829 = vmatpush2.msra.mxu0 0.0
    %830 = vmatprep.subr.mxu0 0.0
    %831 = vmatpush2.msra.mxu0 0.0
    %832 = vmatprep.subr.mxu0 0.0
    %833 = vmatpush2.msra.mxu0 0.0
    %834 = vmatprep.subr.mxu0 0.0
    %835 = vmatpush2.msra.mxu0 0.0
    %836 = vmatprep.subr.mxu0 0.0
    %837 = vmatpush2.msra.mxu0 0.0
    %838 = vmatprep.subr.mxu0 0.0
    %839 = vmatpush2.msra.mxu0 0.0
    %840 = vmatprep.subr.mxu0 0.0
    %841 = vmatpush2.msra.mxu0 0.0
    %842 = vmatprep.subr.mxu0 0.0
    %843 = vmatpush2.msra.mxu0 0.0
    %844 = vmatprep.subr.mxu0 0.0
    %845 = vmatpush2.msra.mxu0 0.0
    %846 = vmatprep.subr.mxu0 0.0
    %847 = vmatpush2.msra.mxu0 0.0
    %848 = vmatprep.mubr.f32.mxu0 0.0
    %849 = vmatmul.mubr.f32.gmra.mxu0 %v779
    %v850 = vpop.f32.mrf.mxu0
    %v851 = vadd.f32 0.0, %v850
    %v852 = vpop.f32.mrf.mxu0
    %853 = vmatprep.mubr.f32.mxu0 0.0
    %854 = vmatmul.mubr.f32.gmra.mxu0 %v782
    %v855 = vpop.f32.mrf.mxu0
    %v856 = vadd.f32 0.0, %v855
    %v857 = vpop.f32.mrf.mxu0
    %858 = vdwg.mxu0
    %859 = vrot.lane.b32.xlu0 %v209, 64
    %v860 = vpop.permute.xlu0 %859
    %861 = vrot.lane.b32.xlu0 %v211, 64
    %v862 = vpop.permute.xlu0 %861
    %v866 = vsel %vm232, %v681, 0
    %v869 = vsel %vm232, %v682, 0
    %871 = vmatprep.subr.mxu0 0.0
    %872 = vmatpush1.msra.mxu0 0.0
    %873 = vmatprep.subr.mxu0 0.0
    %874 = vmatpush1.msra.mxu0 0.0
    %875 = vmatprep.subr.mxu0 0.0
    %876 = vmatpush1.msra.mxu0 0.0
    %877 = vmatprep.subr.mxu0 0.0
    %878 = vmatpush1.msra.mxu0 0.0
    %879 = vmatprep.subr.mxu0 0.0
    %880 = vmatpush1.msra.mxu0 0.0
    %881 = vmatprep.subr.mxu0 0.0
    %882 = vmatpush1.msra.mxu0 0.0
    %883 = vmatprep.subr.mxu0 0.0
    %884 = vmatpush1.msra.mxu0 0.0
    %885 = vmatprep.subr.mxu0 0.0
    %886 = vmatpush1.msra.mxu0 0.0
    %887 = vmatprep.subr.mxu0 0.0
    %888 = vmatpush1.msra.mxu0 0.0
    %889 = vmatprep.subr.mxu0 0.0
    %890 = vmatpush1.msra.mxu0 0.0
    %891 = vmatprep.subr.mxu0 0.0
    %892 = vmatpush1.msra.mxu0 0.0
    %893 = vmatprep.subr.mxu0 0.0
    %894 = vmatpush1.msra.mxu0 0.0
    %895 = vmatprep.subr.mxu0 0.0
    %896 = vmatpush1.msra.mxu0 0.0
    %897 = vmatprep.subr.mxu0 0.0
    %898 = vmatpush1.msra.mxu0 0.0
    %899 = vmatprep.subr.mxu0 0.0
    %900 = vmatpush1.msra.mxu0 %v862
    %901 = vmatprep.subr.mxu0 0.0
    %902 = vmatpush1.msra.mxu0 %v860
    %903 = vmatprep.subr.mxu0 0.0
    %904 = vmatpush2.msra.mxu0 0.0
    %905 = vmatprep.subr.mxu0 0.0
    %906 = vmatpush2.msra.mxu0 0.0
    %907 = vmatprep.subr.mxu0 0.0
    %908 = vmatpush2.msra.mxu0 0.0
    %909 = vmatprep.subr.mxu0 0.0
    %910 = vmatpush2.msra.mxu0 0.0
    %911 = vmatprep.subr.mxu0 0.0
    %912 = vmatpush2.msra.mxu0 0.0
    %913 = vmatprep.subr.mxu0 0.0
    %914 = vmatpush2.msra.mxu0 0.0
    %915 = vmatprep.subr.mxu0 0.0
    %916 = vmatpush2.msra.mxu0 0.0
    %917 = vmatprep.subr.mxu0 0.0
    %918 = vmatpush2.msra.mxu0 0.0
    %919 = vmatprep.subr.mxu0 0.0
    %920 = vmatpush2.msra.mxu0 0.0
    %921 = vmatprep.subr.mxu0 0.0
    %922 = vmatpush2.msra.mxu0 0.0
    %923 = vmatprep.subr.mxu0 0.0
    %924 = vmatpush2.msra.mxu0 0.0
    %925 = vmatprep.subr.mxu0 0.0
    %926 = vmatpush2.msra.mxu0 0.0
    %927 = vmatprep.subr.mxu0 0.0
    %928 = vmatpush2.msra.mxu0 0.0
    %929 = vmatprep.subr.mxu0 0.0
    %930 = vmatpush2.msra.mxu0 0.0
    %931 = vmatprep.subr.mxu0 0.0
    %932 = vmatpush2.msra.mxu0 0.0
    %933 = vmatprep.subr.mxu0 0.0
    %934 = vmatpush2.msra.mxu0 0.0
    %935 = vmatprep.mubr.f32.mxu0 0.0
    %936 = vmatmul.mubr.f32.gmra.mxu0 %v866
    %v937 = vpop.f32.mrf.mxu0
    %v938 = vadd.f32 0.0, %v937
    %v939 = vpop.f32.mrf.mxu0
    %940 = vmatprep.mubr.f32.mxu0 0.0
    %941 = vmatmul.mubr.f32.gmra.mxu0 %v869
    %v942 = vpop.f32.mrf.mxu0
    %v943 = vadd.f32 0.0, %v942
    %v944 = vpop.f32.mrf.mxu0
    %945 = vdwg.mxu0
    %946 = vrot.lane.b32.xlu0 %v213, 64
    %v947 = vpop.permute.xlu0 %946
    %948 = vrot.lane.b32.xlu0 %v215, 64
    %v949 = vpop.permute.xlu0 %948
    %v953 = vsel %vm232, %v683, 0
    %v956 = vsel %vm232, %v684, 0
    %958 = vmatprep.subr.mxu0 0.0
    %959 = vmatpush1.msra.mxu0 0.0
    %960 = vmatprep.subr.mxu0 0.0
    %961 = vmatpush1.msra.mxu0 0.0
    %962 = vmatprep.subr.mxu0 0.0
    %963 = vmatpush1.msra.mxu0 0.0
    %964 = vmatprep.subr.mxu0 0.0
    %965 = vmatpush1.msra.mxu0 0.0
    %966 = vmatprep.subr.mxu0 0.0
    %967 = vmatpush1.msra.mxu0 0.0
    %968 = vmatprep.subr.mxu0 0.0
    %969 = vmatpush1.msra.mxu0 0.0
    %970 = vmatprep.subr.mxu0 0.0
    %971 = vmatpush1.msra.mxu0 0.0
    %972 = vmatprep.subr.mxu0 0.0
    %973 = vmatpush1.msra.mxu0 0.0
    %974 = vmatprep.subr.mxu0 0.0
    %975 = vmatpush1.msra.mxu0 0.0
    %976 = vmatprep.subr.mxu0 0.0
    %977 = vmatpush1.msra.mxu0 0.0
    %978 = vmatprep.subr.mxu0 0.0
    %979 = vmatpush1.msra.mxu0 0.0
    %980 = vmatprep.subr.mxu0 0.0
    %981 = vmatpush1.msra.mxu0 0.0
    %982 = vmatprep.subr.mxu0 0.0
    %983 = vmatpush1.msra.mxu0 0.0
    %984 = vmatprep.subr.mxu0 0.0
    %985 = vmatpush1.msra.mxu0 0.0
    %986 = vmatprep.subr.mxu0 0.0
    %987 = vmatpush1.msra.mxu0 %v949
    %988 = vmatprep.subr.mxu0 0.0
    %989 = vmatpush1.msra.mxu0 %v947
    %990 = vmatprep.subr.mxu0 0.0
    %991 = vmatpush2.msra.mxu0 0.0
    %992 = vmatprep.subr.mxu0 0.0
    %993 = vmatpush2.msra.mxu0 0.0
    %994 = vmatprep.subr.mxu0 0.0
    %995 = vmatpush2.msra.mxu0 0.0
    %996 = vmatprep.subr.mxu0 0.0
    %997 = vmatpush2.msra.mxu0 0.0
    %998 = vmatprep.subr.mxu0 0.0
    %999 = vmatpush2.msra.mxu0 0.0
    %1000 = vmatprep.subr.mxu0 0.0
    %1001 = vmatpush2.msra.mxu0 0.0
    %1002 = vmatprep.subr.mxu0 0.0
    %1003 = vmatpush2.msra.mxu0 0.0
    %1004 = vmatprep.subr.mxu0 0.0
    %1005 = vmatpush2.msra.mxu0 0.0
    %1006 = vmatprep.subr.mxu0 0.0
    %1007 = vmatpush2.msra.mxu0 0.0
    %1008 = vmatprep.subr.mxu0 0.0
    %1009 = vmatpush2.msra.mxu0 0.0
    %1010 = vmatprep.subr.mxu0 0.0
    %1011 = vmatpush2.msra.mxu0 0.0
    %1012 = vmatprep.subr.mxu0 0.0
    %1013 = vmatpush2.msra.mxu0 0.0
    %1014 = vmatprep.subr.mxu0 0.0
    %1015 = vmatpush2.msra.mxu0 0.0
    %1016 = vmatprep.subr.mxu0 0.0
    %1017 = vmatpush2.msra.mxu0 0.0
    %1018 = vmatprep.subr.mxu0 0.0
    %1019 = vmatpush2.msra.mxu0 0.0
    %1020 = vmatprep.subr.mxu0 0.0
    %1021 = vmatpush2.msra.mxu0 0.0
    %1022 = vmatprep.mubr.f32.mxu0 0.0
    %1023 = vmatmul.mubr.f32.gmra.mxu0 %v953
    %v1024 = vpop.f32.mrf.mxu0
    %v1025 = vadd.f32 0.0, %v1024
    %v1026 = vpop.f32.mrf.mxu0
    %1027 = vmatprep.mubr.f32.mxu0 0.0
    %1028 = vmatmul.mubr.f32.gmra.mxu0 %v956
    %v1029 = vpop.f32.mrf.mxu0
    %v1030 = vadd.f32 0.0, %v1029
    %v1031 = vpop.f32.mrf.mxu0
    %1032 = vdwg.mxu0
    %1037 = vrot.lane.b32.xlu0 %v938, 16
    %v1038 = vpop.permute.xlu0 %1037
    %1039 = vrot.lane.b32.xlu0 %v943, 16
    %v1040 = vpop.permute.xlu0 %1039
    %1041 = vrot.lane.b32.xlu0 %v1025, 16
    %v1042 = vpop.permute.xlu0 %1041
    %1043 = vrot.lane.b32.xlu0 %v1030, 16
    %v1044 = vpop.permute.xlu0 %1043
    %v1049 = vsel %vm232, %v764, %v1038
    %v1050 = vsel %vm232, %v769, %v1040
    %v1051 = vsel %vm232, %v851, %v1042
    %v1052 = vsel %vm232, %v856, %v1044
    %v1053 = vld [vmem:[#allocation7] sm:$0xff]
    %v1054 = vld [vmem:[#allocation7 + $0x8] sm:$0xff]
    %v1055 = vld [vmem:[#allocation7 + $0x10] sm:$0xff]
    %v1056 = vld [vmem:[#allocation7 + $0x18] sm:$0xff]
    %v1057 = vlaneseq
    %v1058 = vshrl.u32 %v1057, 7
    %v1059 = vsub.s32 1, %v1058
    %v1060 = vrot.slane %v97, %v1059
    %v1062 = vsel %vm106, %v1049, 0
    %v1065 = vsel %vm106, %v1050, 0
    %v1068 = vsel %vm106, %v1051, 0
    %v1071 = vsel %vm106, %v1052, 0
    %1073 = vmatprep.subr.mxu0 0.0
    %1074 = vmatpush1.msra.mxu0 0.0
    %1075 = vmatprep.subr.mxu0 0.0
    %1076 = vmatpush1.msra.mxu0 0.0
    %1077 = vmatprep.subr.mxu0 0.0
    %1078 = vmatpush1.msra.mxu0 0.0
    %1079 = vmatprep.subr.mxu0 0.0
    %1080 = vmatpush1.msra.mxu0 0.0
    %1081 = vmatprep.subr.mxu0 0.0
    %1082 = vmatpush1.msra.mxu0 0.0
    %1083 = vmatprep.subr.mxu0 0.0
    %1084 = vmatpush1.msra.mxu0 0.0
    %1085 = vmatprep.subr.mxu0 0.0
    %1086 = vmatpush1.msra.mxu0 0.0
    %1087 = vmatprep.subr.mxu0 0.0
    %1088 = vmatpush1.msra.mxu0 0.0
    %1089 = vmatprep.subr.mxu0 0.0
    %1090 = vmatpush1.msra.mxu0 0.0
    %1091 = vmatprep.subr.mxu0 0.0
    %1092 = vmatpush1.msra.mxu0 0.0
    %1093 = vmatprep.subr.mxu0 0.0
    %1094 = vmatpush1.msra.mxu0 0.0
    %1095 = vmatprep.subr.mxu0 0.0
    %1096 = vmatpush1.msra.mxu0 0.0
    %1097 = vmatprep.subr.mxu0 0.0
    %1098 = vmatpush1.msra.mxu0 %v1056
    %1099 = vmatprep.subr.mxu0 0.0
    %1100 = vmatpush1.msra.mxu0 %v1055
    %1101 = vmatprep.subr.mxu0 0.0
    %1102 = vmatpush1.msra.mxu0 %v1054
    %1103 = vmatprep.subr.mxu0 0.0
    %1104 = vmatpush1.msra.mxu0 %v1053
    %1105 = vmatprep.subr.mxu0 0.0
    %1106 = vmatpush2.msra.mxu0 0.0
    %1107 = vmatprep.subr.mxu0 0.0
    %1108 = vmatpush2.msra.mxu0 0.0
    %1109 = vmatprep.subr.mxu0 0.0
    %1110 = vmatpush2.msra.mxu0 0.0
    %1111 = vmatprep.subr.mxu0 0.0
    %1112 = vmatpush2.msra.mxu0 0.0
    %1113 = vmatprep.subr.mxu0 0.0
    %1114 = vmatpush2.msra.mxu0 0.0
    %1115 = vmatprep.subr.mxu0 0.0
    %1116 = vmatpush2.msra.mxu0 0.0
    %1117 = vmatprep.subr.mxu0 0.0
    %1118 = vmatpush2.msra.mxu0 0.0
    %1119 = vmatprep.subr.mxu0 0.0
    %1120 = vmatpush2.msra.mxu0 0.0
    %1121 = vmatprep.subr.mxu0 0.0
    %1122 = vmatpush2.msra.mxu0 0.0
    %1123 = vmatprep.subr.mxu0 0.0
    %1124 = vmatpush2.msra.mxu0 0.0
    %1125 = vmatprep.subr.mxu0 0.0
    %1126 = vmatpush2.msra.mxu0 0.0
    %1127 = vmatprep.subr.mxu0 0.0
    %1128 = vmatpush2.msra.mxu0 0.0
    %1129 = vmatprep.subr.mxu0 0.0
    %1130 = vmatpush2.msra.mxu0 0.0
    %1131 = vmatprep.subr.mxu0 0.0
    %1132 = vmatpush2.msra.mxu0 0.0
    %1133 = vmatprep.subr.mxu0 0.0
    %1134 = vmatpush2.msra.mxu0 0.0
    %1135 = vmatprep.subr.mxu0 0.0
    %1136 = vmatpush2.msra.mxu0 0.0
    %1137 = vmatprep.mubr.f32.mxu0 0.0
    %1138 = vmatmul.mubr.f32.gmra.mxu0 %v1062
    %v1139 = vpop.f32.mrf.mxu0
    %v1140 = vadd.f32 %v1060, %v1139
    %v1141 = vpop.f32.mrf.mxu0
    %1142 = vmatprep.mubr.f32.mxu0 0.0
    %1143 = vmatmul.mubr.f32.gmra.mxu0 %v1065
    %v1144 = vpop.f32.mrf.mxu0
    %v1145 = vadd.f32 %v1060, %v1144
    %v1146 = vpop.f32.mrf.mxu0
    %1147 = vmatprep.mubr.f32.mxu0 0.0
    %1148 = vmatmul.mubr.f32.gmra.mxu0 %v1068
    %v1149 = vpop.f32.mrf.mxu0
    %v1150 = vadd.f32 %v1060, %v1149
    %v1151 = vpop.f32.mrf.mxu0
    %1152 = vmatprep.mubr.f32.mxu0 0.0
    %1153 = vmatmul.mubr.f32.gmra.mxu0 %v1071
    %v1154 = vpop.f32.mrf.mxu0
    %v1155 = vadd.f32 %v1060, %v1154
    %v1156 = vpop.f32.mrf.mxu0
    %1157 = vdwg.mxu0
    %v1158 = vadd.f32 %v86, %v1140
    %v1159 = vadd.f32 %v87, %v1145
    %v1160 = vadd.f32 %v88, %v1150
    %v1161 = vadd.f32 %v89, %v1155
    %v1162 = vsel %vm106, %v1158, 0.0
    %1163 = vadd.xlane.f32.xlu0 %v1162
    %v1164 = vpop.xlane.xlu0 %1163
    %v1165 = vsel %vm106, %v1159, 0.0
    %1166 = vadd.xlane.f32.xlu0 %v1165
    %v1167 = vpop.xlane.xlu0 %1166
    %v1168 = vsel %vm106, %v1160, 0.0
    %1169 = vadd.xlane.f32.xlu0 %v1168
    %v1170 = vpop.xlane.xlu0 %1169
    %v1171 = vsel %vm106, %v1161, 0.0
    %1172 = vadd.xlane.f32.xlu0 %v1171
    %v1173 = vpop.xlane.xlu0 %1172
    %v1174 = vrcp.pop 32.0
    %v1175 = vmul.f32 %v1164, %v1174
    %v1176 = vmul.f32 %v1167, %v1174
    %v1177 = vmul.f32 %v1170, %v1174
    %v1178 = vmul.f32 %v1173, %v1174
    %v1179 = vsub.f32 %v1158, %v1175
    %v1180 = vsub.f32 %v1159, %v1176
    %v1181 = vsub.f32 %v1160, %v1177
    %v1182 = vsub.f32 %v1161, %v1178
    %v1183 = vmul.f32 %v1179, %v1179
    %v1184 = vmul.f32 %v1180, %v1180
    %v1185 = vmul.f32 %v1181, %v1181
    %v1186 = vmul.f32 %v1182, %v1182
    %v1187 = vsel %vm106, %v1183, 0.0
    %1188 = vadd.xlane.f32.xlu0 %v1187
    %v1189 = vpop.xlane.xlu0 %1188
    %v1190 = vsel %vm106, %v1184, 0.0
    %1191 = vadd.xlane.f32.xlu0 %v1190
    %v1192 = vpop.xlane.xlu0 %1191
    %v1193 = vsel %vm106, %v1185, 0.0
    %1194 = vadd.xlane.f32.xlu0 %v1193
    %v1195 = vpop.xlane.xlu0 %1194
    %v1196 = vsel %vm106, %v1186, 0.0
    %1197 = vadd.xlane.f32.xlu0 %v1196
    %v1198 = vpop.xlane.xlu0 %1197
    %v1199 = vmul.f32 %v1189, %v1174
    %v1200 = vmul.f32 %v1192, %v1174
    %v1201 = vmul.f32 %v1195, %v1174
    %v1202 = vmul.f32 %v1198, %v1174
    %v1203 = vadd.f32 %v1199, 1e-05
    %v1204 = vadd.f32 %v1200, 1e-05
    %v1205 = vadd.f32 %v1201, 1e-05
    %v1206 = vadd.f32 %v1202, 1e-05
    %v1207 = vrsqrt.pop %v1203
    %v1208 = vrsqrt.pop %v1204
    %v1209 = vrsqrt.pop %v1205
    %v1210 = vrsqrt.pop %v1206
    %v1211 = vmul.f32 %v1179, %v1207
    %v1212 = vmul.f32 %v1180, %v1208
    %v1213 = vmul.f32 %v1181, %v1209
    %v1214 = vmul.f32 %v1182, %v1210
    %v1215 = vlaneseq
    %v1216 = vshrl.u32 %v1215, 7
    %v1217 = vsub.s32 2, %v1216
    %v1218 = vrot.slane %v97, %v1217
    %v1219 = vmul.f32 %v1211, %v1218
    %v1220 = vmul.f32 %v1212, %v1218
    %v1221 = vmul.f32 %v1213, %v1218
    %v1222 = vmul.f32 %v1214, %v1218
    %v1223 = vlaneseq
    %v1224 = vshrl.u32 %v1223, 7
    %v1225 = vsub.s32 3, %v1224
    %v1226 = vrot.slane %v97, %v1225
    %v1227 = vadd.f32 %v1219, %v1226
    %v1228 = vadd.f32 %v1220, %v1226
    %v1229 = vadd.f32 %v1221, %v1226
    %v1230 = vadd.f32 %v1222, %v1226
    %v1231 = vld [vmem:[#allocation9] sm:$0xff]
    %v1232 = vld [vmem:[#allocation9 + $0x8] sm:$0xff]
    %v1233 = vld [vmem:[#allocation9 + $0x10] sm:$0xff]
    %v1234 = vld [vmem:[#allocation9 + $0x18] sm:$0xff]
    %v1235 = vlaneseq
    %v1236 = vshrl.u32 %v1235, 7
    %v1237 = vsub.s32 4, %v1236
    %v1238 = vrot.slane %v97, %v1237
    %v1240 = vsel %vm106, %v1227, 0
    %v1243 = vsel %vm106, %v1228, 0
    %v1246 = vsel %vm106, %v1229, 0
    %v1249 = vsel %vm106, %v1230, 0
    %1251 = vmatprep.subr.mxu0 0.0
    %1252 = vmatpush1.msra.mxu0 0.0
    %1253 = vmatprep.subr.mxu0 0.0
    %1254 = vmatpush1.msra.mxu0 0.0
    %1255 = vmatprep.subr.mxu0 0.0
    %1256 = vmatpush1.msra.mxu0 0.0
    %1257 = vmatprep.subr.mxu0 0.0
    %1258 = vmatpush1.msra.mxu0 0.0
    %1259 = vmatprep.subr.mxu0 0.0
    %1260 = vmatpush1.msra.mxu0 0.0
    %1261 = vmatprep.subr.mxu0 0.0
    %1262 = vmatpush1.msra.mxu0 0.0
    %1263 = vmatprep.subr.mxu0 0.0
    %1264 = vmatpush1.msra.mxu0 0.0
    %1265 = vmatprep.subr.mxu0 0.0
    %1266 = vmatpush1.msra.mxu0 0.0
    %1267 = vmatprep.subr.mxu0 0.0
    %1268 = vmatpush1.msra.mxu0 0.0
    %1269 = vmatprep.subr.mxu0 0.0
    %1270 = vmatpush1.msra.mxu0 0.0
    %1271 = vmatprep.subr.mxu0 0.0
    %1272 = vmatpush1.msra.mxu0 0.0
    %1273 = vmatprep.subr.mxu0 0.0
    %1274 = vmatpush1.msra.mxu0 0.0
    %1275 = vmatprep.subr.mxu0 0.0
    %1276 = vmatpush1.msra.mxu0 %v1234
    %1277 = vmatprep.subr.mxu0 0.0
    %1278 = vmatpush1.msra.mxu0 %v1233
    %1279 = vmatprep.subr.mxu0 0.0
    %1280 = vmatpush1.msra.mxu0 %v1232
    %1281 = vmatprep.subr.mxu0 0.0
    %1282 = vmatpush1.msra.mxu0 %v1231
    %1283 = vmatprep.subr.mxu0 0.0
    %1284 = vmatpush2.msra.mxu0 0.0
    %1285 = vmatprep.subr.mxu0 0.0
    %1286 = vmatpush2.msra.mxu0 0.0
    %1287 = vmatprep.subr.mxu0 0.0
    %1288 = vmatpush2.msra.mxu0 0.0
    %1289 = vmatprep.subr.mxu0 0.0
    %1290 = vmatpush2.msra.mxu0 0.0
    %1291 = vmatprep.subr.mxu0 0.0
    %1292 = vmatpush2.msra.mxu0 0.0
    %1293 = vmatprep.subr.mxu0 0.0
    %1294 = vmatpush2.msra.mxu0 0.0
    %1295 = vmatprep.subr.mxu0 0.0
    %1296 = vmatpush2.msra.mxu0 0.0
    %1297 = vmatprep.subr.mxu0 0.0
    %1298 = vmatpush2.msra.mxu0 0.0
    %1299 = vmatprep.subr.mxu0 0.0
    %1300 = vmatpush2.msra.mxu0 0.0
    %1301 = vmatprep.subr.mxu0 0.0
    %1302 = vmatpush2.msra.mxu0 0.0
    %1303 = vmatprep.subr.mxu0 0.0
    %1304 = vmatpush2.msra.mxu0 0.0
    %1305 = vmatprep.subr.mxu0 0.0
    %1306 = vmatpush2.msra.mxu0 0.0
    %1307 = vmatprep.subr.mxu0 0.0
    %1308 = vmatpush2.msra.mxu0 0.0
    %1309 = vmatprep.subr.mxu0 0.0
    %1310 = vmatpush2.msra.mxu0 0.0
    %1311 = vmatprep.subr.mxu0 0.0
    %1312 = vmatpush2.msra.mxu0 0.0
    %1313 = vmatprep.subr.mxu0 0.0
    %1314 = vmatpush2.msra.mxu0 0.0
    %1315 = vmatprep.mubr.f32.mxu0 0.0
    %1316 = vmatmul.mubr.f32.gmra.mxu0 %v1240
    %v1317 = vpop.f32.mrf.mxu0
    %v1318 = vadd.f32 %v1238, %v1317
    %v1319 = vpop.f32.mrf.mxu0
    %1320 = vmatprep.mubr.f32.mxu0 0.0
    %1321 = vmatmul.mubr.f32.gmra.mxu0 %v1243
    %v1322 = vpop.f32.mrf.mxu0
    %v1323 = vadd.f32 %v1238, %v1322
    %v1324 = vpop.f32.mrf.mxu0
    %1325 = vmatprep.mubr.f32.mxu0 0.0
    %1326 = vmatmul.mubr.f32.gmra.mxu0 %v1246
    %v1327 = vpop.f32.mrf.mxu0
    %v1328 = vadd.f32 %v1238, %v1327
    %v1329 = vpop.f32.mrf.mxu0
    %1330 = vmatprep.mubr.f32.mxu0 0.0
    %1331 = vmatmul.mubr.f32.gmra.mxu0 %v1249
    %v1332 = vpop.f32.mrf.mxu0
    %v1333 = vadd.f32 %v1238, %v1332
    %v1334 = vpop.f32.mrf.mxu0
    %1335 = vdwg.mxu0
    %v1336 = vmax.f32 %v1318, 0.0
    %v1337 = vmax.f32 %v1323, 0.0
    %v1338 = vmax.f32 %v1328, 0.0
    %v1339 = vmax.f32 %v1333, 0.0
    %v1340 = vld [vmem:[%s6] sm:$0xff]
    %v1341 = vld [vmem:[%s6 + $0x8] sm:$0xff]
    %v1342 = vld [vmem:[%s6 + $0x10] sm:$0xff]
    %v1343 = vld [vmem:[%s6 + $0x18] sm:$0xff]
    %v1344 = vld [vmem:[%s6 + $0x20] sm:$0xff]
    %v1345 = vld [vmem:[%s6 + $0x28] sm:$0xff]
    %v1346 = vld [vmem:[%s6 + $0x30] sm:$0xff]
    %v1347 = vld [vmem:[%s6 + $0x38] sm:$0xff]
    %v1348 = vlaneseq
    %v1349 = vshrl.u32 %v1348, 7
    %v1350 = vsub.s32 5, %v1349
    %v1351 = vrot.slane %v97, %v1350
    %vm1352 = vcmask 523264
    %v1354 = vsel %vm1352, %v1336, 0
    %v1357 = vsel %vm1352, %v1337, 0
    %v1360 = vsel %vm1352, %v1338, 0
    %v1363 = vsel %vm1352, %v1339, 0
    %1365 = vmatprep.subr.mxu0 0.0
    %1366 = vmatpush1.msra.mxu0 0.0
    %1367 = vmatprep.subr.mxu0 0.0
    %1368 = vmatpush1.msra.mxu0 0.0
    %1369 = vmatprep.subr.mxu0 0.0
    %1370 = vmatpush1.msra.mxu0 0.0
    %1371 = vmatprep.subr.mxu0 0.0
    %1372 = vmatpush1.msra.mxu0 0.0
    %1373 = vmatprep.subr.mxu0 0.0
    %1374 = vmatpush1.msra.mxu0 0.0
    %1375 = vmatprep.subr.mxu0 0.0
    %1376 = vmatpush1.msra.mxu0 0.0
    %1377 = vmatprep.subr.mxu0 0.0
    %1378 = vmatpush1.msra.mxu0 0.0
    %1379 = vmatprep.subr.mxu0 0.0
    %1380 = vmatpush1.msra.mxu0 0.0
    %1381 = vmatprep.subr.mxu0 0.0
    %1382 = vmatpush1.msra.mxu0 %v1347
    %1383 = vmatprep.subr.mxu0 0.0
    %1384 = vmatpush1.msra.mxu0 %v1346
    %1385 = vmatprep.subr.mxu0 0.0
    %1386 = vmatpush1.msra.mxu0 %v1345
    %1387 = vmatprep.subr.mxu0 0.0
    %1388 = vmatpush1.msra.mxu0 %v1344
    %1389 = vmatprep.subr.mxu0 0.0
    %1390 = vmatpush1.msra.mxu0 %v1343
    %1391 = vmatprep.subr.mxu0 0.0
    %1392 = vmatpush1.msra.mxu0 %v1342
    %1393 = vmatprep.subr.mxu0 0.0
    %1394 = vmatpush1.msra.mxu0 %v1341
    %1395 = vmatprep.subr.mxu0 0.0
    %1396 = vmatpush1.msra.mxu0 %v1340
    %1397 = vmatprep.subr.mxu0 0.0
    %1398 = vmatpush2.msra.mxu0 0.0
    %1399 = vmatprep.subr.mxu0 0.0
    %1400 = vmatpush2.msra.mxu0 0.0
    %1401 = vmatprep.subr.mxu0 0.0
    %1402 = vmatpush2.msra.mxu0 0.0
    %1403 = vmatprep.subr.mxu0 0.0
    %1404 = vmatpush2.msra.mxu0 0.0
    %1405 = vmatprep.subr.mxu0 0.0
    %1406 = vmatpush2.msra.mxu0 0.0
    %1407 = vmatprep.subr.mxu0 0.0
    %1408 = vmatpush2.msra.mxu0 0.0
    %1409 = vmatprep.subr.mxu0 0.0
    %1410 = vmatpush2.msra.mxu0 0.0
    %1411 = vmatprep.subr.mxu0 0.0
    %1412 = vmatpush2.msra.mxu0 0.0
    %1413 = vmatprep.subr.mxu0 0.0
    %1414 = vmatpush2.msra.mxu0 0.0
    %1415 = vmatprep.subr.mxu0 0.0
    %1416 = vmatpush2.msra.mxu0 0.0
    %1417 = vmatprep.subr.mxu0 0.0
    %1418 = vmatpush2.msra.mxu0 0.0
    %1419 = vmatprep.subr.mxu0 0.0
    %1420 = vmatpush2.msra.mxu0 0.0
    %1421 = vmatprep.subr.mxu0 0.0
    %1422 = vmatpush2.msra.mxu0 0.0
    %1423 = vmatprep.subr.mxu0 0.0
    %1424 = vmatpush2.msra.mxu0 0.0
    %1425 = vmatprep.subr.mxu0 0.0
    %1426 = vmatpush2.msra.mxu0 0.0
    %1427 = vmatprep.subr.mxu0 0.0
    %1428 = vmatpush2.msra.mxu0 0.0
    %1429 = vmatprep.mubr.f32.mxu0 0.0
    %1430 = vmatmul.mubr.f32.gmra.mxu0 %v1354
    %v1431 = vpop.f32.mrf.mxu0
    %v1432 = vadd.f32 %v1351, %v1431
    %v1433 = vpop.f32.mrf.mxu0
    %1434 = vmatprep.mubr.f32.mxu0 0.0
    %1435 = vmatmul.mubr.f32.gmra.mxu0 %v1357
    %v1436 = vpop.f32.mrf.mxu0
    %v1437 = vadd.f32 %v1351, %v1436
    %v1438 = vpop.f32.mrf.mxu0
    %1439 = vmatprep.mubr.f32.mxu0 0.0
    %1440 = vmatmul.mubr.f32.gmra.mxu0 %v1360
    %v1441 = vpop.f32.mrf.mxu0
    %v1442 = vadd.f32 %v1351, %v1441
    %v1443 = vpop.f32.mrf.mxu0
    %1444 = vmatprep.mubr.f32.mxu0 0.0
    %1445 = vmatmul.mubr.f32.gmra.mxu0 %v1363
    %v1446 = vpop.f32.mrf.mxu0
    %v1447 = vadd.f32 %v1351, %v1446
    %v1448 = vpop.f32.mrf.mxu0
    %1449 = vdwg.mxu0
    %v1450 = vadd.f32 %v1227, %v1432
    %v1451 = vadd.f32 %v1228, %v1437
    %v1452 = vadd.f32 %v1229, %v1442
    %v1453 = vadd.f32 %v1230, %v1447
    %v1454 = vsel %vm106, %v1450, 0.0
    %1455 = vadd.xlane.f32.xlu0 %v1454
    %v1456 = vpop.xlane.xlu0 %1455
    %v1457 = vsel %vm106, %v1451, 0.0
    %1458 = vadd.xlane.f32.xlu0 %v1457
    %v1459 = vpop.xlane.xlu0 %1458
    %v1460 = vsel %vm106, %v1452, 0.0
    %1461 = vadd.xlane.f32.xlu0 %v1460
    %v1462 = vpop.xlane.xlu0 %1461
    %v1463 = vsel %vm106, %v1453, 0.0
    %1464 = vadd.xlane.f32.xlu0 %v1463
    %v1465 = vpop.xlane.xlu0 %1464
    %v1466 = vmul.f32 %v1456, %v1174
    %v1467 = vmul.f32 %v1459, %v1174
    %v1468 = vmul.f32 %v1462, %v1174
    %v1469 = vmul.f32 %v1465, %v1174
    %v1470 = vsub.f32 %v1450, %v1466
    %v1471 = vsub.f32 %v1451, %v1467
    %v1472 = vsub.f32 %v1452, %v1468
    %v1473 = vsub.f32 %v1453, %v1469
    %v1474 = vmul.f32 %v1470, %v1470
    %v1475 = vmul.f32 %v1471, %v1471
    %v1476 = vmul.f32 %v1472, %v1472
    %v1477 = vmul.f32 %v1473, %v1473
    %v1478 = vsel %vm106, %v1474, 0.0
    %1479 = vadd.xlane.f32.xlu0 %v1478
    %v1480 = vpop.xlane.xlu0 %1479
    %v1481 = vsel %vm106, %v1475, 0.0
    %1482 = vadd.xlane.f32.xlu0 %v1481
    %v1483 = vpop.xlane.xlu0 %1482
    %v1484 = vsel %vm106, %v1476, 0.0
    %1485 = vadd.xlane.f32.xlu0 %v1484
    %v1486 = vpop.xlane.xlu0 %1485
    %v1487 = vsel %vm106, %v1477, 0.0
    %1488 = vadd.xlane.f32.xlu0 %v1487
    %v1489 = vpop.xlane.xlu0 %1488
    %v1490 = vmul.f32 %v1480, %v1174
    %v1491 = vmul.f32 %v1483, %v1174
    %v1492 = vmul.f32 %v1486, %v1174
    %v1493 = vmul.f32 %v1489, %v1174
    %v1494 = vadd.f32 %v1490, 1e-05
    %v1495 = vadd.f32 %v1491, 1e-05
    %v1496 = vadd.f32 %v1492, 1e-05
    %v1497 = vadd.f32 %v1493, 1e-05
    %v1498 = vrsqrt.pop %v1494
    %v1499 = vrsqrt.pop %v1495
    %v1500 = vrsqrt.pop %v1496
    %v1501 = vrsqrt.pop %v1497
    %v1502 = vmul.f32 %v1470, %v1498
    %v1503 = vmul.f32 %v1471, %v1499
    %v1504 = vmul.f32 %v1472, %v1500
    %v1505 = vmul.f32 %v1473, %v1501
    %v1506 = vlaneseq
    %v1507 = vshrl.u32 %v1506, 7
    %v1508 = vsub.s32 6, %v1507
    %v1509 = vrot.slane %v97, %v1508
    %v1510 = vmul.f32 %v1502, %v1509
    %v1511 = vmul.f32 %v1503, %v1509
    %v1512 = vmul.f32 %v1504, %v1509
    %v1513 = vmul.f32 %v1505, %v1509
    %v1514 = vlaneseq
    %v1515 = vshrl.u32 %v1514, 7
    %v1516 = vsub.s32 7, %v1515
    %v1517 = vrot.slane %v97, %v1516
    %v1518 = vadd.f32 %v1510, %v1517
    %v1519 = vadd.f32 %v1511, %v1517
    %v1520 = vadd.f32 %v1512, %v1517
    %v1521 = vadd.f32 %v1513, %v1517
    %s1522 = scalar_lea.vmem %s7, 8
    %v1523 = vld [vmem:[%s1522] sm:$0xff]
    %s1524 = scalar_lea.vmem [#allocation4], 32
    %v1525 = vld [vmem:[%s1524] sm:$0xff]
    %v1526 = vld [vmem:[%s1524 + $0x8] sm:$0xff]
    %v1527 = vld [vmem:[%s1524 + $0x10] sm:$0xff]
    %v1528 = vld [vmem:[%s1524 + $0x18] sm:$0xff]
    %v1529 = vlaneseq
    %v1530 = vshrl.u32 %v1529, 7
    %v1531 = vsub.s32 0, %v1530
    %v1532 = vrot.slane %v1523, %v1531
    %v1534 = vsel %vm106, %v1518, 0
    %v1537 = vsel %vm106, %v1519, 0
    %v1540 = vsel %vm106, %v1520, 0
    %v1543 = vsel %vm106, %v1521, 0
    %1545 = vmatprep.subr.mxu0 0.0
    %1546 = vmatpush1.msra.mxu0 0.0
    %1547 = vmatprep.subr.mxu0 0.0
    %1548 = vmatpush1.msra.mxu0 0.0
    %1549 = vmatprep.subr.mxu0 0.0
    %1550 = vmatpush1.msra.mxu0 0.0
    %1551 = vmatprep.subr.mxu0 0.0
    %1552 = vmatpush1.msra.mxu0 0.0
    %1553 = vmatprep.subr.mxu0 0.0
    %1554 = vmatpush1.msra.mxu0 0.0
    %1555 = vmatprep.subr.mxu0 0.0
    %1556 = vmatpush1.msra.mxu0 0.0
    %1557 = vmatprep.subr.mxu0 0.0
    %1558 = vmatpush1.msra.mxu0 0.0
    %1559 = vmatprep.subr.mxu0 0.0
    %1560 = vmatpush1.msra.mxu0 0.0
    %1561 = vmatprep.subr.mxu0 0.0
    %1562 = vmatpush1.msra.mxu0 0.0
    %1563 = vmatprep.subr.mxu0 0.0
    %1564 = vmatpush1.msra.mxu0 0.0
    %1565 = vmatprep.subr.mxu0 0.0
    %1566 = vmatpush1.msra.mxu0 0.0
    %1567 = vmatprep.subr.mxu0 0.0
    %1568 = vmatpush1.msra.mxu0 0.0
    %1569 = vmatprep.subr.mxu0 0.0
    %1570 = vmatpush1.msra.mxu0 %v1528
    %1571 = vmatprep.subr.mxu0 0.0
    %1572 = vmatpush1.msra.mxu0 %v1527
    %1573 = vmatprep.subr.mxu0 0.0
    %1574 = vmatpush1.msra.mxu0 %v1526
    %1575 = vmatprep.subr.mxu0 0.0
    %1576 = vmatpush1.msra.mxu0 %v1525
    %1577 = vmatprep.subr.mxu0 0.0
    %1578 = vmatpush2.msra.mxu0 0.0
    %1579 = vmatprep.subr.mxu0 0.0
    %1580 = vmatpush2.msra.mxu0 0.0
    %1581 = vmatprep.subr.mxu0 0.0
    %1582 = vmatpush2.msra.mxu0 0.0
    %1583 = vmatprep.subr.mxu0 0.0
    %1584 = vmatpush2.msra.mxu0 0.0
    %1585 = vmatprep.subr.mxu0 0.0
    %1586 = vmatpush2.msra.mxu0 0.0
    %1587 = vmatprep.subr.mxu0 0.0
    %1588 = vmatpush2.msra.mxu0 0.0
    %1589 = vmatprep.subr.mxu0 0.0
    %1590 = vmatpush2.msra.mxu0 0.0
    %1591 = vmatprep.subr.mxu0 0.0
    %1592 = vmatpush2.msra.mxu0 0.0
    %1593 = vmatprep.subr.mxu0 0.0
    %1594 = vmatpush2.msra.mxu0 0.0
    %1595 = vmatprep.subr.mxu0 0.0
    %1596 = vmatpush2.msra.mxu0 0.0
    %1597 = vmatprep.subr.mxu0 0.0
    %1598 = vmatpush2.msra.mxu0 0.0
    %1599 = vmatprep.subr.mxu0 0.0
    %1600 = vmatpush2.msra.mxu0 0.0
    %1601 = vmatprep.subr.mxu0 0.0
    %1602 = vmatpush2.msra.mxu0 0.0
    %1603 = vmatprep.subr.mxu0 0.0
    %1604 = vmatpush2.msra.mxu0 0.0
    %1605 = vmatprep.subr.mxu0 0.0
    %1606 = vmatpush2.msra.mxu0 0.0
    %1607 = vmatprep.subr.mxu0 0.0
    %1608 = vmatpush2.msra.mxu0 0.0
    %1609 = vmatprep.mubr.f32.mxu0 0.0
    %1610 = vmatmul.mubr.f32.gmra.mxu0 %v1534
    %v1611 = vpop.f32.mrf.mxu0
    %v1612 = vadd.f32 %v1532, %v1611
    %v1613 = vpop.f32.mrf.mxu0
    %1614 = vmatprep.mubr.f32.mxu0 0.0
    %1615 = vmatmul.mubr.f32.gmra.mxu0 %v1537
    %v1616 = vpop.f32.mrf.mxu0
    %v1617 = vadd.f32 %v1532, %v1616
    %v1618 = vpop.f32.mrf.mxu0
    %1619 = vmatprep.mubr.f32.mxu0 0.0
    %1620 = vmatmul.mubr.f32.gmra.mxu0 %v1540
    %v1621 = vpop.f32.mrf.mxu0
    %v1622 = vadd.f32 %v1532, %v1621
    %v1623 = vpop.f32.mrf.mxu0
    %1624 = vmatprep.mubr.f32.mxu0 0.0
    %1625 = vmatmul.mubr.f32.gmra.mxu0 %v1543
    %v1626 = vpop.f32.mrf.mxu0
    %v1627 = vadd.f32 %v1532, %v1626
    %v1628 = vpop.f32.mrf.mxu0
    %1629 = vdwg.mxu0
    %1634 = vrot.lane.b32.xlu0 %v1612, 112
    %v1635 = vpop.permute.xlu0 %1634
    %1636 = vrot.lane.b32.xlu0 %v1617, 112
    %v1637 = vpop.permute.xlu0 %1636
    %1638 = vrot.lane.b32.xlu0 %v1622, 112
    %v1639 = vpop.permute.xlu0 %1638
    %1640 = vrot.lane.b32.xlu0 %v1627, 112
    %v1641 = vpop.permute.xlu0 %1640
    %v1646 = vmul.f32 %v1612, 0.25
    %v1647 = vmul.f32 %v1617, 0.25
    %v1648 = vmul.f32 %v1622, 0.25
    %v1649 = vmul.f32 %v1627, 0.25
    %v1650 = vmul.f32 %v1635, 0.25
    %v1651 = vmul.f32 %v1637, 0.25
    %v1652 = vmul.f32 %v1639, 0.25
    %v1653 = vmul.f32 %v1641, 0.25
    %1654 = vrot.lane.b32.xlu0 %v1612, 96
    %v1655 = vpop.permute.xlu0 %1654
    %1656 = vrot.lane.b32.xlu0 %v1617, 96
    %v1657 = vpop.permute.xlu0 %1656
    %v1659 = vsel %vm232, %v1646, 0
    %v1662 = vsel %vm232, %v1647, 0
    %v1664 = vsel %vm232, %v1655, 0
    %v1666 = vsel %vm232, %v1657, 0
    %1668 = vmatprep.subr.mxu0 0.0
    %1669 = vmatpush1.xpose.msra.mxu0 0.0
    %1670 = vmatprep.subr.mxu0 0.0
    %1671 = vmatpush1.xpose.msra.mxu0 0.0
    %1672 = vmatprep.subr.mxu0 0.0
    %1673 = vmatpush1.xpose.msra.mxu0 0.0
    %1674 = vmatprep.subr.mxu0 0.0
    %1675 = vmatpush1.xpose.msra.mxu0 0.0
    %1676 = vmatprep.subr.mxu0 0.0
    %1677 = vmatpush1.xpose.msra.mxu0 0.0
    %1678 = vmatprep.subr.mxu0 0.0
    %1679 = vmatpush1.xpose.msra.mxu0 0.0
    %1680 = vmatprep.subr.mxu0 0.0
    %1681 = vmatpush1.xpose.msra.mxu0 0.0
    %1682 = vmatprep.subr.mxu0 0.0
    %1683 = vmatpush1.xpose.msra.mxu0 0.0
    %1684 = vmatprep.subr.mxu0 0.0
    %1685 = vmatpush1.xpose.msra.mxu0 0.0
    %1686 = vmatprep.subr.mxu0 0.0
    %1687 = vmatpush1.xpose.msra.mxu0 0.0
    %1688 = vmatprep.subr.mxu0 0.0
    %1689 = vmatpush1.xpose.msra.mxu0 0.0
    %1690 = vmatprep.subr.mxu0 0.0
    %1691 = vmatpush1.xpose.msra.mxu0 0.0
    %1692 = vmatprep.subr.mxu0 0.0
    %1693 = vmatpush1.xpose.msra.mxu0 0.0
    %1694 = vmatprep.subr.mxu0 0.0
    %1695 = vmatpush1.xpose.msra.mxu0 0.0
    %1696 = vmatprep.subr.mxu0 0.0
    %1697 = vmatpush1.xpose.msra.mxu0 %v1666
    %1698 = vmatprep.subr.mxu0 0.0
    %1699 = vmatpush1.xpose.msra.mxu0 %v1664
    %1700 = vmatprep.subr.mxu0 0.0
    %1701 = vmatpush2.xpose.msra.mxu0 0.0
    %1702 = vmatprep.subr.mxu0 0.0
    %1703 = vmatpush2.xpose.msra.mxu0 0.0
    %1704 = vmatprep.subr.mxu0 0.0
    %1705 = vmatpush2.xpose.msra.mxu0 0.0
    %1706 = vmatprep.subr.mxu0 0.0
    %1707 = vmatpush2.xpose.msra.mxu0 0.0
    %1708 = vmatprep.subr.mxu0 0.0
    %1709 = vmatpush2.xpose.msra.mxu0 0.0
    %1710 = vmatprep.subr.mxu0 0.0
    %1711 = vmatpush2.xpose.msra.mxu0 0.0
    %1712 = vmatprep.subr.mxu0 0.0
    %1713 = vmatpush2.xpose.msra.mxu0 0.0
    %1714 = vmatprep.subr.mxu0 0.0
    %1715 = vmatpush2.xpose.msra.mxu0 0.0
    %1716 = vmatprep.subr.mxu0 0.0
    %1717 = vmatpush2.xpose.msra.mxu0 0.0
    %1718 = vmatprep.subr.mxu0 0.0
    %1719 = vmatpush2.xpose.msra.mxu0 0.0
    %1720 = vmatprep.subr.mxu0 0.0
    %1721 = vmatpush2.xpose.msra.mxu0 0.0
    %1722 = vmatprep.subr.mxu0 0.0
    %1723 = vmatpush2.xpose.msra.mxu0 0.0
    %1724 = vmatprep.subr.mxu0 0.0
    %1725 = vmatpush2.xpose.msra.mxu0 0.0
    %1726 = vmatprep.subr.mxu0 0.0
    %1727 = vmatpush2.xpose.msra.mxu0 0.0
    %1728 = vmatprep.subr.mxu0 0.0
    %1729 = vmatpush2.xpose.msra.mxu0 0.0
    %1730 = vmatprep.subr.mxu0 0.0
    %1731 = vmatpush2.xpose.msra.mxu0 0.0
    %1732 = vmatprep.mubr.f32.mxu0 0.0
    %1733 = vmatmul.mubr.f32.gmra.mxu0 %v1659
    %v1734 = vpop.f32.mrf.mxu0
    %v1735 = vadd.f32 0.0, %v1734
    %v1736 = vpop.f32.mrf.mxu0
    %1737 = vmatprep.mubr.f32.mxu0 0.0
    %1738 = vmatmul.mubr.f32.gmra.mxu0 %v1662
    %v1739 = vpop.f32.mrf.mxu0
    %v1740 = vadd.f32 0.0, %v1739
    %v1741 = vpop.f32.mrf.mxu0
    %1742 = vdwg.mxu0
    %1743 = vrot.lane.b32.xlu0 %v1622, 96
    %v1744 = vpop.permute.xlu0 %1743
    %1745 = vrot.lane.b32.xlu0 %v1627, 96
    %v1746 = vpop.permute.xlu0 %1745
    %v1748 = vsel %vm232, %v1648, 0
    %v1751 = vsel %vm232, %v1649, 0
    %v1753 = vsel %vm232, %v1744, 0
    %v1755 = vsel %vm232, %v1746, 0
    %1757 = vmatprep.subr.mxu0 0.0
    %1758 = vmatpush1.xpose.msra.mxu0 0.0
    %1759 = vmatprep.subr.mxu0 0.0
    %1760 = vmatpush1.xpose.msra.mxu0 0.0
    %1761 = vmatprep.subr.mxu0 0.0
    %1762 = vmatpush1.xpose.msra.mxu0 0.0
    %1763 = vmatprep.subr.mxu0 0.0
    %1764 = vmatpush1.xpose.msra.mxu0 0.0
    %1765 = vmatprep.subr.mxu0 0.0
    %1766 = vmatpush1.xpose.msra.mxu0 0.0
    %1767 = vmatprep.subr.mxu0 0.0
    %1768 = vmatpush1.xpose.msra.mxu0 0.0
    %1769 = vmatprep.subr.mxu0 0.0
    %1770 = vmatpush1.xpose.msra.mxu0 0.0
    %1771 = vmatprep.subr.mxu0 0.0
    %1772 = vmatpush1.xpose.msra.mxu0 0.0
    %1773 = vmatprep.subr.mxu0 0.0
    %1774 = vmatpush1.xpose.msra.mxu0 0.0
    %1775 = vmatprep.subr.mxu0 0.0
    %1776 = vmatpush1.xpose.msra.mxu0 0.0
    %1777 = vmatprep.subr.mxu0 0.0
    %1778 = vmatpush1.xpose.msra.mxu0 0.0
    %1779 = vmatprep.subr.mxu0 0.0
    %1780 = vmatpush1.xpose.msra.mxu0 0.0
    %1781 = vmatprep.subr.mxu0 0.0
    %1782 = vmatpush1.xpose.msra.mxu0 0.0
    %1783 = vmatprep.subr.mxu0 0.0
    %1784 = vmatpush1.xpose.msra.mxu0 0.0
    %1785 = vmatprep.subr.mxu0 0.0
    %1786 = vmatpush1.xpose.msra.mxu0 %v1755
    %1787 = vmatprep.subr.mxu0 0.0
    %1788 = vmatpush1.xpose.msra.mxu0 %v1753
    %1789 = vmatprep.subr.mxu0 0.0
    %1790 = vmatpush2.xpose.msra.mxu0 0.0
    %1791 = vmatprep.subr.mxu0 0.0
    %1792 = vmatpush2.xpose.msra.mxu0 0.0
    %1793 = vmatprep.subr.mxu0 0.0
    %1794 = vmatpush2.xpose.msra.mxu0 0.0
    %1795 = vmatprep.subr.mxu0 0.0
    %1796 = vmatpush2.xpose.msra.mxu0 0.0
    %1797 = vmatprep.subr.mxu0 0.0
    %1798 = vmatpush2.xpose.msra.mxu0 0.0
    %1799 = vmatprep.subr.mxu0 0.0
    %1800 = vmatpush2.xpose.msra.mxu0 0.0
    %1801 = vmatprep.subr.mxu0 0.0
    %1802 = vmatpush2.xpose.msra.mxu0 0.0
    %1803 = vmatprep.subr.mxu0 0.0
    %1804 = vmatpush2.xpose.msra.mxu0 0.0
    %1805 = vmatprep.subr.mxu0 0.0
    %1806 = vmatpush2.xpose.msra.mxu0 0.0
    %1807 = vmatprep.subr.mxu0 0.0
    %1808 = vmatpush2.xpose.msra.mxu0 0.0
    %1809 = vmatprep.subr.mxu0 0.0
    %1810 = vmatpush2.xpose.msra.mxu0 0.0
    %1811 = vmatprep.subr.mxu0 0.0
    %1812 = vmatpush2.xpose.msra.mxu0 0.0
    %1813 = vmatprep.subr.mxu0 0.0
    %1814 = vmatpush2.xpose.msra.mxu0 0.0
    %1815 = vmatprep.subr.mxu0 0.0
    %1816 = vmatpush2.xpose.msra.mxu0 0.0
    %1817 = vmatprep.subr.mxu0 0.0
    %1818 = vmatpush2.xpose.msra.mxu0 0.0
    %1819 = vmatprep.subr.mxu0 0.0
    %1820 = vmatpush2.xpose.msra.mxu0 0.0
    %1821 = vmatprep.mubr.f32.mxu0 0.0
    %1822 = vmatmul.mubr.f32.gmra.mxu0 %v1748
    %v1823 = vpop.f32.mrf.mxu0
    %v1824 = vadd.f32 0.0, %v1823
    %v1825 = vpop.f32.mrf.mxu0
    %1826 = vmatprep.mubr.f32.mxu0 0.0
    %1827 = vmatmul.mubr.f32.gmra.mxu0 %v1751
    %v1828 = vpop.f32.mrf.mxu0
    %v1829 = vadd.f32 0.0, %v1828
    %v1830 = vpop.f32.mrf.mxu0
    %1831 = vdwg.mxu0
    %1832 = vrot.lane.b32.xlu0 %v1635, 96
    %v1833 = vpop.permute.xlu0 %1832
    %1834 = vrot.lane.b32.xlu0 %v1637, 96
    %v1835 = vpop.permute.xlu0 %1834
    %v1837 = vsel %vm232, %v1650, 0
    %v1840 = vsel %vm232, %v1651, 0
    %v1842 = vsel %vm232, %v1833, 0
    %v1844 = vsel %vm232, %v1835, 0
    %1846 = vmatprep.subr.mxu0 0.0
    %1847 = vmatpush1.xpose.msra.mxu0 0.0
    %1848 = vmatprep.subr.mxu0 0.0
    %1849 = vmatpush1.xpose.msra.mxu0 0.0
    %1850 = vmatprep.subr.mxu0 0.0
    %1851 = vmatpush1.xpose.msra.mxu0 0.0
    %1852 = vmatprep.subr.mxu0 0.0
    %1853 = vmatpush1.xpose.msra.mxu0 0.0
    %1854 = vmatprep.subr.mxu0 0.0
    %1855 = vmatpush1.xpose.msra.mxu0 0.0
    %1856 = vmatprep.subr.mxu0 0.0
    %1857 = vmatpush1.xpose.msra.mxu0 0.0
    %1858 = vmatprep.subr.mxu0 0.0
    %1859 = vmatpush1.xpose.msra.mxu0 0.0
    %1860 = vmatprep.subr.mxu0 0.0
    %1861 = vmatpush1.xpose.msra.mxu0 0.0
    %1862 = vmatprep.subr.mxu0 0.0
    %1863 = vmatpush1.xpose.msra.mxu0 0.0
    %1864 = vmatprep.subr.mxu0 0.0
    %1865 = vmatpush1.xpose.msra.mxu0 0.0
    %1866 = vmatprep.subr.mxu0 0.0
    %1867 = vmatpush1.xpose.msra.mxu0 0.0
    %1868 = vmatprep.subr.mxu0 0.0
    %1869 = vmatpush1.xpose.msra.mxu0 0.0
    %1870 = vmatprep.subr.mxu0 0.0
    %1871 = vmatpush1.xpose.msra.mxu0 0.0
    %1872 = vmatprep.subr.mxu0 0.0
    %1873 = vmatpush1.xpose.msra.mxu0 0.0
    %1874 = vmatprep.subr.mxu0 0.0
    %1875 = vmatpush1.xpose.msra.mxu0 %v1844
    %1876 = vmatprep.subr.mxu0 0.0
    %1877 = vmatpush1.xpose.msra.mxu0 %v1842
    %1878 = vmatprep.subr.mxu0 0.0
    %1879 = vmatpush2.xpose.msra.mxu0 0.0
    %1880 = vmatprep.subr.mxu0 0.0
    %1881 = vmatpush2.xpose.msra.mxu0 0.0
    %1882 = vmatprep.subr.mxu0 0.0
    %1883 = vmatpush2.xpose.msra.mxu0 0.0
    %1884 = vmatprep.subr.mxu0 0.0
    %1885 = vmatpush2.xpose.msra.mxu0 0.0
    %1886 = vmatprep.subr.mxu0 0.0
    %1887 = vmatpush2.xpose.msra.mxu0 0.0
    %1888 = vmatprep.subr.mxu0 0.0
    %1889 = vmatpush2.xpose.msra.mxu0 0.0
    %1890 = vmatprep.subr.mxu0 0.0
    %1891 = vmatpush2.xpose.msra.mxu0 0.0
    %1892 = vmatprep.subr.mxu0 0.0
    %1893 = vmatpush2.xpose.msra.mxu0 0.0
    %1894 = vmatprep.subr.mxu0 0.0
    %1895 = vmatpush2.xpose.msra.mxu0 0.0
    %1896 = vmatprep.subr.mxu0 0.0
    %1897 = vmatpush2.xpose.msra.mxu0 0.0
    %1898 = vmatprep.subr.mxu0 0.0
    %1899 = vmatpush2.xpose.msra.mxu0 0.0
    %1900 = vmatprep.subr.mxu0 0.0
    %1901 = vmatpush2.xpose.msra.mxu0 0.0
    %1902 = vmatprep.subr.mxu0 0.0
    %1903 = vmatpush2.xpose.msra.mxu0 0.0
    %1904 = vmatprep.subr.mxu0 0.0
    %1905 = vmatpush2.xpose.msra.mxu0 0.0
    %1906 = vmatprep.subr.mxu0 0.0
    %1907 = vmatpush2.xpose.msra.mxu0 0.0
    %1908 = vmatprep.subr.mxu0 0.0
    %1909 = vmatpush2.xpose.msra.mxu0 0.0
    %1910 = vmatprep.mubr.f32.mxu0 0.0
    %1911 = vmatmul.mubr.f32.gmra.mxu0 %v1837
    %v1912 = vpop.f32.mrf.mxu0
    %v1913 = vadd.f32 0.0, %v1912
    %v1914 = vpop.f32.mrf.mxu0
    %1915 = vmatprep.mubr.f32.mxu0 0.0
    %1916 = vmatmul.mubr.f32.gmra.mxu0 %v1840
    %v1917 = vpop.f32.mrf.mxu0
    %v1918 = vadd.f32 0.0, %v1917
    %v1919 = vpop.f32.mrf.mxu0
    %1920 = vdwg.mxu0
    %1921 = vrot.lane.b32.xlu0 %v1639, 96
    %v1922 = vpop.permute.xlu0 %1921
    %1923 = vrot.lane.b32.xlu0 %v1641, 96
    %v1924 = vpop.permute.xlu0 %1923
    %v1926 = vsel %vm232, %v1652, 0
    %v1929 = vsel %vm232, %v1653, 0
    %v1931 = vsel %vm232, %v1922, 0
    %v1933 = vsel %vm232, %v1924, 0
    %1935 = vmatprep.subr.mxu0 0.0
    %1936 = vmatpush1.xpose.msra.mxu0 0.0
    %1937 = vmatprep.subr.mxu0 0.0
    %1938 = vmatpush1.xpose.msra.mxu0 0.0
    %1939 = vmatprep.subr.mxu0 0.0
    %1940 = vmatpush1.xpose.msra.mxu0 0.0
    %1941 = vmatprep.subr.mxu0 0.0
    %1942 = vmatpush1.xpose.msra.mxu0 0.0
    %1943 = vmatprep.subr.mxu0 0.0
    %1944 = vmatpush1.xpose.msra.mxu0 0.0
    %1945 = vmatprep.subr.mxu0 0.0
    %1946 = vmatpush1.xpose.msra.mxu0 0.0
    %1947 = vmatprep.subr.mxu0 0.0
    %1948 = vmatpush1.xpose.msra.mxu0 0.0
    %1949 = vmatprep.subr.mxu0 0.0
    %1950 = vmatpush1.xpose.msra.mxu0 0.0
    %1951 = vmatprep.subr.mxu0 0.0
    %1952 = vmatpush1.xpose.msra.mxu0 0.0
    %1953 = vmatprep.subr.mxu0 0.0
    %1954 = vmatpush1.xpose.msra.mxu0 0.0
    %1955 = vmatprep.subr.mxu0 0.0
    %1956 = vmatpush1.xpose.msra.mxu0 0.0
    %1957 = vmatprep.subr.mxu0 0.0
    %1958 = vmatpush1.xpose.msra.mxu0 0.0
    %1959 = vmatprep.subr.mxu0 0.0
    %1960 = vmatpush1.xpose.msra.mxu0 0.0
    %1961 = vmatprep.subr.mxu0 0.0
    %1962 = vmatpush1.xpose.msra.mxu0 0.0
    %1963 = vmatprep.subr.mxu0 0.0
    %1964 = vmatpush1.xpose.msra.mxu0 %v1933
    %1965 = vmatprep.subr.mxu0 0.0
    %1966 = vmatpush1.xpose.msra.mxu0 %v1931
    %1967 = vmatprep.subr.mxu0 0.0
    %1968 = vmatpush2.xpose.msra.mxu0 0.0
    %1969 = vmatprep.subr.mxu0 0.0
    %1970 = vmatpush2.xpose.msra.mxu0 0.0
    %1971 = vmatprep.subr.mxu0 0.0
    %1972 = vmatpush2.xpose.msra.mxu0 0.0
    %1973 = vmatprep.subr.mxu0 0.0
    %1974 = vmatpush2.xpose.msra.mxu0 0.0
    %1975 = vmatprep.subr.mxu0 0.0
    %1976 = vmatpush2.xpose.msra.mxu0 0.0
    %1977 = vmatprep.subr.mxu0 0.0
    %1978 = vmatpush2.xpose.msra.mxu0 0.0
    %1979 = vmatprep.subr.mxu0 0.0
    %1980 = vmatpush2.xpose.msra.mxu0 0.0
    %1981 = vmatprep.subr.mxu0 0.0
    %1982 = vmatpush2.xpose.msra.mxu0 0.0
    %1983 = vmatprep.subr.mxu0 0.0
    %1984 = vmatpush2.xpose.msra.mxu0 0.0
    %1985 = vmatprep.subr.mxu0 0.0
    %1986 = vmatpush2.xpose.msra.mxu0 0.0
    %1987 = vmatprep.subr.mxu0 0.0
    %1988 = vmatpush2.xpose.msra.mxu0 0.0
    %1989 = vmatprep.subr.mxu0 0.0
    %1990 = vmatpush2.xpose.msra.mxu0 0.0
    %1991 = vmatprep.subr.mxu0 0.0
    %1992 = vmatpush2.xpose.msra.mxu0 0.0
    %1993 = vmatprep.subr.mxu0 0.0
    %1994 = vmatpush2.xpose.msra.mxu0 0.0
    %1995 = vmatprep.subr.mxu0 0.0
    %1996 = vmatpush2.xpose.msra.mxu0 0.0
    %1997 = vmatprep.subr.mxu0 0.0
    %1998 = vmatpush2.xpose.msra.mxu0 0.0
    %1999 = vmatprep.mubr.f32.mxu0 0.0
    %2000 = vmatmul.mubr.f32.gmra.mxu0 %v1926
    %v2001 = vpop.f32.mrf.mxu0
    %v2002 = vadd.f32 0.0, %v2001
    %v2003 = vpop.f32.mrf.mxu0
    %2004 = vmatprep.mubr.f32.mxu0 0.0
    %2005 = vmatmul.mubr.f32.gmra.mxu0 %v1929
    %v2006 = vpop.f32.mrf.mxu0
    %v2007 = vadd.f32 0.0, %v2006
    %v2008 = vpop.f32.mrf.mxu0
    %2009 = vdwg.mxu0
    %v2010 = vsel %vm587, %v1735, -1e+30
    %v2011 = vsel %vm588, %v1740, -1e+30
    %v2012 = vsel %vm587, %v1824, -1e+30
    %v2013 = vsel %vm588, %v1829, -1e+30
    %v2014 = vsel %vm587, %v1913, -1e+30
    %v2015 = vsel %vm588, %v1918, -1e+30
    %v2016 = vsel %vm587, %v2002, -1e+30
    %v2017 = vsel %vm588, %v2007, -1e+30
    %v2018 = vsel %vm232, %v2010, -inf
    %2019 = vmax.xlane.f32.xlu0 %v2018
    %v2020 = vpop.xlane.xlu0 %2019
    %v2021 = vsel %vm232, %v2011, -inf
    %2022 = vmax.xlane.f32.xlu0 %v2021
    %v2023 = vpop.xlane.xlu0 %2022
    %v2024 = vsel %vm232, %v2012, -inf
    %2025 = vmax.xlane.f32.xlu0 %v2024
    %v2026 = vpop.xlane.xlu0 %2025
    %v2027 = vsel %vm232, %v2013, -inf
    %2028 = vmax.xlane.f32.xlu0 %v2027
    %v2029 = vpop.xlane.xlu0 %2028
    %v2030 = vsel %vm232, %v2014, -inf
    %2031 = vmax.xlane.f32.xlu0 %v2030
    %v2032 = vpop.xlane.xlu0 %2031
    %v2033 = vsel %vm232, %v2015, -inf
    %2034 = vmax.xlane.f32.xlu0 %v2033
    %v2035 = vpop.xlane.xlu0 %2034
    %v2036 = vsel %vm232, %v2016, -inf
    %2037 = vmax.xlane.f32.xlu0 %v2036
    %v2038 = vpop.xlane.xlu0 %2037
    %v2039 = vsel %vm232, %v2017, -inf
    %2040 = vmax.xlane.f32.xlu0 %v2039
    %v2041 = vpop.xlane.xlu0 %2040
    %v2042 = vsub.f32 %v2010, %v2020
    %v2043 = vsub.f32 %v2011, %v2023
    %v2044 = vsub.f32 %v2012, %v2026
    %v2045 = vsub.f32 %v2013, %v2029
    %v2046 = vsub.f32 %v2014, %v2032
    %v2047 = vsub.f32 %v2015, %v2035
    %v2048 = vsub.f32 %v2016, %v2038
    %v2049 = vsub.f32 %v2017, %v2041
    %v2050 = vmul.f32 %v2042, 1.442695
    %v2051 = vpow.pop %v2050
    %v2052 = vmul.f32 %v2043, 1.442695
    %v2053 = vpow.pop %v2052
    %v2054 = vmul.f32 %v2044, 1.442695
    %v2055 = vpow.pop %v2054
    %v2056 = vmul.f32 %v2045, 1.442695
    %v2057 = vpow.pop %v2056
    %v2058 = vmul.f32 %v2046, 1.442695
    %v2059 = vpow.pop %v2058
    %v2060 = vmul.f32 %v2047, 1.442695
    %v2061 = vpow.pop %v2060
    %v2062 = vmul.f32 %v2048, 1.442695
    %v2063 = vpow.pop %v2062
    %v2064 = vmul.f32 %v2049, 1.442695
    %v2065 = vpow.pop %v2064
    %v2066 = vsel %vm232, %v2051, 0.0
    %2067 = vadd.xlane.f32.xlu0 %v2066
    %v2068 = vpop.xlane.xlu0 %2067
    %v2069 = vsel %vm232, %v2053, 0.0
    %2070 = vadd.xlane.f32.xlu0 %v2069
    %v2071 = vpop.xlane.xlu0 %2070
    %v2072 = vsel %vm232, %v2055, 0.0
    %2073 = vadd.xlane.f32.xlu0 %v2072
    %v2074 = vpop.xlane.xlu0 %2073
    %v2075 = vsel %vm232, %v2057, 0.0
    %2076 = vadd.xlane.f32.xlu0 %v2075
    %v2077 = vpop.xlane.xlu0 %2076
    %v2078 = vsel %vm232, %v2059, 0.0
    %2079 = vadd.xlane.f32.xlu0 %v2078
    %v2080 = vpop.xlane.xlu0 %2079
    %v2081 = vsel %vm232, %v2061, 0.0
    %2082 = vadd.xlane.f32.xlu0 %v2081
    %v2083 = vpop.xlane.xlu0 %2082
    %v2084 = vsel %vm232, %v2063, 0.0
    %2085 = vadd.xlane.f32.xlu0 %v2084
    %v2086 = vpop.xlane.xlu0 %2085
    %v2087 = vsel %vm232, %v2065, 0.0
    %2088 = vadd.xlane.f32.xlu0 %v2087
    %v2089 = vpop.xlane.xlu0 %2088
    %v2090 = vrcp.pop %v2068
    %v2091 = vrcp.pop %v2071
    %v2092 = vrcp.pop %v2074
    %v2093 = vrcp.pop %v2077
    %v2094 = vrcp.pop %v2080
    %v2095 = vrcp.pop %v2083
    %v2096 = vrcp.pop %v2086
    %v2097 = vrcp.pop %v2089
    %v2098 = vmul.f32 %v2051, %v2090
    %v2099 = vmul.f32 %v2053, %v2091
    %v2100 = vmul.f32 %v2055, %v2092
    %v2101 = vmul.f32 %v2057, %v2093
    %v2102 = vmul.f32 %v2059, %v2094
    %v2103 = vmul.f32 %v2061, %v2095
    %v2104 = vmul.f32 %v2063, %v2096
    %v2105 = vmul.f32 %v2065, %v2097
    %2106 = vrot.lane.b32.xlu0 %v1612, 64
    %v2107 = vpop.permute.xlu0 %2106
    %2108 = vrot.lane.b32.xlu0 %v1617, 64
    %v2109 = vpop.permute.xlu0 %2108
    %v2113 = vsel %vm232, %v2098, 0
    %v2116 = vsel %vm232, %v2099, 0
    %2118 = vmatprep.subr.mxu0 0.0
    %2119 = vmatpush1.msra.mxu0 0.0
    %2120 = vmatprep.subr.mxu0 0.0
    %2121 = vmatpush1.msra.mxu0 0.0
    %2122 = vmatprep.subr.mxu0 0.0
    %2123 = vmatpush1.msra.mxu0 0.0
    %2124 = vmatprep.subr.mxu0 0.0
    %2125 = vmatpush1.msra.mxu0 0.0
    %2126 = vmatprep.subr.mxu0 0.0
    %2127 = vmatpush1.msra.mxu0 0.0
    %2128 = vmatprep.subr.mxu0 0.0
    %2129 = vmatpush1.msra.mxu0 0.0
    %2130 = vmatprep.subr.mxu0 0.0
    %2131 = vmatpush1.msra.mxu0 0.0
    %2132 = vmatprep.subr.mxu0 0.0
    %2133 = vmatpush1.msra.mxu0 0.0
    %2134 = vmatprep.subr.mxu0 0.0
    %2135 = vmatpush1.msra.mxu0 0.0
    %2136 = vmatprep.subr.mxu0 0.0
    %2137 = vmatpush1.msra.mxu0 0.0
    %2138 = vmatprep.subr.mxu0 0.0
    %2139 = vmatpush1.msra.mxu0 0.0
    %2140 = vmatprep.subr.mxu0 0.0
    %2141 = vmatpush1.msra.mxu0 0.0
    %2142 = vmatprep.subr.mxu0 0.0
    %2143 = vmatpush1.msra.mxu0 0.0
    %2144 = vmatprep.subr.mxu0 0.0
    %2145 = vmatpush1.msra.mxu0 0.0
    %2146 = vmatprep.subr.mxu0 0.0
    %2147 = vmatpush1.msra.mxu0 %v2109
    %2148 = vmatprep.subr.mxu0 0.0
    %2149 = vmatpush1.msra.mxu0 %v2107
    %2150 = vmatprep.subr.mxu0 0.0
    %2151 = vmatpush2.msra.mxu0 0.0
    %2152 = vmatprep.subr.mxu0 0.0
    %2153 = vmatpush2.msra.mxu0 0.0
    %2154 = vmatprep.subr.mxu0 0.0
    %2155 = vmatpush2.msra.mxu0 0.0
    %2156 = vmatprep.subr.mxu0 0.0
    %2157 = vmatpush2.msra.mxu0 0.0
    %2158 = vmatprep.subr.mxu0 0.0
    %2159 = vmatpush2.msra.mxu0 0.0
    %2160 = vmatprep.subr.mxu0 0.0
    %2161 = vmatpush2.msra.mxu0 0.0
    %2162 = vmatprep.subr.mxu0 0.0
    %2163 = vmatpush2.msra.mxu0 0.0
    %2164 = vmatprep.subr.mxu0 0.0
    %2165 = vmatpush2.msra.mxu0 0.0
    %2166 = vmatprep.subr.mxu0 0.0
    %2167 = vmatpush2.msra.mxu0 0.0
    %2168 = vmatprep.subr.mxu0 0.0
    %2169 = vmatpush2.msra.mxu0 0.0
    %2170 = vmatprep.subr.mxu0 0.0
    %2171 = vmatpush2.msra.mxu0 0.0
    %2172 = vmatprep.subr.mxu0 0.0
    %2173 = vmatpush2.msra.mxu0 0.0
    %2174 = vmatprep.subr.mxu0 0.0
    %2175 = vmatpush2.msra.mxu0 0.0
    %2176 = vmatprep.subr.mxu0 0.0
    %2177 = vmatpush2.msra.mxu0 0.0
    %2178 = vmatprep.subr.mxu0 0.0
    %2179 = vmatpush2.msra.mxu0 0.0
    %2180 = vmatprep.subr.mxu0 0.0
    %2181 = vmatpush2.msra.mxu0 0.0
    %2182 = vmatprep.mubr.f32.mxu0 0.0
    %2183 = vmatmul.mubr.f32.gmra.mxu0 %v2113
    %v2184 = vpop.f32.mrf.mxu0
    %v2185 = vadd.f32 0.0, %v2184
    %v2186 = vpop.f32.mrf.mxu0
    %2187 = vmatprep.mubr.f32.mxu0 0.0
    %2188 = vmatmul.mubr.f32.gmra.mxu0 %v2116
    %v2189 = vpop.f32.mrf.mxu0
    %v2190 = vadd.f32 0.0, %v2189
    %v2191 = vpop.f32.mrf.mxu0
    %2192 = vdwg.mxu0
    %2193 = vrot.lane.b32.xlu0 %v1622, 64
    %v2194 = vpop.permute.xlu0 %2193
    %2195 = vrot.lane.b32.xlu0 %v1627, 64
    %v2196 = vpop.permute.xlu0 %2195
    %v2200 = vsel %vm232, %v2100, 0
    %v2203 = vsel %vm232, %v2101, 0
    %2205 = vmatprep.subr.mxu0 0.0
    %2206 = vmatpush1.msra.mxu0 0.0
    %2207 = vmatprep.subr.mxu0 0.0
    %2208 = vmatpush1.msra.mxu0 0.0
    %2209 = vmatprep.subr.mxu0 0.0
    %2210 = vmatpush1.msra.mxu0 0.0
    %2211 = vmatprep.subr.mxu0 0.0
    %2212 = vmatpush1.msra.mxu0 0.0
    %2213 = vmatprep.subr.mxu0 0.0
    %2214 = vmatpush1.msra.mxu0 0.0
    %2215 = vmatprep.subr.mxu0 0.0
    %2216 = vmatpush1.msra.mxu0 0.0
    %2217 = vmatprep.subr.mxu0 0.0
    %2218 = vmatpush1.msra.mxu0 0.0
    %2219 = vmatprep.subr.mxu0 0.0
    %2220 = vmatpush1.msra.mxu0 0.0
    %2221 = vmatprep.subr.mxu0 0.0
    %2222 = vmatpush1.msra.mxu0 0.0
    %2223 = vmatprep.subr.mxu0 0.0
    %2224 = vmatpush1.msra.mxu0 0.0
    %2225 = vmatprep.subr.mxu0 0.0
    %2226 = vmatpush1.msra.mxu0 0.0
    %2227 = vmatprep.subr.mxu0 0.0
    %2228 = vmatpush1.msra.mxu0 0.0
    %2229 = vmatprep.subr.mxu0 0.0
    %2230 = vmatpush1.msra.mxu0 0.0
    %2231 = vmatprep.subr.mxu0 0.0
    %2232 = vmatpush1.msra.mxu0 0.0
    %2233 = vmatprep.subr.mxu0 0.0
    %2234 = vmatpush1.msra.mxu0 %v2196
    %2235 = vmatprep.subr.mxu0 0.0
    %2236 = vmatpush1.msra.mxu0 %v2194
    %2237 = vmatprep.subr.mxu0 0.0
    %2238 = vmatpush2.msra.mxu0 0.0
    %2239 = vmatprep.subr.mxu0 0.0
    %2240 = vmatpush2.msra.mxu0 0.0
    %2241 = vmatprep.subr.mxu0 0.0
    %2242 = vmatpush2.msra.mxu0 0.0
    %2243 = vmatprep.subr.mxu0 0.0
    %2244 = vmatpush2.msra.mxu0 0.0
    %2245 = vmatprep.subr.mxu0 0.0
    %2246 = vmatpush2.msra.mxu0 0.0
    %2247 = vmatprep.subr.mxu0 0.0
    %2248 = vmatpush2.msra.mxu0 0.0
    %2249 = vmatprep.subr.mxu0 0.0
    %2250 = vmatpush2.msra.mxu0 0.0
    %2251 = vmatprep.subr.mxu0 0.0
    %2252 = vmatpush2.msra.mxu0 0.0
    %2253 = vmatprep.subr.mxu0 0.0
    %2254 = vmatpush2.msra.mxu0 0.0
    %2255 = vmatprep.subr.mxu0 0.0
    %2256 = vmatpush2.msra.mxu0 0.0
    %2257 = vmatprep.subr.mxu0 0.0
    %2258 = vmatpush2.msra.mxu0 0.0
    %2259 = vmatprep.subr.mxu0 0.0
    %2260 = vmatpush2.msra.mxu0 0.0
    %2261 = vmatprep.subr.mxu0 0.0
    %2262 = vmatpush2.msra.mxu0 0.0
    %2263 = vmatprep.subr.mxu0 0.0
    %2264 = vmatpush2.msra.mxu0 0.0
    %2265 = vmatprep.subr.mxu0 0.0
    %2266 = vmatpush2.msra.mxu0 0.0
    %2267 = vmatprep.subr.mxu0 0.0
    %2268 = vmatpush2.msra.mxu0 0.0
    %2269 = vmatprep.mubr.f32.mxu0 0.0
    %2270 = vmatmul.mubr.f32.gmra.mxu0 %v2200
    %v2271 = vpop.f32.mrf.mxu0
    %v2272 = vadd.f32 0.0, %v2271
    %v2273 = vpop.f32.mrf.mxu0
    %2274 = vmatprep.mubr.f32.mxu0 0.0
    %2275 = vmatmul.mubr.f32.gmra.mxu0 %v2203
    %v2276 = vpop.f32.mrf.mxu0
    %v2277 = vadd.f32 0.0, %v2276
    %v2278 = vpop.f32.mrf.mxu0
    %2279 = vdwg.mxu0
    %2280 = vrot.lane.b32.xlu0 %v1635, 64
    %v2281 = vpop.permute.xlu0 %2280
    %2282 = vrot.lane.b32.xlu0 %v1637, 64
    %v2283 = vpop.permute.xlu0 %2282
    %v2287 = vsel %vm232, %v2102, 0
    %v2290 = vsel %vm232, %v2103, 0
    %2292 = vmatprep.subr.mxu0 0.0
    %2293 = vmatpush1.msra.mxu0 0.0
    %2294 = vmatprep.subr.mxu0 0.0
    %2295 = vmatpush1.msra.mxu0 0.0
    %2296 = vmatprep.subr.mxu0 0.0
    %2297 = vmatpush1.msra.mxu0 0.0
    %2298 = vmatprep.subr.mxu0 0.0
    %2299 = vmatpush1.msra.mxu0 0.0
    %2300 = vmatprep.subr.mxu0 0.0
    %2301 = vmatpush1.msra.mxu0 0.0
    %2302 = vmatprep.subr.mxu0 0.0
    %2303 = vmatpush1.msra.mxu0 0.0
    %2304 = vmatprep.subr.mxu0 0.0
    %2305 = vmatpush1.msra.mxu0 0.0
    %2306 = vmatprep.subr.mxu0 0.0
    %2307 = vmatpush1.msra.mxu0 0.0
    %2308 = vmatprep.subr.mxu0 0.0
    %2309 = vmatpush1.msra.mxu0 0.0
    %2310 = vmatprep.subr.mxu0 0.0
    %2311 = vmatpush1.msra.mxu0 0.0
    %2312 = vmatprep.subr.mxu0 0.0
    %2313 = vmatpush1.msra.mxu0 0.0
    %2314 = vmatprep.subr.mxu0 0.0
    %2315 = vmatpush1.msra.mxu0 0.0
    %2316 = vmatprep.subr.mxu0 0.0
    %2317 = vmatpush1.msra.mxu0 0.0
    %2318 = vmatprep.subr.mxu0 0.0
    %2319 = vmatpush1.msra.mxu0 0.0
    %2320 = vmatprep.subr.mxu0 0.0
    %2321 = vmatpush1.msra.mxu0 %v2283
    %2322 = vmatprep.subr.mxu0 0.0
    %2323 = vmatpush1.msra.mxu0 %v2281
    %2324 = vmatprep.subr.mxu0 0.0
    %2325 = vmatpush2.msra.mxu0 0.0
    %2326 = vmatprep.subr.mxu0 0.0
    %2327 = vmatpush2.msra.mxu0 0.0
    %2328 = vmatprep.subr.mxu0 0.0
    %2329 = vmatpush2.msra.mxu0 0.0
    %2330 = vmatprep.subr.mxu0 0.0
    %2331 = vmatpush2.msra.mxu0 0.0
    %2332 = vmatprep.subr.mxu0 0.0
    %2333 = vmatpush2.msra.mxu0 0.0
    %2334 = vmatprep.subr.mxu0 0.0
    %2335 = vmatpush2.msra.mxu0 0.0
    %2336 = vmatprep.subr.mxu0 0.0
    %2337 = vmatpush2.msra.mxu0 0.0
    %2338 = vmatprep.subr.mxu0 0.0
    %2339 = vmatpush2.msra.mxu0 0.0
    %2340 = vmatprep.subr.mxu0 0.0
    %2341 = vmatpush2.msra.mxu0 0.0
    %2342 = vmatprep.subr.mxu0 0.0
    %2343 = vmatpush2.msra.mxu0 0.0
    %2344 = vmatprep.subr.mxu0 0.0
    %2345 = vmatpush2.msra.mxu0 0.0
    %2346 = vmatprep.subr.mxu0 0.0
    %2347 = vmatpush2.msra.mxu0 0.0
    %2348 = vmatprep.subr.mxu0 0.0
    %2349 = vmatpush2.msra.mxu0 0.0
    %2350 = vmatprep.subr.mxu0 0.0
    %2351 = vmatpush2.msra.mxu0 0.0
    %2352 = vmatprep.subr.mxu0 0.0
    %2353 = vmatpush2.msra.mxu0 0.0
    %2354 = vmatprep.subr.mxu0 0.0
    %2355 = vmatpush2.msra.mxu0 0.0
    %2356 = vmatprep.mubr.f32.mxu0 0.0
    %2357 = vmatmul.mubr.f32.gmra.mxu0 %v2287
    %v2358 = vpop.f32.mrf.mxu0
    %v2359 = vadd.f32 0.0, %v2358
    %v2360 = vpop.f32.mrf.mxu0
    %2361 = vmatprep.mubr.f32.mxu0 0.0
    %2362 = vmatmul.mubr.f32.gmra.mxu0 %v2290
    %v2363 = vpop.f32.mrf.mxu0
    %v2364 = vadd.f32 0.0, %v2363
    %v2365 = vpop.f32.mrf.mxu0
    %2366 = vdwg.mxu0
    %2367 = vrot.lane.b32.xlu0 %v1639, 64
    %v2368 = vpop.permute.xlu0 %2367
    %2369 = vrot.lane.b32.xlu0 %v1641, 64
    %v2370 = vpop.permute.xlu0 %2369
    %v2374 = vsel %vm232, %v2104, 0
    %v2377 = vsel %vm232, %v2105, 0
    %2379 = vmatprep.subr.mxu0 0.0
    %2380 = vmatpush1.msra.mxu0 0.0
    %2381 = vmatprep.subr.mxu0 0.0
    %2382 = vmatpush1.msra.mxu0 0.0
    %2383 = vmatprep.subr.mxu0 0.0
    %2384 = vmatpush1.msra.mxu0 0.0
    %2385 = vmatprep.subr.mxu0 0.0
    %2386 = vmatpush1.msra.mxu0 0.0
    %2387 = vmatprep.subr.mxu0 0.0
    %2388 = vmatpush1.msra.mxu0 0.0
    %2389 = vmatprep.subr.mxu0 0.0
    %2390 = vmatpush1.msra.mxu0 0.0
    %2391 = vmatprep.subr.mxu0 0.0
    %2392 = vmatpush1.msra.mxu0 0.0
    %2393 = vmatprep.subr.mxu0 0.0
    %2394 = vmatpush1.msra.mxu0 0.0
    %2395 = vmatprep.subr.mxu0 0.0
    %2396 = vmatpush1.msra.mxu0 0.0
    %2397 = vmatprep.subr.mxu0 0.0
    %2398 = vmatpush1.msra.mxu0 0.0
    %2399 = vmatprep.subr.mxu0 0.0
    %2400 = vmatpush1.msra.mxu0 0.0
    %2401 = vmatprep.subr.mxu0 0.0
    %2402 = vmatpush1.msra.mxu0 0.0
    %2403 = vmatprep.subr.mxu0 0.0
    %2404 = vmatpush1.msra.mxu0 0.0
    %2405 = vmatprep.subr.mxu0 0.0
    %2406 = vmatpush1.msra.mxu0 0.0
    %2407 = vmatprep.subr.mxu0 0.0
    %2408 = vmatpush1.msra.mxu0 %v2370
    %2409 = vmatprep.subr.mxu0 0.0
    %2410 = vmatpush1.msra.mxu0 %v2368
    %2411 = vmatprep.subr.mxu0 0.0
    %2412 = vmatpush2.msra.mxu0 0.0
    %2413 = vmatprep.subr.mxu0 0.0
    %2414 = vmatpush2.msra.mxu0 0.0
    %2415 = vmatprep.subr.mxu0 0.0
    %2416 = vmatpush2.msra.mxu0 0.0
    %2417 = vmatprep.subr.mxu0 0.0
    %2418 = vmatpush2.msra.mxu0 0.0
    %2419 = vmatprep.subr.mxu0 0.0
    %2420 = vmatpush2.msra.mxu0 0.0
    %2421 = vmatprep.subr.mxu0 0.0
    %2422 = vmatpush2.msra.mxu0 0.0
    %2423 = vmatprep.subr.mxu0 0.0
    %2424 = vmatpush2.msra.mxu0 0.0
    %2425 = vmatprep.subr.mxu0 0.0
    %2426 = vmatpush2.msra.mxu0 0.0
    %2427 = vmatprep.subr.mxu0 0.0
    %2428 = vmatpush2.msra.mxu0 0.0
    %2429 = vmatprep.subr.mxu0 0.0
    %2430 = vmatpush2.msra.mxu0 0.0
    %2431 = vmatprep.subr.mxu0 0.0
    %2432 = vmatpush2.msra.mxu0 0.0
    %2433 = vmatprep.subr.mxu0 0.0
    %2434 = vmatpush2.msra.mxu0 0.0
    %2435 = vmatprep.subr.mxu0 0.0
    %2436 = vmatpush2.msra.mxu0 0.0
    %2437 = vmatprep.subr.mxu0 0.0
    %2438 = vmatpush2.msra.mxu0 0.0
    %2439 = vmatprep.subr.mxu0 0.0
    %2440 = vmatpush2.msra.mxu0 0.0
    %2441 = vmatprep.subr.mxu0 0.0
    %2442 = vmatpush2.msra.mxu0 0.0
    %2443 = vmatprep.mubr.f32.mxu0 0.0
    %2444 = vmatmul.mubr.f32.gmra.mxu0 %v2374
    %v2445 = vpop.f32.mrf.mxu0
    %v2446 = vadd.f32 0.0, %v2445
    %v2447 = vpop.f32.mrf.mxu0
    %2448 = vmatprep.mubr.f32.mxu0 0.0
    %2449 = vmatmul.mubr.f32.gmra.mxu0 %v2377
    %v2450 = vpop.f32.mrf.mxu0
    %v2451 = vadd.f32 0.0, %v2450
    %v2452 = vpop.f32.mrf.mxu0
    %2453 = vdwg.mxu0
    %2458 = vrot.lane.b32.xlu0 %v2359, 16
    %v2459 = vpop.permute.xlu0 %2458
    %2460 = vrot.lane.b32.xlu0 %v2364, 16
    %v2461 = vpop.permute.xlu0 %2460
    %2462 = vrot.lane.b32.xlu0 %v2446, 16
    %v2463 = vpop.permute.xlu0 %2462
    %2464 = vrot.lane.b32.xlu0 %v2451, 16
    %v2465 = vpop.permute.xlu0 %2464
    %v2470 = vsel %vm232, %v2185, %v2459
    %v2471 = vsel %vm232, %v2190, %v2461
    %v2472 = vsel %vm232, %v2272, %v2463
    %v2473 = vsel %vm232, %v2277, %v2465
    %s2474 = scalar_lea.vmem [#allocation7], 32
    %v2475 = vld [vmem:[%s2474] sm:$0xff]
    %v2476 = vld [vmem:[%s2474 + $0x8] sm:$0xff]
    %v2477 = vld [vmem:[%s2474 + $0x10] sm:$0xff]
    %v2478 = vld [vmem:[%s2474 + $0x18] sm:$0xff]
    %v2479 = vlaneseq
    %v2480 = vshrl.u32 %v2479, 7
    %v2481 = vsub.s32 1, %v2480
    %v2482 = vrot.slane %v1523, %v2481
    %v2484 = vsel %vm106, %v2470, 0
    %v2487 = vsel %vm106, %v2471, 0
    %v2490 = vsel %vm106, %v2472, 0
    %v2493 = vsel %vm106, %v2473, 0
    %2495 = vmatprep.subr.mxu0 0.0
    %2496 = vmatpush1.msra.mxu0 0.0
    %2497 = vmatprep.subr.mxu0 0.0
    %2498 = vmatpush1.msra.mxu0 0.0
    %2499 = vmatprep.subr.mxu0 0.0
    %2500 = vmatpush1.msra.mxu0 0.0
    %2501 = vmatprep.subr.mxu0 0.0
    %2502 = vmatpush1.msra.mxu0 0.0
    %2503 = vmatprep.subr.mxu0 0.0
    %2504 = vmatpush1.msra.mxu0 0.0
    %2505 = vmatprep.subr.mxu0 0.0
    %2506 = vmatpush1.msra.mxu0 0.0
    %2507 = vmatprep.subr.mxu0 0.0
    %2508 = vmatpush1.msra.mxu0 0.0
    %2509 = vmatprep.subr.mxu0 0.0
    %2510 = vmatpush1.msra.mxu0 0.0
    %2511 = vmatprep.subr.mxu0 0.0
    %2512 = vmatpush1.msra.mxu0 0.0
    %2513 = vmatprep.subr.mxu0 0.0
    %2514 = vmatpush1.msra.mxu0 0.0
    %2515 = vmatprep.subr.mxu0 0.0
    %2516 = vmatpush1.msra.mxu0 0.0
    %2517 = vmatprep.subr.mxu0 0.0
    %2518 = vmatpush1.msra.mxu0 0.0
    %2519 = vmatprep.subr.mxu0 0.0
    %2520 = vmatpush1.msra.mxu0 %v2478
    %2521 = vmatprep.subr.mxu0 0.0
    %2522 = vmatpush1.msra.mxu0 %v2477
    %2523 = vmatprep.subr.mxu0 0.0
    %2524 = vmatpush1.msra.mxu0 %v2476
    %2525 = vmatprep.subr.mxu0 0.0
    %2526 = vmatpush1.msra.mxu0 %v2475
    %2527 = vmatprep.subr.mxu0 0.0
    %2528 = vmatpush2.msra.mxu0 0.0
    %2529 = vmatprep.subr.mxu0 0.0
    %2530 = vmatpush2.msra.mxu0 0.0
    %2531 = vmatprep.subr.mxu0 0.0
    %2532 = vmatpush2.msra.mxu0 0.0
    %2533 = vmatprep.subr.mxu0 0.0
    %2534 = vmatpush2.msra.mxu0 0.0
    %2535 = vmatprep.subr.mxu0 0.0
    %2536 = vmatpush2.msra.mxu0 0.0
    %2537 = vmatprep.subr.mxu0 0.0
    %2538 = vmatpush2.msra.mxu0 0.0
    %2539 = vmatprep.subr.mxu0 0.0
    %2540 = vmatpush2.msra.mxu0 0.0
    %2541 = vmatprep.subr.mxu0 0.0
    %2542 = vmatpush2.msra.mxu0 0.0
    %2543 = vmatprep.subr.mxu0 0.0
    %2544 = vmatpush2.msra.mxu0 0.0
    %2545 = vmatprep.subr.mxu0 0.0
    %2546 = vmatpush2.msra.mxu0 0.0
    %2547 = vmatprep.subr.mxu0 0.0
    %2548 = vmatpush2.msra.mxu0 0.0
    %2549 = vmatprep.subr.mxu0 0.0
    %2550 = vmatpush2.msra.mxu0 0.0
    %2551 = vmatprep.subr.mxu0 0.0
    %2552 = vmatpush2.msra.mxu0 0.0
    %2553 = vmatprep.subr.mxu0 0.0
    %2554 = vmatpush2.msra.mxu0 0.0
    %2555 = vmatprep.subr.mxu0 0.0
    %2556 = vmatpush2.msra.mxu0 0.0
    %2557 = vmatprep.subr.mxu0 0.0
    %2558 = vmatpush2.msra.mxu0 0.0
    %2559 = vmatprep.mubr.f32.mxu0 0.0
    %2560 = vmatmul.mubr.f32.gmra.mxu0 %v2484
    %v2561 = vpop.f32.mrf.mxu0
    %v2562 = vadd.f32 %v2482, %v2561
    %v2563 = vpop.f32.mrf.mxu0
    %2564 = vmatprep.mubr.f32.mxu0 0.0
    %2565 = vmatmul.mubr.f32.gmra.mxu0 %v2487
    %v2566 = vpop.f32.mrf.mxu0
    %v2567 = vadd.f32 %v2482, %v2566
    %v2568 = vpop.f32.mrf.mxu0
    %2569 = vmatprep.mubr.f32.mxu0 0.0
    %2570 = vmatmul.mubr.f32.gmra.mxu0 %v2490
    %v2571 = vpop.f32.mrf.mxu0
    %v2572 = vadd.f32 %v2482, %v2571
    %v2573 = vpop.f32.mrf.mxu0
    %2574 = vmatprep.mubr.f32.mxu0 0.0
    %2575 = vmatmul.mubr.f32.gmra.mxu0 %v2493
    %v2576 = vpop.f32.mrf.mxu0
    %v2577 = vadd.f32 %v2482, %v2576
    %v2578 = vpop.f32.mrf.mxu0
    %2579 = vdwg.mxu0
    %v2580 = vadd.f32 %v1518, %v2562
    %v2581 = vadd.f32 %v1519, %v2567
    %v2582 = vadd.f32 %v1520, %v2572
    %v2583 = vadd.f32 %v1521, %v2577
    %v2584 = vsel %vm106, %v2580, 0.0
    %2585 = vadd.xlane.f32.xlu0 %v2584
    %v2586 = vpop.xlane.xlu0 %2585
    %v2587 = vsel %vm106, %v2581, 0.0
    %2588 = vadd.xlane.f32.xlu0 %v2587
    %v2589 = vpop.xlane.xlu0 %2588
    %v2590 = vsel %vm106, %v2582, 0.0
    %2591 = vadd.xlane.f32.xlu0 %v2590
    %v2592 = vpop.xlane.xlu0 %2591
    %v2593 = vsel %vm106, %v2583, 0.0
    %2594 = vadd.xlane.f32.xlu0 %v2593
    %v2595 = vpop.xlane.xlu0 %2594
    %v2596 = vmul.f32 %v2586, %v1174
    %v2597 = vmul.f32 %v2589, %v1174
    %v2598 = vmul.f32 %v2592, %v1174
    %v2599 = vmul.f32 %v2595, %v1174
    %v2600 = vsub.f32 %v2580, %v2596
    %v2601 = vsub.f32 %v2581, %v2597
    %v2602 = vsub.f32 %v2582, %v2598
    %v2603 = vsub.f32 %v2583, %v2599
    %v2604 = vmul.f32 %v2600, %v2600
    %v2605 = vmul.f32 %v2601, %v2601
    %v2606 = vmul.f32 %v2602, %v2602
    %v2607 = vmul.f32 %v2603, %v2603
    %v2608 = vsel %vm106, %v2604, 0.0
    %2609 = vadd.xlane.f32.xlu0 %v2608
    %v2610 = vpop.xlane.xlu0 %2609
    %v2611 = vsel %vm106, %v2605, 0.0
    %2612 = vadd.xlane.f32.xlu0 %v2611
    %v2613 = vpop.xlane.xlu0 %2612
    %v2614 = vsel %vm106, %v2606, 0.0
    %2615 = vadd.xlane.f32.xlu0 %v2614
    %v2616 = vpop.xlane.xlu0 %2615
    %v2617 = vsel %vm106, %v2607, 0.0
    %2618 = vadd.xlane.f32.xlu0 %v2617
    %v2619 = vpop.xlane.xlu0 %2618
    %v2620 = vmul.f32 %v2610, %v1174
    %v2621 = vmul.f32 %v2613, %v1174
    %v2622 = vmul.f32 %v2616, %v1174
    %v2623 = vmul.f32 %v2619, %v1174
    %v2624 = vadd.f32 %v2620, 1e-05
    %v2625 = vadd.f32 %v2621, 1e-05
    %v2626 = vadd.f32 %v2622, 1e-05
    %v2627 = vadd.f32 %v2623, 1e-05
    %v2628 = vrsqrt.pop %v2624
    %v2629 = vrsqrt.pop %v2625
    %v2630 = vrsqrt.pop %v2626
    %v2631 = vrsqrt.pop %v2627
    %v2632 = vmul.f32 %v2600, %v2628
    %v2633 = vmul.f32 %v2601, %v2629
    %v2634 = vmul.f32 %v2602, %v2630
    %v2635 = vmul.f32 %v2603, %v2631
    %v2636 = vlaneseq
    %v2637 = vshrl.u32 %v2636, 7
    %v2638 = vsub.s32 2, %v2637
    %v2639 = vrot.slane %v1523, %v2638
    %v2640 = vmul.f32 %v2632, %v2639
    %v2641 = vmul.f32 %v2633, %v2639
    %v2642 = vmul.f32 %v2634, %v2639
    %v2643 = vmul.f32 %v2635, %v2639
    %v2644 = vlaneseq
    %v2645 = vshrl.u32 %v2644, 7
    %v2646 = vsub.s32 3, %v2645
    %v2647 = vrot.slane %v1523, %v2646
    %v2648 = vadd.f32 %v2640, %v2647
    %v2649 = vadd.f32 %v2641, %v2647
    %v2650 = vadd.f32 %v2642, %v2647
    %v2651 = vadd.f32 %v2643, %v2647
    %s2652 = scalar_lea.vmem [#allocation9], 32
    %v2653 = vld [vmem:[%s2652] sm:$0xff]
    %v2654 = vld [vmem:[%s2652 + $0x8] sm:$0xff]
    %v2655 = vld [vmem:[%s2652 + $0x10] sm:$0xff]
    %v2656 = vld [vmem:[%s2652 + $0x18] sm:$0xff]
    %v2657 = vlaneseq
    %v2658 = vshrl.u32 %v2657, 7
    %v2659 = vsub.s32 4, %v2658
    %v2660 = vrot.slane %v1523, %v2659
    %v2662 = vsel %vm106, %v2648, 0
    %v2665 = vsel %vm106, %v2649, 0
    %v2668 = vsel %vm106, %v2650, 0
    %v2671 = vsel %vm106, %v2651, 0
    %2673 = vmatprep.subr.mxu0 0.0
    %2674 = vmatpush1.msra.mxu0 0.0
    %2675 = vmatprep.subr.mxu0 0.0
    %2676 = vmatpush1.msra.mxu0 0.0
    %2677 = vmatprep.subr.mxu0 0.0
    %2678 = vmatpush1.msra.mxu0 0.0
    %2679 = vmatprep.subr.mxu0 0.0
    %2680 = vmatpush1.msra.mxu0 0.0
    %2681 = vmatprep.subr.mxu0 0.0
    %2682 = vmatpush1.msra.mxu0 0.0
    %2683 = vmatprep.subr.mxu0 0.0
    %2684 = vmatpush1.msra.mxu0 0.0
    %2685 = vmatprep.subr.mxu0 0.0
    %2686 = vmatpush1.msra.mxu0 0.0
    %2687 = vmatprep.subr.mxu0 0.0
    %2688 = vmatpush1.msra.mxu0 0.0
    %2689 = vmatprep.subr.mxu0 0.0
    %2690 = vmatpush1.msra.mxu0 0.0
    %2691 = vmatprep.subr.mxu0 0.0
    %2692 = vmatpush1.msra.mxu0 0.0
    %2693 = vmatprep.subr.mxu0 0.0
    %2694 = vmatpush1.msra.mxu0 0.0
    %2695 = vmatprep.subr.mxu0 0.0
    %2696 = vmatpush1.msra.mxu0 0.0
    %2697 = vmatprep.subr.mxu0 0.0
    %2698 = vmatpush1.msra.mxu0 %v2656
    %2699 = vmatprep.subr.mxu0 0.0
    %2700 = vmatpush1.msra.mxu0 %v2655
    %2701 = vmatprep.subr.mxu0 0.0
    %2702 = vmatpush1.msra.mxu0 %v2654
    %2703 = vmatprep.subr.mxu0 0.0
    %2704 = vmatpush1.msra.mxu0 %v2653
    %2705 = vmatprep.subr.mxu0 0.0
    %2706 = vmatpush2.msra.mxu0 0.0
    %2707 = vmatprep.subr.mxu0 0.0
    %2708 = vmatpush2.msra.mxu0 0.0
    %2709 = vmatprep.subr.mxu0 0.0
    %2710 = vmatpush2.msra.mxu0 0.0
    %2711 = vmatprep.subr.mxu0 0.0
    %2712 = vmatpush2.msra.mxu0 0.0
    %2713 = vmatprep.subr.mxu0 0.0
    %2714 = vmatpush2.msra.mxu0 0.0
    %2715 = vmatprep.subr.mxu0 0.0
    %2716 = vmatpush2.msra.mxu0 0.0
    %2717 = vmatprep.subr.mxu0 0.0
    %2718 = vmatpush2.msra.mxu0 0.0
    %2719 = vmatprep.subr.mxu0 0.0
    %2720 = vmatpush2.msra.mxu0 0.0
    %2721 = vmatprep.subr.mxu0 0.0
    %2722 = vmatpush2.msra.mxu0 0.0
    %2723 = vmatprep.subr.mxu0 0.0
    %2724 = vmatpush2.msra.mxu0 0.0
    %2725 = vmatprep.subr.mxu0 0.0
    %2726 = vmatpush2.msra.mxu0 0.0
    %2727 = vmatprep.subr.mxu0 0.0
    %2728 = vmatpush2.msra.mxu0 0.0
    %2729 = vmatprep.subr.mxu0 0.0
    %2730 = vmatpush2.msra.mxu0 0.0
    %2731 = vmatprep.subr.mxu0 0.0
    %2732 = vmatpush2.msra.mxu0 0.0
    %2733 = vmatprep.subr.mxu0 0.0
    %2734 = vmatpush2.msra.mxu0 0.0
    %2735 = vmatprep.subr.mxu0 0.0
    %2736 = vmatpush2.msra.mxu0 0.0
    %2737 = vmatprep.mubr.f32.mxu0 0.0
    %2738 = vmatmul.mubr.f32.gmra.mxu0 %v2662
    %v2739 = vpop.f32.mrf.mxu0
    %v2740 = vadd.f32 %v2660, %v2739
    %v2741 = vpop.f32.mrf.mxu0
    %2742 = vmatprep.mubr.f32.mxu0 0.0
    %2743 = vmatmul.mubr.f32.gmra.mxu0 %v2665
    %v2744 = vpop.f32.mrf.mxu0
    %v2745 = vadd.f32 %v2660, %v2744
    %v2746 = vpop.f32.mrf.mxu0
    %2747 = vmatprep.mubr.f32.mxu0 0.0
    %2748 = vmatmul.mubr.f32.gmra.mxu0 %v2668
    %v2749 = vpop.f32.mrf.mxu0
    %v2750 = vadd.f32 %v2660, %v2749
    %v2751 = vpop.f32.mrf.mxu0
    %2752 = vmatprep.mubr.f32.mxu0 0.0
    %2753 = vmatmul.mubr.f32.gmra.mxu0 %v2671
    %v2754 = vpop.f32.mrf.mxu0
    %v2755 = vadd.f32 %v2660, %v2754
    %v2756 = vpop.f32.mrf.mxu0
    %2757 = vdwg.mxu0
    %v2758 = vmax.f32 %v2740, 0.0
    %v2759 = vmax.f32 %v2745, 0.0
    %v2760 = vmax.f32 %v2750, 0.0
    %v2761 = vmax.f32 %v2755, 0.0
    %s2762 = scalar_lea.vmem %s6, 64
    %v2763 = vld [vmem:[%s2762] sm:$0xff]
    %v2764 = vld [vmem:[%s2762 + $0x8] sm:$0xff]
    %v2765 = vld [vmem:[%s2762 + $0x10] sm:$0xff]
    %v2766 = vld [vmem:[%s2762 + $0x18] sm:$0xff]
    %v2767 = vld [vmem:[%s2762 + $0x20] sm:$0xff]
    %v2768 = vld [vmem:[%s2762 + $0x28] sm:$0xff]
    %v2769 = vld [vmem:[%s2762 + $0x30] sm:$0xff]
    %v2770 = vld [vmem:[%s2762 + $0x38] sm:$0xff]
    %v2771 = vlaneseq
    %v2772 = vshrl.u32 %v2771, 7
    %v2773 = vsub.s32 5, %v2772
    %v2774 = vrot.slane %v1523, %v2773
    %v2776 = vsel %vm1352, %v2758, 0
    %v2779 = vsel %vm1352, %v2759, 0
    %v2782 = vsel %vm1352, %v2760, 0
    %v2785 = vsel %vm1352, %v2761, 0
    %2787 = vmatprep.subr.mxu0 0.0
    %2788 = vmatpush1.msra.mxu0 0.0
    %2789 = vmatprep.subr.mxu0 0.0
    %2790 = vmatpush1.msra.mxu0 0.0
    %2791 = vmatprep.subr.mxu0 0.0
    %2792 = vmatpush1.msra.mxu0 0.0
    %2793 = vmatprep.subr.mxu0 0.0
    %2794 = vmatpush1.msra.mxu0 0.0
    %2795 = vmatprep.subr.mxu0 0.0
    %2796 = vmatpush1.msra.mxu0 0.0
    %2797 = vmatprep.subr.mxu0 0.0
    %2798 = vmatpush1.msra.mxu0 0.0
    %2799 = vmatprep.subr.mxu0 0.0
    %2800 = vmatpush1.msra.mxu0 0.0
    %2801 = vmatprep.subr.mxu0 0.0
    %2802 = vmatpush1.msra.mxu0 0.0
    %2803 = vmatprep.subr.mxu0 0.0
    %2804 = vmatpush1.msra.mxu0 %v2770
    %2805 = vmatprep.subr.mxu0 0.0
    %2806 = vmatpush1.msra.mxu0 %v2769
    %2807 = vmatprep.subr.mxu0 0.0
    %2808 = vmatpush1.msra.mxu0 %v2768
    %2809 = vmatprep.subr.mxu0 0.0
    %2810 = vmatpush1.msra.mxu0 %v2767
    %2811 = vmatprep.subr.mxu0 0.0
    %2812 = vmatpush1.msra.mxu0 %v2766
    %2813 = vmatprep.subr.mxu0 0.0
    %2814 = vmatpush1.msra.mxu0 %v2765
    %2815 = vmatprep.subr.mxu0 0.0
    %2816 = vmatpush1.msra.mxu0 %v2764
    %2817 = vmatprep.subr.mxu0 0.0
    %2818 = vmatpush1.msra.mxu0 %v2763
    %2819 = vmatprep.subr.mxu0 0.0
    %2820 = vmatpush2.msra.mxu0 0.0
    %2821 = vmatprep.subr.mxu0 0.0
    %2822 = vmatpush2.msra.mxu0 0.0
    %2823 = vmatprep.subr.mxu0 0.0
    %2824 = vmatpush2.msra.mxu0 0.0
    %2825 = vmatprep.subr.mxu0 0.0
    %2826 = vmatpush2.msra.mxu0 0.0
    %2827 = vmatprep.subr.mxu0 0.0
    %2828 = vmatpush2.msra.mxu0 0.0
    %2829 = vmatprep.subr.mxu0 0.0
    %2830 = vmatpush2.msra.mxu0 0.0
    %2831 = vmatprep.subr.mxu0 0.0
    %2832 = vmatpush2.msra.mxu0 0.0
    %2833 = vmatprep.subr.mxu0 0.0
    %2834 = vmatpush2.msra.mxu0 0.0
    %2835 = vmatprep.subr.mxu0 0.0
    %2836 = vmatpush2.msra.mxu0 0.0
    %2837 = vmatprep.subr.mxu0 0.0
    %2838 = vmatpush2.msra.mxu0 0.0
    %2839 = vmatprep.subr.mxu0 0.0
    %2840 = vmatpush2.msra.mxu0 0.0
    %2841 = vmatprep.subr.mxu0 0.0
    %2842 = vmatpush2.msra.mxu0 0.0
    %2843 = vmatprep.subr.mxu0 0.0
    %2844 = vmatpush2.msra.mxu0 0.0
    %2845 = vmatprep.subr.mxu0 0.0
    %2846 = vmatpush2.msra.mxu0 0.0
    %2847 = vmatprep.subr.mxu0 0.0
    %2848 = vmatpush2.msra.mxu0 0.0
    %2849 = vmatprep.subr.mxu0 0.0
    %2850 = vmatpush2.msra.mxu0 0.0
    %2851 = vmatprep.mubr.f32.mxu0 0.0
    %2852 = vmatmul.mubr.f32.gmra.mxu0 %v2776
    %v2853 = vpop.f32.mrf.mxu0
    %v2854 = vadd.f32 %v2774, %v2853
    %v2855 = vpop.f32.mrf.mxu0
    %2856 = vmatprep.mubr.f32.mxu0 0.0
    %2857 = vmatmul.mubr.f32.gmra.mxu0 %v2779
    %v2858 = vpop.f32.mrf.mxu0
    %v2859 = vadd.f32 %v2774, %v2858
    %v2860 = vpop.f32.mrf.mxu0
    %2861 = vmatprep.mubr.f32.mxu0 0.0
    %2862 = vmatmul.mubr.f32.gmra.mxu0 %v2782
    %v2863 = vpop.f32.mrf.mxu0
    %v2864 = vadd.f32 %v2774, %v2863
    %v2865 = vpop.f32.mrf.mxu0
    %2866 = vmatprep.mubr.f32.mxu0 0.0
    %2867 = vmatmul.mubr.f32.gmra.mxu0 %v2785
    %v2868 = vpop.f32.mrf.mxu0
    %v2869 = vadd.f32 %v2774, %v2868
    %v2870 = vpop.f32.mrf.mxu0
    %2871 = vdwg.mxu0
    %v2872 = vadd.f32 %v2648, %v2854
    %v2873 = vadd.f32 %v2649, %v2859
    %v2874 = vadd.f32 %v2650, %v2864
    %v2875 = vadd.f32 %v2651, %v2869
    %v2876 = vsel %vm106, %v2872, 0.0
    %2877 = vadd.xlane.f32.xlu0 %v2876
    %v2878 = vpop.xlane.xlu0 %2877
    %v2879 = vsel %vm106, %v2873, 0.0
    %2880 = vadd.xlane.f32.xlu0 %v2879
    %v2881 = vpop.xlane.xlu0 %2880
    %v2882 = vsel %vm106, %v2874, 0.0
    %2883 = vadd.xlane.f32.xlu0 %v2882
    %v2884 = vpop.xlane.xlu0 %2883
    %v2885 = vsel %vm106, %v2875, 0.0
    %2886 = vadd.xlane.f32.xlu0 %v2885
    %v2887 = vpop.xlane.xlu0 %2886
    %v2888 = vmul.f32 %v2878, %v1174
    %v2889 = vmul.f32 %v2881, %v1174
    %v2890 = vmul.f32 %v2884, %v1174
    %v2891 = vmul.f32 %v2887, %v1174
    %v2892 = vsub.f32 %v2872, %v2888
    %v2893 = vsub.f32 %v2873, %v2889
    %v2894 = vsub.f32 %v2874, %v2890
    %v2895 = vsub.f32 %v2875, %v2891
    %v2896 = vmul.f32 %v2892, %v2892
    %v2897 = vmul.f32 %v2893, %v2893
    %v2898 = vmul.f32 %v2894, %v2894
    %v2899 = vmul.f32 %v2895, %v2895
    %v2900 = vsel %vm106, %v2896, 0.0
    %2901 = vadd.xlane.f32.xlu0 %v2900
    %v2902 = vpop.xlane.xlu0 %2901
    %v2903 = vsel %vm106, %v2897, 0.0
    %2904 = vadd.xlane.f32.xlu0 %v2903
    %v2905 = vpop.xlane.xlu0 %2904
    %v2906 = vsel %vm106, %v2898, 0.0
    %2907 = vadd.xlane.f32.xlu0 %v2906
    %v2908 = vpop.xlane.xlu0 %2907
    %v2909 = vsel %vm106, %v2899, 0.0
    %2910 = vadd.xlane.f32.xlu0 %v2909
    %v2911 = vpop.xlane.xlu0 %2910
    %v2912 = vmul.f32 %v2902, %v1174
    %v2913 = vmul.f32 %v2905, %v1174
    %v2914 = vmul.f32 %v2908, %v1174
    %v2915 = vmul.f32 %v2911, %v1174
    %v2916 = vadd.f32 %v2912, 1e-05
    %v2917 = vadd.f32 %v2913, 1e-05
    %v2918 = vadd.f32 %v2914, 1e-05
    %v2919 = vadd.f32 %v2915, 1e-05
    %v2920 = vrsqrt.pop %v2916
    %v2921 = vrsqrt.pop %v2917
    %v2922 = vrsqrt.pop %v2918
    %v2923 = vrsqrt.pop %v2919
    %v2924 = vmul.f32 %v2892, %v2920
    %v2925 = vmul.f32 %v2893, %v2921
    %v2926 = vmul.f32 %v2894, %v2922
    %v2927 = vmul.f32 %v2895, %v2923
    %v2928 = vlaneseq
    %v2929 = vshrl.u32 %v2928, 7
    %v2930 = vsub.s32 6, %v2929
    %v2931 = vrot.slane %v1523, %v2930
    %v2932 = vmul.f32 %v2924, %v2931
    %v2933 = vmul.f32 %v2925, %v2931
    %v2934 = vmul.f32 %v2926, %v2931
    %v2935 = vmul.f32 %v2927, %v2931
    %v2936 = vlaneseq
    %v2937 = vshrl.u32 %v2936, 7
    %v2938 = vsub.s32 7, %v2937
    %v2939 = vrot.slane %v1523, %v2938
    %v2940 = vadd.f32 %v2932, %v2939
    %v2941 = vadd.f32 %v2933, %v2939
    %v2942 = vadd.f32 %v2934, %v2939
    %v2943 = vadd.f32 %v2935, %v2939
    %s2944 = smul.u32 0, 2
    %s2945 = sld [smem:[#allocation3 + %s2944]]
    %v2946 = vstv %s2945
    %vm2947 = vcmp.eq.s32.totalorder %v91, %v2946
    %vm2948 = vcmp.eq.s32.totalorder %v92, %v2946
    %v2949 = vsel %vm2947, 1, 0
    %v2950 = vsel %vm2948, 1, 0
    %v2951 = vcvt.s32.f32 %v2949
    %v2952 = vcvt.s32.f32 %v2950
    %v2953 = vmul.f32 %v2940, %v2951
    %v2954 = vmul.f32 %v2941, %v2952
    %v2955 = vsel %vm106, %v2953, 0.0
    %v2956 = vsel %vm106, %v2954, 0.0
    %v2957 = vadd.f32 %v2955, %v2956
    %v2958 = vrot.slane %v2957, 4
    %v2959 = vadd.f32 %v2957, %v2958
    %v2960 = vrot.slane %v2959, 2
    %v2961 = vadd.f32 %v2959, %v2960
    %v2962 = vrot.slane %v2961, 1
    %v2963 = vadd.f32 %v2961, %v2962
    %s2964 = sadd.s32 %s2944, 1
    %s2965 = sld [smem:[#allocation3 + %s2964]]
    %v2966 = vstv %s2965
    %vm2967 = vcmp.eq.s32.totalorder %v91, %v2966
    %vm2968 = vcmp.eq.s32.totalorder %v92, %v2966
    %v2969 = vsel %vm2967, 1, 0
    %v2970 = vsel %vm2968, 1, 0
    %v2971 = vcvt.s32.f32 %v2969
    %v2972 = vcvt.s32.f32 %v2970
    %v2973 = vmul.f32 %v2942, %v2971
    %v2974 = vmul.f32 %v2943, %v2972
    %v2975 = vsel %vm106, %v2973, 0.0
    %v2976 = vsel %vm106, %v2974, 0.0
    %v2977 = vadd.f32 %v2975, %v2976
    %v2978 = vrot.slane %v2977, 4
    %v2979 = vadd.f32 %v2977, %v2978
    %v2980 = vrot.slane %v2979, 2
    %v2981 = vadd.f32 %v2979, %v2980
    %v2982 = vrot.slane %v2981, 1
    %v2983 = vadd.f32 %v2981, %v2982
    %vm2984 = vcmask 1040384
    %v2985 = vsel %vm2984, %v2963, %v2983
    %vm2986 = vcmask 254976
    %2987 = vst.msk [vmem:[#allocation10] sm:$0x3] %vm2986, %v2985
    %v2988 = vld [vmem:[%s8] sm:$0xff]
    %v2989 = vld [vmem:[%s8 + $0x8] sm:$0xff]
    %v2990 = vld [vmem:[%s8 + $0x10] sm:$0xff]
    %v2991 = vld [vmem:[%s8 + $0x18] sm:$0xff]
    %v2992 = vld [vmem:[%s8 + $0x20] sm:$0xff]
    %v2993 = vld [vmem:[%s8 + $0x28] sm:$0xff]
    %v2994 = vld [vmem:[%s8 + $0x30] sm:$0xff]
    %v2995 = vld [vmem:[%s8 + $0x38] sm:$0xff]
    %v2996 = vld [vmem:[%s8 + $0x40] sm:$0xff]
    %v2997 = vld [vmem:[%s8 + $0x48] sm:$0xff]
    %v2998 = vld [vmem:[%s8 + $0x50] sm:$0xff]
    %v2999 = vld [vmem:[%s8 + $0x58] sm:$0xff]
    %v3000 = vld [vmem:[%s8 + $0x60] sm:$0xff]
    %v3001 = vld [vmem:[%s8 + $0x68] sm:$0xff]
    %v3002 = vld [vmem:[%s8 + $0x70] sm:$0xff]
    %v3003 = vld [vmem:[%s8 + $0x78] sm:$0xff]
    %v3005 = vsel %vm106, %v2940, 0
    %v3008 = vsel %vm106, %v2941, 0
    %v3011 = vsel %vm106, %v2942, 0
    %v3014 = vsel %vm106, %v2943, 0
    %v3017 = vsel %vm106, %v2988, 0
    %v3020 = vsel %vm106, %v2989, 0
    %v3023 = vsel %vm106, %v2990, 0
    %v3026 = vsel %vm106, %v2991, 0
    %v3029 = vsel %vm106, %v2992, 0
    %v3032 = vsel %vm106, %v2993, 0
    %v3035 = vsel %vm106, %v2994, 0
    %v3038 = vsel %vm106, %v2995, 0
    %v3041 = vsel %vm106, %v2996, 0
    %v3044 = vsel %vm106, %v2997, 0
    %v3047 = vsel %vm106, %v2998, 0
    %v3050 = vsel %vm106, %v2999, 0
    %v3053 = vsel %vm106, %v3000, 0
    %v3056 = vsel %vm106, %v3001, 0
    %v3059 = vsel %vm106, %v3002, 0
    %v3062 = vsel %vm106, %v3003, 0
    %3064 = vmatprep.subr.mxu0 0.0
    %3065 = vmatpush1.xpose.msra.mxu0 %v3062
    %3066 = vmatprep.subr.mxu0 0.0
    %3067 = vmatpush1.xpose.msra.mxu0 %v3059
    %3068 = vmatprep.subr.mxu0 0.0
    %3069 = vmatpush1.xpose.msra.mxu0 %v3056
    %3070 = vmatprep.subr.mxu0 0.0
    %3071 = vmatpush1.xpose.msra.mxu0 %v3053
    %3072 = vmatprep.subr.mxu0 0.0
    %3073 = vmatpush1.xpose.msra.mxu0 %v3050
    %3074 = vmatprep.subr.mxu0 0.0
    %3075 = vmatpush1.xpose.msra.mxu0 %v3047
    %3076 = vmatprep.subr.mxu0 0.0
    %3077 = vmatpush1.xpose.msra.mxu0 %v3044
    %3078 = vmatprep.subr.mxu0 0.0
    %3079 = vmatpush1.xpose.msra.mxu0 %v3041
    %3080 = vmatprep.subr.mxu0 0.0
    %3081 = vmatpush1.xpose.msra.mxu0 %v3038
    %3082 = vmatprep.subr.mxu0 0.0
    %3083 = vmatpush1.xpose.msra.mxu0 %v3035
    %3084 = vmatprep.subr.mxu0 0.0
    %3085 = vmatpush1.xpose.msra.mxu0 %v3032
    %3086 = vmatprep.subr.mxu0 0.0
    %3087 = vmatpush1.xpose.msra.mxu0 %v3029
    %3088 = vmatprep.subr.mxu0 0.0
    %3089 = vmatpush1.xpose.msra.mxu0 %v3026
    %3090 = vmatprep.subr.mxu0 0.0
    %3091 = vmatpush1.xpose.msra.mxu0 %v3023
    %3092 = vmatprep.subr.mxu0 0.0
    %3093 = vmatpush1.xpose.msra.mxu0 %v3020
    %3094 = vmatprep.subr.mxu0 0.0
    %3095 = vmatpush1.xpose.msra.mxu0 %v3017
    %3096 = vmatprep.subr.mxu0 0.0
    %3097 = vmatpush2.xpose.msra.mxu0 0.0
    %3098 = vmatprep.subr.mxu0 0.0
    %3099 = vmatpush2.xpose.msra.mxu0 0.0
    %3100 = vmatprep.subr.mxu0 0.0
    %3101 = vmatpush2.xpose.msra.mxu0 0.0
    %3102 = vmatprep.subr.mxu0 0.0
    %3103 = vmatpush2.xpose.msra.mxu0 0.0
    %3104 = vmatprep.subr.mxu0 0.0
    %3105 = vmatpush2.xpose.msra.mxu0 0.0
    %3106 = vmatprep.subr.mxu0 0.0
    %3107 = vmatpush2.xpose.msra.mxu0 0.0
    %3108 = vmatprep.subr.mxu0 0.0
    %3109 = vmatpush2.xpose.msra.mxu0 0.0
    %3110 = vmatprep.subr.mxu0 0.0
    %3111 = vmatpush2.xpose.msra.mxu0 0.0
    %3112 = vmatprep.subr.mxu0 0.0
    %3113 = vmatpush2.xpose.msra.mxu0 0.0
    %3114 = vmatprep.subr.mxu0 0.0
    %3115 = vmatpush2.xpose.msra.mxu0 0.0
    %3116 = vmatprep.subr.mxu0 0.0
    %3117 = vmatpush2.xpose.msra.mxu0 0.0
    %3118 = vmatprep.subr.mxu0 0.0
    %3119 = vmatpush2.xpose.msra.mxu0 0.0
    %3120 = vmatprep.subr.mxu0 0.0
    %3121 = vmatpush2.xpose.msra.mxu0 0.0
    %3122 = vmatprep.subr.mxu0 0.0
    %3123 = vmatpush2.xpose.msra.mxu0 0.0
    %3124 = vmatprep.subr.mxu0 0.0
    %3125 = vmatpush2.xpose.msra.mxu0 0.0
    %3126 = vmatprep.subr.mxu0 0.0
    %3127 = vmatpush2.xpose.msra.mxu0 0.0
    %3128 = vmatprep.mubr.f32.mxu0 0.0
    %3129 = vmatmul.mubr.f32.gmra.mxu0 %v3005
    %v3130 = vpop.f32.mrf.mxu0
    %v3131 = vadd.f32 0.0, %v3130
    %v3132 = vpop.f32.mrf.mxu0
    %3133 = vmatprep.mubr.f32.mxu0 0.0
    %3134 = vmatmul.mubr.f32.gmra.mxu0 %v3008
    %v3135 = vpop.f32.mrf.mxu0
    %v3136 = vadd.f32 0.0, %v3135
    %v3137 = vpop.f32.mrf.mxu0
    %3138 = vmatprep.mubr.f32.mxu0 0.0
    %3139 = vmatmul.mubr.f32.gmra.mxu0 %v3011
    %v3140 = vpop.f32.mrf.mxu0
    %v3141 = vadd.f32 0.0, %v3140
    %v3142 = vpop.f32.mrf.mxu0
    %3143 = vmatprep.mubr.f32.mxu0 0.0
    %3144 = vmatmul.mubr.f32.gmra.mxu0 %v3014
    %v3145 = vpop.f32.mrf.mxu0
    %v3146 = vadd.f32 0.0, %v3145
    %v3147 = vpop.f32.mrf.mxu0
    %3148 = vdwg.mxu0
    %3149 = vst [vmem:[%s10] sm:$0xff] %v3131
    %3150 = vst [vmem:[%s10 + $0x10] sm:$0xff] %v3136
    %3151 = vst [vmem:[%s10 + $0x8] sm:$0xff] %v3141
    %3152 = vst [vmem:[%s10 + $0x18] sm:$0xff] %v3146
    // Predicated region
    $region46: #{_lambda_.1} parent=1 // pred_check
      _
    $region47: #{_lambda_.1} parent=1 // pred_check_branch
      %3154 = sbr.rel (0) target = $region49
    $region48: #{_lambda_.1} parent=1 // pred_region
      %s3156 = ssub.s32 32, 32
      %3157 = vsyncadd [#allocation6], %s3156
      %s3159 = sshll.u32 [#allocation10], 4
      %s3160 = int_to_ptr.vmem [resolvable:$true] %s3159
      %3162 = dma.vmem_to_hbm [thread:$0]  %s3160, 32, %s9, [#allocation6]
    $region49: #{_lambda_.1} parent=1 // pred_fallthru
      _
    // Predicated region
    $region50: #{_lambda_.1} parent=1 // pred_check
      _
    $region51: #{_lambda_.1} parent=1 // pred_check_branch
      %3164 = sbr.rel (0) target = $region53
    $region52: #{_lambda_.1} parent=1 // pred_region
      _
    $region53: #{_lambda_.1} parent=1 // pred_fallthru
      _
    // Predicated region
    $region54: #{_lambda_.1} parent=1 // pred_check
      _
    $region55: #{_lambda_.1} parent=1 // pred_check_branch
      %3166 = sbr.rel (0) target = $region57
    $region56: #{_lambda_.1} parent=1 // pred_region
      %3167 = dma.done [#allocation6], 32
    $region57: #{_lambda_.1} parent=1 // pred_fallthru
      _
    // Predicated region
    $region58: #{_lambda_.1} parent=1 // pred_check
      _
    $region59: #{_lambda_.1} parent=1 // pred_check_branch
      %3169 = sbr.rel (0) target = $region61
    $region60: #{_lambda_.1} parent=1 // pred_region
      _
    $region61: #{_lambda_.1} parent=1 // pred_fallthru
      _
    %3170 = vsyncpa [#allocation5], 1
    %3171 = vsyncpa [#allocation8], 1
    %3172 = vsyncpa [#allocation6], 1

</llo_original>
